<compile_context>
chip_gen: v6e
topology: v6e:2x2x1
jax: 0.10.0
libtpu: 0.0.40
codegen_flags: <defaults>
</compile_context>

<pallas_src>
import math

import numpy as np
import jax
import jax.numpy as jnp
from jax.experimental import pallas as pl
from jax.experimental.pallas import tpu as pltpu


# ----------------------------------------------------------------------------- helpers
def _cdiv(a, b):
    return -(-a // b)


def _round_up(a, b):
    return _cdiv(a, b) * b


# TODO(synk): FOV / mask-threshold values normally come from the external
# `projection(cfg)` helper; reasonable LiDAR defaults are embedded here.
_FOV_UP_DEG = 3.0
_FOV_DOWN_DEG = -25.0
_MASK_THRESHOLD = 0.5


def _range_view_to_points(range_view):
    """Spherical back-projection of a (B,T,H,W) range image to per-pixel xyz."""
    B, T, H, W = range_view.shape
    fov_up = _FOV_UP_DEG / 180.0 * math.pi
    fov_down = _FOV_DOWN_DEG / 180.0 * math.pi
    fov = abs(fov_up) + abs(fov_down)
    w_idx = (jnp.arange(W, dtype=jnp.float32) + 0.5) / W
    h_idx = (jnp.arange(H, dtype=jnp.float32) + 0.5) / H
    yaw = (1.0 - 2.0 * w_idx) * math.pi                 # (W,)
    pitch = (1.0 - h_idx) * fov - abs(fov_down)         # (H,)
    cp = jnp.cos(pitch)[:, None]
    sp = jnp.sin(pitch)[:, None]
    cy = jnp.cos(yaw)[None, :]
    sy = jnp.sin(yaw)[None, :]
    r = range_view
    x = r * (cp * cy)[None, None]
    y = r * (cp * sy)[None, None]
    z = r * sp[None, None]
    return jnp.stack([x, y, z], axis=-1)                # (B,T,H,W,3)


def _prepare_clouds(rv, mask_logits, target):
    """projection.get_masked_range_view + dense (xyz, valid) point clouds.

    Returns (o_xyz, o_val, t_xyz, t_val) laid out as (T, B, H*W, ...) so that
    g = s*B + b matches chamfer_distances_tensor[s, b].
    """
    B, T, H, W = rv.shape
    mask_prob = jax.nn.sigmoid(mask_logits)
    masked_rv = jnp.where(mask_prob < _MASK_THRESHOLD, jnp.float32(-1.0), rv)
    o_xyz = _range_view_to_points(masked_rv)                    # (B,T,H,W,3)
    o_val = (masked_rv > 0.0).astype(jnp.float32)               # (B,T,H,W)
    t_xyz = jnp.moveaxis(target[:, 1:4], 1, -1)                 # (B,T,H,W,3)
    t_val = (target[:, 0] > 0.0).astype(jnp.float32)            # (B,T,H,W)

    o_xyz = o_xyz.transpose(1, 0, 2, 3, 4).reshape(T, B, H * W, 3)
    o_val = o_val.transpose(1, 0, 2, 3).reshape(T, B, H * W)
    t_xyz = t_xyz.transpose(1, 0, 2, 3, 4).reshape(T, B, H * W, 3)
    t_val = t_val.transpose(1, 0, 2, 3).reshape(T, B, H * W)
    return o_xyz, o_val, t_xyz, t_val


# ----------------------------------------------------------------------- chamfer kernel
def _chamfer_kernel(o_ref, t_ref, out_ref, d1acc_ref, cnt1_ref, d2min_ref):
    """Masked squared chamfer distance for one (s, b) cloud, tiled over output points.

    o_ref : (TI, 4)   output-point tile   [x, y, z, valid]
    t_ref : (4, N)    full target cloud   [x; y; z; valid]   (points lane-dense)
    out_ref : (1, 128) per-cloud result, written lane-dense at the last tile only.
    """
    i = pl.program_id(1)
    n_i = pl.num_programs(1)

    @pl.when(i == 0)
    def _init():
        d1acc_ref[...] = jnp.zeros_like(d1acc_ref)
        cnt1_ref[...] = jnp.zeros_like(cnt1_ref)
        d2min_ref[...] = jnp.full(d2min_ref.shape, 1e30, jnp.float32)

    o = o_ref[...].astype(jnp.float32)
    t = t_ref[...].astype(jnp.float32)

    ox, oy, oz, ov = o[:, 0:1], o[:, 1:2], o[:, 2:3], o[:, 3:4]   # (TI, 1)
    tx, ty, tz, tv = t[0:1, :], t[1:2, :], t[2:3, :], t[3:4, :]   # (1, N)

    dx = ox - tx
    dy = oy - ty
    dz = oz - tz
    d = dx * dx + dy * dy + dz * dz                               # (TI, N)

    # dist1: nearest valid target for each valid output point (accumulated per row tile).
    d1 = d + (1.0 - tv) * 1e30
    rowmin = jnp.min(d1, axis=1, keepdims=True)                   # (TI, 1)
    d1acc_ref[...] += rowmin * ov
    cnt1_ref[...] += ov

    # dist2: running min over output rows (invalid rows excluded) for every target point.
    d2 = d + (1.0 - ov) * 1e30
    d2min_ref[...] = jnp.minimum(d2min_ref[...],
                                 jnp.min(d2, axis=0, keepdims=True))   # (1, N)

    @pl.when(i == n_i - 1)
    def _finalize():
        s1 = jnp.sum(d1acc_ref[...])
        n1 = jnp.sum(cnt1_ref[...])
        s2 = jnp.sum(d2min_ref[...] * tv)
        n2 = jnp.sum(tv)
        cd = s1 / n1 + s2 / n2
        out_ref[...] = jnp.broadcast_to(cd, out_ref.shape)


def _masked_chamfer_pallas(o_xyz, o_val, t_xyz, t_val):
    """Per-(s,b) chamfer distances, (T, B)."""
    T_, B_, N, _ = o_xyz.shape
    G = T_ * B_
    TI = 256                                   # output-point tile (rows of the distance block)
    # NOTE: for very large H*W an extra grid axis tiling the target (lane) dim would be
    # needed to bound the (TI, N) distance block; fine for range images up to ~32k pixels.
    N_pad = _round_up(N, TI)
    pad = N_pad - N

    o = jnp.concatenate([o_xyz, o_val[..., None]], axis=-1).reshape(G, N, 4)
    t = jnp.concatenate([jnp.moveaxis(t_xyz, -1, -2), t_val[..., None, :]],
                        axis=-2).reshape(G, 4, N)
    if pad:
        o = jnp.pad(o, ((0, 0), (0, pad), (0, 0)))     # padded rows: valid = 0
        t = jnp.pad(t, ((0, 0), (0, 0), (0, pad)))     # padded cols: valid = 0
    o = o.astype(jnp.float32)
    t = t.astype(jnp.float32)
    NI = N_pad // TI

    out = pl.pallas_call(
        _chamfer_kernel,
        out_shape=jax.ShapeDtypeStruct((G, 1, 128), jnp.float32),
        grid_spec=pltpu.PrefetchScalarGridSpec(
            num_scalar_prefetch=0,
            grid=(G, NI),
            in_specs=[
                pl.BlockSpec((None, TI, 4), lambda g, i: (g, i, 0)),
                pl.BlockSpec((None, 4, N_pad), lambda g, i: (g, 0, 0)),
            ],
            out_specs=pl.BlockSpec((None, 1, 128), lambda g, i: (g, 0, 0)),
            scratch_shapes=[
                pltpu.VMEM((TI, 1), jnp.float32),      # dist1 row-min partial sums
                pltpu.VMEM((TI, 1), jnp.float32),      # valid-output-point counts
                pltpu.VMEM((1, N_pad), jnp.float32),   # dist2 running min per target
            ]),
        compiler_params=pltpu.CompilerParams(
            dimension_semantics=("parallel", "arbitrary"),
            vmem_limit_bytes=32 * 1024 * 1024),
    )(o, t)
    return out[:, 0, 0].reshape(T_, B_)


@jax.jit
def _chamfer_core(rv, mask_logits, target):
    o_xyz, o_val, t_xyz, t_val = _prepare_clouds(rv, mask_logits, target)
    return _masked_chamfer_pallas(o_xyz, o_val, t_xyz, t_val)


def chamfer_distance_forward(output, target, n_samples=-1):
    """Forward pass of the `chamfer_distance` module."""
    if n_samples != -1:
        # TODO(synk): random.sample()-based downsampling of the variable-length point sets
        # (Python RNG + data-dependent sizes) has no clean JAX/Pallas equivalent.
        raise NotImplementedError("only n_samples == -1 (full point clouds) is supported")
    rv = output["rv"].astype(jnp.float32)
    mask_logits = output["mask_logits"].astype(jnp.float32)
    target = target.astype(jnp.float32)
    B, T, H, W = rv.shape

    cd_tensor = _chamfer_core(rv, mask_logits, target)           # (T, B)
    chamfer_distances = {s: jnp.mean(cd_tensor[s]) for s in range(T)}
    return chamfer_distances, cd_tensor


# ------------------------------------------------ range/mask loss kernel (from prev rev)
def _loss_kernel(rv_ref, lg_ref, tg_ref, l1_acc_ref, bce_acc_ref):
    """Fused masked-L1 + BCE-with-logits partial sums.

    Inputs: (TM, 1024) lane-dense tiles.  Outputs: resident (8, 1024) vreg-shaped
    accumulators (one per parallel half); final cross-lane sum happens in the wrapper.
    """
    @pl.when(pl.program_id(1) == 0)
    def _init():
        l1_acc_ref[...] = jnp.zeros_like(l1_acc_ref)
        bce_acc_ref[...] = jnp.zeros_like(bce_acc_ref)

    rv = rv_ref[...].astype(jnp.float32)
    x = lg_ref[...].astype(jnp.float32)
    t = tg_ref[...].astype(jnp.float32)

    masked_rv = jnp.where(t == -1.0, jnp.float32(-1.0), rv)
    l1 = jnp.abs(masked_rv - t)
    z = (t > 0.0).astype(jnp.float32)
    bce = jnp.maximum(x, 0.0) - x * z + jnp.log1p(jnp.exp(-jnp.abs(x)))

    tm, lane = l1.shape
    p_l1 = l1[0:8, :]
    p_bce = bce[0:8, :]
    for r in range(1, tm // 8):                 # fold row groups with pure VPU adds
        p_l1 = p_l1 + l1[r * 8:(r + 1) * 8, :]
        p_bce = p_bce + bce[r * 8:(r + 1) * 8, :]
    l1_acc_ref[...] += p_l1
    bce_acc_ref[...] += p_bce


@jax.jit
def fused_range_mask_loss(rv, mask_logits, target_range):
    """(mean masked L1, mean BCE-with-logits) over all pixels."""
    E = rv.size
    LANE = 1024
    P = 2                                        # leading parallel axis (v7x megacore)
    R = _cdiv(E, LANE)
    TM = min(512, _round_up(_cdiv(R, P), 8))     # <= 2 MiB per input per buffer
    R_pad = _round_up(R, P * TM)
    NK = R_pad // (P * TM)
    pad = R_pad * LANE - E

    # neutral padding: rv = t = -1 -> l1 contribution 0; logits = -1e4 -> BCE exactly 0.
    rv_f = jnp.pad(rv.reshape(-1), (0, pad), constant_values=-1.0).reshape(R_pad, LANE)
    tg_f = jnp.pad(target_range.reshape(-1), (0, pad), constant_values=-1.0).reshape(R_pad, LANE)
    lg_f = jnp.pad(mask_logits.reshape(-1), (0, pad), constant_values=-1e4).reshape(R_pad, LANE)

    in_spec = pl.BlockSpec((TM, LANE), lambda p, k: (p * NK + k, 0))
    out_spec = pl.BlockSpec((None, 8, LANE), lambda p, k: (p, 0, 0))

    l1_parts, bce_parts = pl.pallas_call(
        _loss_kernel,
        out_shape=(jax.ShapeDtypeStruct((P, 8, LANE), jnp.float32),
                   jax.ShapeDtypeStruct((P, 8, LANE), jnp.float32)),
        grid_spec=pltpu.PrefetchScalarGridSpec(
            num_scalar_prefetch=0,
            grid=(P, NK),
            in_specs=[in_spec, in_spec, in_spec],
            out_specs=[out_spec, out_spec]),
        compiler_params=pltpu.CompilerParams(
            dimension_semantics=("parallel", "arbitrary"),
            vmem_limit_bytes=32 * 1024 * 1024),
    )(rv_f, lg_f, tg_f)

    inv_n = jnp.float32(1.0 / float(E))
    return jnp.sum(l1_parts) * inv_n, jnp.sum(bce_parts) * inv_n


# ------------------------------------------------------------------------------- main
if __name__ == "__main__":
    key = jax.random.PRNGKey(0)
    B, C, T, H, W = 2, 4, 5, 16, 64

    k_rv, k_lg, k_rng, k_xyz, k_valid = jax.random.split(key, 5)
    rv = jax.random.uniform(k_rv, (B, T, H, W), jnp.float32, 1.0, 50.0)
    mask_logits = jax.random.normal(k_lg, (B, T, H, W), jnp.float32)
    rng = jax.random.uniform(k_rng, (B, T, H, W), jnp.float32, 1.0, 50.0)
    valid = jax.random.uniform(k_valid, (B, T, H, W)) > 0.3
    range_img = jnp.where(valid, rng, -1.0)
    xyz = jax.random.normal(k_xyz, (B, 3, T, H, W), jnp.float32)
    target = jnp.concatenate([range_img[:, None], xyz], axis=1)        # (B, 4, T, H, W)
    output = {"rv": rv, "mask_logits": mask_logits}

    # --- chamfer_distance.forward (n_samples == -1, i.e. full point clouds) ---
    chamfer_distances, cd_tensor = chamfer_distance_forward(output, target, n_samples=-1)
    jax.block_until_ready(cd_tensor)

    # reference: true variable-length extraction + exact squared chamfer, in numpy
    o_xyz, o_val, t_xyz, t_val = map(
        np.asarray, _prepare_clouds(rv, mask_logits, target.astype(jnp.float32)))
    cd_np = np.asarray(cd_tensor)
    ref = np.zeros((T, B), np.float64)
    for s in range(T):
        for b in range(B):
            op = o_xyz[s, b][o_val[s, b] > 0]
            tp = t_xyz[s, b][t_val[s, b] > 0]
            d = ((op[:, None, :] - tp[None, :, :]) ** 2).sum(-1)
            ref[s, b] = d.min(axis=1).mean() + d.min(axis=0).mean()
    assert np.allclose(cd_np, ref, rtol=1e-4, atol=1e-4), (cd_np, ref)
    for s in range(T):
        assert np.allclose(np.asarray(chamfer_distances[s]), ref[s].mean(),
                           rtol=1e-4, atol=1e-4)

    # --- auxiliary range/mask loss kernel (kept from the previous revision) ---
    loss_range, loss_mask = fused_range_mask_loss(rv, mask_logits, range_img)
    jax.block_until_ready(loss_mask)
    l1_ref = jnp.mean(jnp.abs(jnp.where(range_img == -1.0, -1.0, rv) - range_img))
    z = (range_img > 0.0).astype(jnp.float32)
    bce_ref = jnp.mean(jnp.maximum(mask_logits, 0.0) - mask_logits * z
                       + jnp.log1p(jnp.exp(-jnp.abs(mask_logits))))
    assert jnp.allclose(loss_range, l1_ref, rtol=1e-4, atol=1e-5)
    assert jnp.allclose(loss_mask, bce_ref, rtol=1e-4, atol=1e-5)

    print("KERNEL_OK")
</pallas_src>

<mosaic_0001>
module attributes {stable_mosaic.version = 11 : i64} {
  func.func @_chamfer_kernel(%arg0: i32, %arg1: i32, %arg2: memref<1x256x4xf32, #tpu.memory_space<vmem>>, %arg3: memref<1x4x1024xf32, #tpu.memory_space<vmem>>, %arg4: memref<1x1x128xf32, #tpu.memory_space<vmem>>, %arg5: memref<256x1xf32, #tpu.memory_space<vmem>>, %arg6: memref<256x1xf32, #tpu.memory_space<vmem>>, %arg7: memref<1x1024xf32, #tpu.memory_space<vmem>>) attributes {dimension_semantics = [#tpu.dimension_semantics<parallel>, #tpu.dimension_semantics<arbitrary>], iteration_bounds = array<i64: 10, 4>, scalar_prefetch = 0 : i64, scratch_operands = 3 : i64, tpu.core_type = #tpu.core_type<tc>, window_params = [{transform_indices = @transform_0, window_bounds = array<i64: 1, 256, 4>}, {transform_indices = @transform_1, window_bounds = array<i64: 1, 4, 1024>}, {transform_indices = @transform_2, window_bounds = array<i64: 1, 1, 128>}]} {
    %c0_i32 = arith.constant 0 : i32
    %0 = arith.cmpi eq, %arg1, %c0_i32 : i32
    %1 = arith.extui %0 : i1 to i32
    %c0_i32_0 = arith.constant 0 : i32
    %2 = arith.cmpi ne, %1, %c0_i32_0 : i32
    scf.if %2 {
      %cst_24 = arith.constant 0.000000e+00 : f32
      %58 = vector.broadcast %cst_24 : f32 to vector<256x1xf32>
      %c0_25 = arith.constant 0 : index
      %c0_26 = arith.constant 0 : index
      %59 = vector.load %arg5[%c0_25, %c0_26] : memref<256x1xf32, #tpu.memory_space<vmem>>, vector<256x1xf32>
      tpu.vector_store %arg5[%c0_25, %c0_26], %58 {strides = array<i32>} : memref<256x1xf32, #tpu.memory_space<vmem>>, vector<256x1xf32>,
      %cst_27 = arith.constant 0.000000e+00 : f32
      %60 = vector.broadcast %cst_27 : f32 to vector<256x1xf32>
      %c0_28 = arith.constant 0 : index
      %c0_29 = arith.constant 0 : index
      %61 = vector.load %arg6[%c0_28, %c0_29] : memref<256x1xf32, #tpu.memory_space<vmem>>, vector<256x1xf32>
      tpu.vector_store %arg6[%c0_28, %c0_29], %60 {strides = array<i32>} : memref<256x1xf32, #tpu.memory_space<vmem>>, vector<256x1xf32>,
      %cst_30 = arith.constant 1.000000e+30 : f32
      %62 = vector.broadcast %cst_30 : f32 to vector<1x1024xf32>
      %c0_31 = arith.constant 0 : index
      %c0_32 = arith.constant 0 : index
      %63 = vector.load %arg7[%c0_31, %c0_32] : memref<1x1024xf32, #tpu.memory_space<vmem>>, vector<1x1024xf32>
      tpu.vector_store %arg7[%c0_31, %c0_32], %62 {strides = array<i32>} : memref<1x1024xf32, #tpu.memory_space<vmem>>, vector<1x1024xf32>,
    } else {
    }
    %c0 = arith.constant 0 : index
    %c0_1 = arith.constant 0 : index
    %c0_2 = arith.constant 0 : index
    %3 = vector.load %arg2[%c0, %c0_1, %c0_2] : memref<1x256x4xf32, #tpu.memory_space<vmem>>, vector<1x256x4xf32>
    %4 = vector.shape_cast %3 : vector<1x256x4xf32> to vector<256x4xf32>
    %c0_3 = arith.constant 0 : index
    %c0_4 = arith.constant 0 : index
    %c0_5 = arith.constant 0 : index
    %5 = vector.load %arg3[%c0_3, %c0_4, %c0_5] : memref<1x4x1024xf32, #tpu.memory_space<vmem>>, vector<1x4x1024xf32>
    %6 = vector.shape_cast %5 : vector<1x4x1024xf32> to vector<4x1024xf32>
    %7 = vector.extract_strided_slice %4 {offsets = [0, 0], sizes = [256, 1], strides = [1, 1]} : vector<256x4xf32> to vector<256x1xf32>
    %8 = vector.extract_strided_slice %4 {offsets = [0, 1], sizes = [256, 1], strides = [1, 1]} : vector<256x4xf32> to vector<256x1xf32>
    %9 = vector.extract_strided_slice %4 {offsets = [0, 2], sizes = [256, 1], strides = [1, 1]} : vector<256x4xf32> to vector<256x1xf32>
    %10 = vector.extract_strided_slice %4 {offsets = [0, 3], sizes = [256, 1], strides = [1, 1]} : vector<256x4xf32> to vector<256x1xf32>
    %11 = vector.extract_strided_slice %6 {offsets = [0, 0], sizes = [1, 1024], strides = [1, 1]} : vector<4x1024xf32> to vector<1x1024xf32>
    %12 = vector.extract_strided_slice %6 {offsets = [1, 0], sizes = [1, 1024], strides = [1, 1]} : vector<4x1024xf32> to vector<1x1024xf32>
    %13 = vector.extract_strided_slice %6 {offsets = [2, 0], sizes = [1, 1024], strides = [1, 1]} : vector<4x1024xf32> to vector<1x1024xf32>
    %14 = vector.extract_strided_slice %6 {offsets = [3, 0], sizes = [1, 1024], strides = [1, 1]} : vector<4x1024xf32> to vector<1x1024xf32>
    %15 = vector.broadcast %7 : vector<256x1xf32> to vector<256x1024xf32>
    %16 = vector.broadcast %11 : vector<1x1024xf32> to vector<256x1024xf32>
    %17 = arith.subf %15, %16 : vector<256x1024xf32>
    %18 = vector.broadcast %8 : vector<256x1xf32> to vector<256x1024xf32>
    %19 = vector.broadcast %12 : vector<1x1024xf32> to vector<256x1024xf32>
    %20 = arith.subf %18, %19 : vector<256x1024xf32>
    %21 = vector.broadcast %9 : vector<256x1xf32> to vector<256x1024xf32>
    %22 = vector.broadcast %13 : vector<1x1024xf32> to vector<256x1024xf32>
    %23 = arith.subf %21, %22 : vector<256x1024xf32>
    %24 = arith.mulf %17, %17 : vector<256x1024xf32>
    %25 = arith.mulf %20, %20 : vector<256x1024xf32>
    %26 = arith.addf %24, %25 : vector<256x1024xf32>
    %27 = arith.mulf %23, %23 : vector<256x1024xf32>
    %28 = arith.addf %26, %27 : vector<256x1024xf32>
    %cst = arith.constant 1.000000e+00 : f32
    %29 = vector.broadcast %cst : f32 to vector<1x1024xf32>
    %30 = arith.subf %29, %14 : vector<1x1024xf32>
    %cst_6 = arith.constant 1.000000e+30 : f32
    %31 = vector.broadcast %cst_6 : f32 to vector<1x1024xf32>
    %32 = arith.mulf %30, %31 : vector<1x1024xf32>
    %33 = vector.broadcast %32 : vector<1x1024xf32> to vector<256x1024xf32>
    %34 = arith.addf %28, %33 : vector<256x1024xf32>
    %cst_7 = arith.constant dense<0x7F800000> : vector<256xf32>
    %35 = vector.multi_reduction <minimumf>, %34, %cst_7 [1] : vector<256x1024xf32> to vector<256xf32>
    %36 = vector.shape_cast %35 : vector<256xf32> to vector<256x1xf32>
    %c0_8 = arith.constant 0 : index
    %c0_9 = arith.constant 0 : index
    %37 = vector.load %arg5[%c0_8, %c0_9] : memref<256x1xf32, #tpu.memory_space<vmem>>, vector<256x1xf32>
    %38 = arith.mulf %36, %10 : vector<256x1xf32>
    %39 = arith.addf %37, %38 : vector<256x1xf32>
    %c0_10 = arith.constant 0 : index
    %c0_11 = arith.constant 0 : index
    %40 = vector.load %arg5[%c0_10, %c0_11] : memref<256x1xf32, #tpu.memory_space<vmem>>, vector<256x1xf32>
    tpu.vector_store %arg5[%c0_10, %c0_11], %39 {strides = array<i32>} : memref<256x1xf32, #tpu.memory_space<vmem>>, vector<256x1xf32>,
    %c0_12 = arith.constant 0 : index
    %c0_13 = arith.constant 0 : index
    %41 = vector.load %arg6[%c0_12, %c0_13] : memref<256x1xf32, #tpu.memory_space<vmem>>, vector<256x1xf32>
    %42 = arith.addf %41, %10 : vector<256x1xf32>
    %c0_14 = arith.constant 0 : index
    %c0_15 = arith.constant 0 : index
    %43 = vector.load %arg6[%c0_14, %c0_15] : memref<256x1xf32, #tpu.memory_space<vmem>>, vector<256x1xf32>
    tpu.vector_store %arg6[%c0_14, %c0_15], %42 {strides = array<i32>} : memref<256x1xf32, #tpu.memory_space<vmem>>, vector<256x1xf32>,
    %cst_16 = arith.constant 1.000000e+00 : f32
    %44 = vector.broadcast %cst_16 : f32 to vector<256x1xf32>
    %45 = arith.subf %44, %10 : vector<256x1xf32>
    %cst_17 = arith.constant 1.000000e+30 : f32
    %46 = vector.broadcast %cst_17 : f32 to vector<256x1xf32>
    %47 = arith.mulf %45, %46 : vector<256x1xf32>
    %48 = vector.broadcast %47 : vector<256x1xf32> to vector<256x1024xf32>
    %49 = arith.addf %28, %48 : vector<256x1024xf32>
    %c0_18 = arith.constant 0 : index
    %c0_19 = arith.constant 0 : index
    %50 = vector.load %arg7[%c0_18, %c0_19] : memref<1x1024xf32, #tpu.memory_space<vmem>>, vector<1x1024xf32>
    %cst_20 = arith.constant dense<0x7F800000> : vector<1024xf32>
    %51 = vector.multi_reduction <minimumf>, %49, %cst_20 [0] : vector<256x1024xf32> to vector<1024xf32>
    %52 = vector.shape_cast %51 : vector<1024xf32> to vector<1x1024xf32>
    %53 = arith.minimumf %50, %52 : vector<1x1024xf32>
    %c0_21 = arith.constant 0 : index
    %c0_22 = arith.constant 0 : index
    %54 = vector.load %arg7[%c0_21, %c0_22] : memref<1x1024xf32, #tpu.memory_space<vmem>>, vector<1x1024xf32>
    tpu.vector_store %arg7[%c0_21, %c0_22], %53 {strides = array<i32>} : memref<1x1024xf32, #tpu.memory_space<vmem>>, vector<1x1024xf32>,
    %c3_i32 = arith.constant 3 : i32
    %55 = arith.cmpi eq, %arg1, %c3_i32 : i32
    %56 = arith.extui %55 : i1 to i32
    %c0_i32_23 = arith.constant 0 : i32
    %57 = arith.cmpi ne, %56, %c0_i32_23 : i32
    scf.if %57 {
      %c0_24 = arith.constant 0 : index
      %c0_25 = arith.constant 0 : index
      %58 = vector.load %arg5[%c0_24, %c0_25] : memref<256x1xf32, #tpu.memory_space<vmem>>, vector<256x1xf32>
      %59 = vector.shape_cast %58 : vector<256x1xf32> to vector<1x256x1xf32>
      %cst_26 = arith.constant dense<0.000000e+00> : vector<1xf32>
      %60 = vector.multi_reduction <add>, %59, %cst_26 [1, 2] : vector<1x256x1xf32> to vector<1xf32>
      %61 = vector.shape_cast %60 : vector<1xf32> to vector<1x1x1xf32>
      %62 = vector.extract %61[0, 0, 0] : f32 from vector<1x1x1xf32>
      %c0_27 = arith.constant 0 : index
      %c0_28 = arith.constant 0 : index
      %63 = vector.load %arg6[%c0_27, %c0_28] : memref<256x1xf32, #tpu.memory_space<vmem>>, vector<256x1xf32>
      %64 = vector.shape_cast %63 : vector<256x1xf32> to vector<1x256x1xf32>
      %cst_29 = arith.constant dense<0.000000e+00> : vector<1xf32>
      %65 = vector.multi_reduction <add>, %64, %cst_29 [1, 2] : vector<1x256x1xf32> to vector<1xf32>
      %66 = vector.shape_cast %65 : vector<1xf32> to vector<1x1x1xf32>
      %67 = vector.extract %66[0, 0, 0] : f32 from vector<1x1x1xf32>
      %c0_30 = arith.constant 0 : index
      %c0_31 = arith.constant 0 : index
      %68 = vector.load %arg7[%c0_30, %c0_31] : memref<1x1024xf32, #tpu.memory_space<vmem>>, vector<1x1024xf32>
      %69 = arith.mulf %68, %14 : vector<1x1024xf32>
      %70 = vector.shape_cast %69 : vector<1x1024xf32> to vector<1x1x1024xf32>
      %cst_32 = arith.constant dense<0.000000e+00> : vector<1xf32>
      %71 = vector.multi_reduction <add>, %70, %cst_32 [1, 2] : vector<1x1x1024xf32> to vector<1xf32>
      %72 = vector.shape_cast %71 : vector<1xf32> to vector<1x1x1xf32>
      %73 = vector.extract %72[0, 0, 0] : f32 from vector<1x1x1xf32>
      %74 = vector.shape_cast %14 : vector<1x1024xf32> to vector<1x1x1024xf32>
      %cst_33 = arith.constant dense<0.000000e+00> : vector<1xf32>
      %75 = vector.multi_reduction <add>, %74, %cst_33 [1, 2] : vector<1x1x1024xf32> to vector<1xf32>
      %76 = vector.shape_cast %75 : vector<1xf32> to vector<1x1x1xf32>
      %77 = vector.extract %76[0, 0, 0] : f32 from vector<1x1x1xf32>
      %78 = arith.divf %62, %67 : f32
      %79 = arith.divf %73, %77 : f32
      %80 = arith.addf %78, %79 : f32
      %81 = vector.broadcast %80 : f32 to vector<1x128xf32>
      %c0_34 = arith.constant 0 : index
      %c0_35 = arith.constant 0 : index
      %c0_36 = arith.constant 0 : index
      %82 = vector.load %arg4[%c0_34, %c0_35, %c0_36] : memref<1x1x128xf32, #tpu.memory_space<vmem>>, vector<1x1x128xf32>
      %83 = vector.shape_cast %82 : vector<1x1x128xf32> to vector<1x128xf32>
      %84 = vector.shape_cast %81 : vector<1x128xf32> to vector<1x1x128xf32>
      tpu.vector_store %arg4[%c0_34, %c0_35, %c0_36], %84 {strides = array<i32>} : memref<1x1x128xf32, #tpu.memory_space<vmem>>, vector<1x1x128xf32>,
    } else {
    }
    return
  }
  func.func @transform_0(%arg0: i32, %arg1: i32) -> (i32, i32, i32) {
    %c0_i32 = arith.constant 0 : i32
    %c0_i32_0 = arith.constant 0 : i32
    return %arg0, %arg1, %c0_i32 : i32, i32, i32
  }
  func.func @transform_1(%arg0: i32, %arg1: i32) -> (i32, i32, i32) {
    %c0_i32 = arith.constant 0 : i32
    %c0_i32_0 = arith.constant 0 : i32
    %c0_i32_1 = arith.constant 0 : i32
    return %arg0, %c0_i32, %c0_i32_0 : i32, i32, i32
  }
  func.func @transform_2(%arg0: i32, %arg1: i32) -> (i32, i32, i32) {
    %c0_i32 = arith.constant 0 : i32
    %c0_i32_0 = arith.constant 0 : i32
    %c0_i32_1 = arith.constant 0 : i32
    return %arg0, %c0_i32, %c0_i32_0 : i32, i32, i32
  }
}

</mosaic_0001>

<llo_original>
// kernel: squeeze.3
$region0: #{squeeze.3}
  %s0 = inlined_call_operand.vmem [shape: f32[10], index: 0, kind: input, shape index: {}]
  %s1 = inlined_call_operand.vmem [shape: f32[5,2], index: 1, kind: output, shape index: {}]
  $region1: #{squeeze.3} parent=0
    #allocation0 [shape = 'u8[4096]{0}', space=vmem, size = 0x1000, scoped, tag = 'scoped mem for input reshape']
    %s3 = sshll.u32 1, 1
    %s4 = ssub.s32 %s3, 1
    %v5 = vld [vmem:[%s0] sm:%s4]
    %6 = vst [vmem:[#allocation0] sm:%s4] %v5
    %v7 = vld [vmem:[#allocation0] sm:$0x1]
    %vm8 = vcmask 15360
    %9 = vst.msk [vmem:[%s1] sm:$0x1] %vm8, %v7
    %v10 = vld [vmem:[#allocation0] sm:$0x1]
    %11 = vrot.lane.b32.xlu0 %v10, 126
    %v12 = vpop.permute.xlu0 %11
    %vm13 = vcmask 15360
    %s14 = scalar_lea.vmem %s1, 1
    %15 = vst.msk [vmem:[%s14] sm:$0x1] %vm13, %v12
    %v16 = vld [vmem:[#allocation0] sm:$0x1]
    %17 = vrot.lane.b32.xlu0 %v16, 124
    %v18 = vpop.permute.xlu0 %17
    %vm19 = vcmask 15360
    %s20 = scalar_lea.vmem %s1, 2
    %21 = vst.msk [vmem:[%s20] sm:$0x1] %vm19, %v18
    %v22 = vld [vmem:[#allocation0] sm:$0x1]
    %23 = vrot.lane.b32.xlu0 %v22, 122
    %v24 = vpop.permute.xlu0 %23
    %vm25 = vcmask 15360
    %s26 = scalar_lea.vmem %s1, 3
    %27 = vst.msk [vmem:[%s26] sm:$0x1] %vm25, %v24
    %v28 = vld [vmem:[#allocation0] sm:$0x1]
    %29 = vrot.lane.b32.xlu0 %v28, 120
    %v30 = vpop.permute.xlu0 %29
    %vm31 = vcmask 15360
    %s32 = scalar_lea.vmem %s1, 4
    %33 = vst.msk [vmem:[%s32] sm:$0x1] %vm31, %v30

// kernel: _chamfer_core.1
$region0: #{_chamfer_core.1}
  #allocation0 [shape = 'u32[]', space=smem, size = 0x4, offset = 0x4, fixed_abs, tag = 'smem constant byte address 0x4 - core index']
  #allocation1 [shape = 'u32[144,128]{1,0:T(1,128)}', space=vmem, size = 0x12000, scoped, tag = 'internal scratch']
  #allocation2 [shape = 'f32[256,1]{1,0:T(8,128)}', space=vmem, size = 0x20000, scoped, tag = 'scratch operand']
  #allocation3 [shape = 'f32[256,1]{1,0:T(8,128)}', space=vmem, size = 0x20000, scoped, tag = 'scratch operand']
  #allocation4 [shape = 'f32[1,1024]{1,0:T(1,128)}', space=vmem, size = 0x1000, scoped, tag = 'scratch operand']
  %s0 = inlined_call_operand.vmem [shape: f32[10,1024,4], index: 0, kind: input, shape index: {}]
  %s1 = inlined_call_operand.vmem [shape: f32[10,4,1024], index: 1, kind: input, shape index: {}]
  %s2 = inlined_call_operand.vmem [shape: f32[10,1,128], index: 2, kind: output, shape index: {}]
  %s3 = sld [smem:[#allocation0]]
  $region49: #{_chamfer_core.1} parent=0
    _
  %s5 = ssub.s32 1, %s3
  %s6 = scalar_select 0, %s5, %s3
  loop: start=0, step=1, limit=42
  $region2: #{_chamfer_core.1} parent=0 // loop_pre_header
    _
  $region3: #{_chamfer_core.1} parent=0 // loop_header
    %s8 = sphi 0, %s12
    %p9 = scmp.ge.s32.totalorder %s8, 42
    %s15 = sphi 0, %s27
    %s16 = sphi 0, %s23
    %s17 = sphi 0, %s15
    %s18 = sphi 0, %s16
    %s19 = sphi 0, %s17
    %s20 = sphi 0, %s18
    %s32 = sphi 0, %s34
    %s35 = sphi 0, %s32
    %s36 = sphi 0, %s35
    %s52 = sphi 0, %s36
    %s58 = sphi 0, %s60
    %s61 = sphi 0, %s58
    %s62 = sphi 0, %s61
    %s78 = sphi 0, %s62
    %s84 = sphi 0, %s86
    %s87 = sphi 0, %s84
    %s88 = sphi 0, %s87
    %s104 = sphi 0, %s88
  $region4: #{_chamfer_core.1} parent=0 // loop_header_branch
    %11 = sbr.rel (%p9) target = $region8
  $region5: #{_chamfer_core.1} parent=0 // loop_body
    %s13 = ssub.s32 %s8, 1
    %s14 = ssub.s32 %s8, 2
    %s21 = sadd.s32 1, %s16
    %p22 = scmp.ge.s32.totalorder %s21, 4
    %s23 = scalar_select %p22, 0, %s21
    %s24 = sadd.s32 1, %s15
    %s25 = scalar_select %p22, %s24, %s15
    %p26 = scmp.ge.s32.totalorder %s25, 10
    %s27 = scalar_select %p26, 0, %s25
    %s28 = ssub.s32 %s15, %s27
    %s29 = ssub.s32 %s16, %s23
    %s30 = sor.u32 %s28, %s29
    %p31 = scmp.eq.s32.totalorder %s30, 0
    %s33 = sadd.s32 %s32, 1
    %s34 = scalar_select %p31, %s32, %s33
    %p37 = pneg %p31
    %p38 = scmp.eq.s32.totalorder %s8, 39
    %p39 = por %p37, %p38
    %p40 = scmp.ne.s32.totalorder %s32, %s35
    %p41 = scmp.eq.s32.totalorder %s8, 0
    %p42 = por %p40, %p41
    %p43 = scmp.ne.s32.totalorder %s32, %s35
    %p44 = scmp.eq.s32.totalorder %s13, 39
    %p45 = por %p43, %p44
    %p46 = scmp.ne.s32.totalorder %s35, %s36
    %p47 = scmp.eq.s32.totalorder %s13, 0
    %p48 = por %p46, %p47
    %p49 = scmp.ne.s32.totalorder %s35, %s36
    %p50 = scmp.eq.s32.totalorder %s14, 39
    %p51 = por %p49, %p50
    %p53 = scmp.ne.s32.totalorder %s36, %s52
    %p54 = scmp.eq.s32.totalorder %s14, 0
    %p55 = por %p53, %p54
    %s56 = ssub.s32 %s15, %s27
    %p57 = scmp.eq.s32.totalorder %s56, 0
    %s59 = sadd.s32 %s58, 1
    %s60 = scalar_select %p57, %s58, %s59
    %p63 = pneg %p57
    %p64 = scmp.eq.s32.totalorder %s8, 39
    %p65 = por %p63, %p64
    %p66 = scmp.ne.s32.totalorder %s58, %s61
    %p67 = scmp.eq.s32.totalorder %s8, 0
    %p68 = por %p66, %p67
    %p69 = scmp.ne.s32.totalorder %s58, %s61
    %p70 = scmp.eq.s32.totalorder %s13, 39
    %p71 = por %p69, %p70
    %p72 = scmp.ne.s32.totalorder %s61, %s62
    %p73 = scmp.eq.s32.totalorder %s13, 0
    %p74 = por %p72, %p73
    %p75 = scmp.ne.s32.totalorder %s61, %s62
    %p76 = scmp.eq.s32.totalorder %s14, 39
    %p77 = por %p75, %p76
    %p79 = scmp.ne.s32.totalorder %s62, %s78
    %p80 = scmp.eq.s32.totalorder %s14, 0
    %p81 = por %p79, %p80
    %s82 = ssub.s32 %s15, %s27
    %p83 = scmp.eq.s32.totalorder %s82, 0
    %s85 = sadd.s32 %s84, 1
    %s86 = scalar_select %p83, %s84, %s85
    %p89 = pneg %p83
    %p90 = scmp.eq.s32.totalorder %s8, 39
    %p91 = por %p89, %p90
    %p92 = scmp.ne.s32.totalorder %s84, %s87
    %p93 = scmp.eq.s32.totalorder %s8, 0
    %p94 = por %p92, %p93
    %p95 = scmp.ne.s32.totalorder %s84, %s87
    %p96 = scmp.eq.s32.totalorder %s13, 39
    %p97 = por %p95, %p96
    %p98 = scmp.ne.s32.totalorder %s87, %s88
    %p99 = scmp.eq.s32.totalorder %s13, 0
    %p100 = por %p98, %p99
    %p101 = scmp.ne.s32.totalorder %s87, %s88
    %p102 = scmp.eq.s32.totalorder %s14, 39
    %p103 = por %p101, %p102
    %p105 = scmp.ne.s32.totalorder %s88, %s104
    %p106 = scmp.eq.s32.totalorder %s14, 0
    %p107 = por %p105, %p106
    %p108 = scmp.le.s32.totalorder 1, %s8
    %p109 = scmp.lt.s32.totalorder %s8, 41
    %p110 = pnand %p108, %p109
    %p111 = pneg %p110
    // Predicated region
    $region9: #{_chamfer_core.1} parent=5 // pred_check
      _
    $region10: #{_chamfer_core.1} parent=5 // pred_check_branch
      %113 = sbr.rel (%p110) target = $region12
    $region11: #{_chamfer_core.1} parent=5 // pred_region
      %s114 = ssub.s32 %s8, 1
    $region12: #{_chamfer_core.1} parent=5 // pred_fallthru
      _
    %p115 = scmp.lt.s32.totalorder %s8, 40
    // Predicated region
    $region13: #{_chamfer_core.1} parent=5 // pred_check
      %p116 = pneg %p115
    $region14: #{_chamfer_core.1} parent=5 // pred_check_branch
      %118 = sbr.rel (%p116) target = $region16
    $region15: #{_chamfer_core.1} parent=5 // pred_region
      // Predicated region
      $region17: #{_chamfer_core.1} parent=15 // pred_check
        %p119 = pneg %p42
      $region18: #{_chamfer_core.1} parent=15 // pred_check_branch
        %121 = sbr.rel (%p119) target = $region20
      $region19: #{_chamfer_core.1} parent=15 // pred_region
        %s122 = smul.u32 32, %s16
        %p123 = scmp.lt.s32.totalorder %s15, 9
        %s124 = scalar_select %p123, %s15, 9
        %p125 = scmp.lt.s32.totalorder %s122, 127
        %s126 = scalar_select %p125, %s122, 127
        %s127 = smul.addr %s124, 128
        %s128 = sadd.s32 %s126, %s127
        %s129 = smul.addr %s128, 8
        %s130 = scalar_lea.vmem %s0, %s129
        %s131 = smul.u32 32, %s16
      $region20: #{_chamfer_core.1} parent=15 // pred_fallthru
        _
      // Predicated region
      $region21: #{_chamfer_core.1} parent=15 // pred_check
        %p132 = pneg %p68
      $region22: #{_chamfer_core.1} parent=15 // pred_check_branch
        %134 = sbr.rel (%p132) target = $region24
      $region23: #{_chamfer_core.1} parent=15 // pred_region
        %p135 = scmp.lt.s32.totalorder %s15, 9
        %s136 = scalar_select %p135, %s15, 9
        %s137 = smul.addr %s136, 8
        %s138 = smul.addr %s137, 4
        %s139 = scalar_lea.vmem %s1, %s138
      $region24: #{_chamfer_core.1} parent=15 // pred_fallthru
        _
    $region16: #{_chamfer_core.1} parent=5 // pred_fallthru
      _
    %p140 = scmp.le.s32.totalorder 1, %s8
    %p141 = scmp.lt.s32.totalorder %s8, 41
    %p142 = pnand %p140, %p141
    %p143 = pneg %p142
    // Predicated region
    $region25: #{_chamfer_core.1} parent=5 // pred_check
      _
    $region26: #{_chamfer_core.1} parent=5 // pred_check_branch
      %145 = sbr.rel (%p142) target = $region28
    $region27: #{_chamfer_core.1} parent=5 // pred_region
      %s146 = ssub.s32 %s8, 1
      %s147 = smul.u32 32, %s18
      %p148 = scmp.lt.s32.totalorder %s17, 9
      %s149 = scalar_select %p148, %s17, 9
      %p150 = scmp.lt.s32.totalorder %s147, 127
      %s151 = scalar_select %p150, %s147, 127
      %s152 = smul.addr %s149, 128
      %s153 = sadd.s32 %s151, %s152
      %s154 = smul.addr %s153, 8
      %s155 = scalar_lea.vmem %s0, %s154
      %p156 = pneg %p48
      %p157 = pneg %p45
      %p158 = scmp.lt.s32.totalorder %s17, 9
      %s159 = scalar_select %p158, %s17, 9
      %s160 = smul.addr %s159, 8
      %s161 = smul.addr %s160, 4
      %s162 = scalar_lea.vmem %s1, %s161
      %p163 = pneg %p74
      %p164 = pneg %p71
      %p165 = pneg %p100
      %p166 = pneg %p97
      %p167 = scmp.lt.s32.totalorder %s17, 9
      %s168 = scalar_select %p167, %s17, 9
      %s169 = scalar_lea.vmem %s2, %s168
      %s170 = smul.u32 32, %s18
      %p171 = scmp.lt.s32.totalorder %s17, 9
      %s172 = scalar_select %p171, %s17, 9
      %p173 = scmp.lt.s32.totalorder %s170, 127
      %s174 = scalar_select %p173, %s170, 127
      %s175 = smul.addr %s172, 128
      %s176 = sadd.s32 %s174, %s175
      %s177 = smul.addr %s176, 8
      %s178 = scalar_lea.vmem %s0, %s177
      %s179 = smul.u32 32, %s18
      %p180 = scmp.lt.s32.totalorder %s17, 9
      %s181 = scalar_select %p180, %s17, 9
      %s182 = smul.addr %s181, 8
      %s183 = smul.addr %s182, 4
      %s184 = scalar_lea.vmem %s1, %s183
      %p185 = scmp.lt.s32.totalorder %s17, 9
      %s186 = scalar_select %p185, %s17, 9
      %s187 = scalar_lea.vmem %s2, %s186
      %p188 = scmp.eq.s32.totalorder %s18, 0
      // Predicated region
      $region29: #{_chamfer_core.1} parent=27 // pred_check
        %p189 = pneg %p188
      $region30: #{_chamfer_core.1} parent=27 // pred_check_branch
        %191 = sbr.rel (%p189) target = $region32
      $region31: #{_chamfer_core.1} parent=27 // pred_region
        %vm192 = vcmask 7168
        %193 = vst.msk [vmem:[#allocation2] sm:$0xff] %vm192, 0.0
        %194 = vst.msk [vmem:[#allocation2 + $0x8] sm:$0xff] %vm192, 0.0
        %195 = vst.msk [vmem:[#allocation2 + $0x10] sm:$0xff] %vm192, 0.0
        %196 = vst.msk [vmem:[#allocation2 + $0x18] sm:$0xff] %vm192, 0.0
        %197 = vst.msk [vmem:[#allocation2 + $0x20] sm:$0xff] %vm192, 0.0
        %198 = vst.msk [vmem:[#allocation2 + $0x28] sm:$0xff] %vm192, 0.0
        %199 = vst.msk [vmem:[#allocation2 + $0x30] sm:$0xff] %vm192, 0.0
        %200 = vst.msk [vmem:[#allocation2 + $0x38] sm:$0xff] %vm192, 0.0
        %201 = vst.msk [vmem:[#allocation2 + $0x40] sm:$0xff] %vm192, 0.0
        %202 = vst.msk [vmem:[#allocation2 + $0x48] sm:$0xff] %vm192, 0.0
        %203 = vst.msk [vmem:[#allocation2 + $0x50] sm:$0xff] %vm192, 0.0
        %204 = vst.msk [vmem:[#allocation2 + $0x58] sm:$0xff] %vm192, 0.0
        %205 = vst.msk [vmem:[#allocation2 + $0x60] sm:$0xff] %vm192, 0.0
        %206 = vst.msk [vmem:[#allocation2 + $0x68] sm:$0xff] %vm192, 0.0
        %207 = vst.msk [vmem:[#allocation2 + $0x70] sm:$0xff] %vm192, 0.0
        %208 = vst.msk [vmem:[#allocation2 + $0x78] sm:$0xff] %vm192, 0.0
        %209 = vst.msk [vmem:[#allocation2 + $0x80] sm:$0xff] %vm192, 0.0
        %210 = vst.msk [vmem:[#allocation2 + $0x88] sm:$0xff] %vm192, 0.0
        %211 = vst.msk [vmem:[#allocation2 + $0x90] sm:$0xff] %vm192, 0.0
        %212 = vst.msk [vmem:[#allocation2 + $0x98] sm:$0xff] %vm192, 0.0
        %213 = vst.msk [vmem:[#allocation2 + $0xa0] sm:$0xff] %vm192, 0.0
        %214 = vst.msk [vmem:[#allocation2 + $0xa8] sm:$0xff] %vm192, 0.0
        %215 = vst.msk [vmem:[#allocation2 + $0xb0] sm:$0xff] %vm192, 0.0
        %216 = vst.msk [vmem:[#allocation2 + $0xb8] sm:$0xff] %vm192, 0.0
        %217 = vst.msk [vmem:[#allocation2 + $0xc0] sm:$0xff] %vm192, 0.0
        %218 = vst.msk [vmem:[#allocation2 + $0xc8] sm:$0xff] %vm192, 0.0
        %219 = vst.msk [vmem:[#allocation2 + $0xd0] sm:$0xff] %vm192, 0.0
        %220 = vst.msk [vmem:[#allocation2 + $0xd8] sm:$0xff] %vm192, 0.0
        %221 = vst.msk [vmem:[#allocation2 + $0xe0] sm:$0xff] %vm192, 0.0
        %222 = vst.msk [vmem:[#allocation2 + $0xe8] sm:$0xff] %vm192, 0.0
        %223 = vst.msk [vmem:[#allocation2 + $0xf0] sm:$0xff] %vm192, 0.0
        %224 = vst.msk [vmem:[#allocation2 + $0xf8] sm:$0xff] %vm192, 0.0
        %225 = vst.msk [vmem:[#allocation3] sm:$0xff] %vm192, 0.0
        %226 = vst.msk [vmem:[#allocation3 + $0x8] sm:$0xff] %vm192, 0.0
        %227 = vst.msk [vmem:[#allocation3 + $0x10] sm:$0xff] %vm192, 0.0
        %228 = vst.msk [vmem:[#allocation3 + $0x18] sm:$0xff] %vm192, 0.0
        %229 = vst.msk [vmem:[#allocation3 + $0x20] sm:$0xff] %vm192, 0.0
        %230 = vst.msk [vmem:[#allocation3 + $0x28] sm:$0xff] %vm192, 0.0
        %231 = vst.msk [vmem:[#allocation3 + $0x30] sm:$0xff] %vm192, 0.0
        %232 = vst.msk [vmem:[#allocation3 + $0x38] sm:$0xff] %vm192, 0.0
        %233 = vst.msk [vmem:[#allocation3 + $0x40] sm:$0xff] %vm192, 0.0
        %234 = vst.msk [vmem:[#allocation3 + $0x48] sm:$0xff] %vm192, 0.0
        %235 = vst.msk [vmem:[#allocation3 + $0x50] sm:$0xff] %vm192, 0.0
        %236 = vst.msk [vmem:[#allocation3 + $0x58] sm:$0xff] %vm192, 0.0
        %237 = vst.msk [vmem:[#allocation3 + $0x60] sm:$0xff] %vm192, 0.0
        %238 = vst.msk [vmem:[#allocation3 + $0x68] sm:$0xff] %vm192, 0.0
        %239 = vst.msk [vmem:[#allocation3 + $0x70] sm:$0xff] %vm192, 0.0
        %240 = vst.msk [vmem:[#allocation3 + $0x78] sm:$0xff] %vm192, 0.0
        %241 = vst.msk [vmem:[#allocation3 + $0x80] sm:$0xff] %vm192, 0.0
        %242 = vst.msk [vmem:[#allocation3 + $0x88] sm:$0xff] %vm192, 0.0
        %243 = vst.msk [vmem:[#allocation3 + $0x90] sm:$0xff] %vm192, 0.0
        %244 = vst.msk [vmem:[#allocation3 + $0x98] sm:$0xff] %vm192, 0.0
        %245 = vst.msk [vmem:[#allocation3 + $0xa0] sm:$0xff] %vm192, 0.0
        %246 = vst.msk [vmem:[#allocation3 + $0xa8] sm:$0xff] %vm192, 0.0
        %247 = vst.msk [vmem:[#allocation3 + $0xb0] sm:$0xff] %vm192, 0.0
        %248 = vst.msk [vmem:[#allocation3 + $0xb8] sm:$0xff] %vm192, 0.0
        %249 = vst.msk [vmem:[#allocation3 + $0xc0] sm:$0xff] %vm192, 0.0
        %250 = vst.msk [vmem:[#allocation3 + $0xc8] sm:$0xff] %vm192, 0.0
        %251 = vst.msk [vmem:[#allocation3 + $0xd0] sm:$0xff] %vm192, 0.0
        %252 = vst.msk [vmem:[#allocation3 + $0xd8] sm:$0xff] %vm192, 0.0
        %253 = vst.msk [vmem:[#allocation3 + $0xe0] sm:$0xff] %vm192, 0.0
        %254 = vst.msk [vmem:[#allocation3 + $0xe8] sm:$0xff] %vm192, 0.0
        %255 = vst.msk [vmem:[#allocation3 + $0xf0] sm:$0xff] %vm192, 0.0
        %256 = vst.msk [vmem:[#allocation3 + $0xf8] sm:$0xff] %vm192, 0.0
        %257 = vst [vmem:[#allocation4] sm:$0xff] 1e+30
      $region32: #{_chamfer_core.1} parent=27 // pred_fallthru
        _
      %v258 = vld [vmem:[%s178] sm:$0xff]
      %v259 = vld [vmem:[%s178 + $0x8] sm:$0xff]
      %v260 = vld [vmem:[%s178 + $0x10] sm:$0xff]
      %v261 = vld [vmem:[%s178 + $0x18] sm:$0xff]
      %v262 = vld [vmem:[%s178 + $0x20] sm:$0xff]
      %v263 = vld [vmem:[%s178 + $0x28] sm:$0xff]
      %v264 = vld [vmem:[%s178 + $0x30] sm:$0xff]
      %v265 = vld [vmem:[%s178 + $0x38] sm:$0xff]
      %v266 = vld [vmem:[%s178 + $0x40] sm:$0xff]
      %v267 = vld [vmem:[%s178 + $0x48] sm:$0xff]
      %v268 = vld [vmem:[%s178 + $0x50] sm:$0xff]
      %v269 = vld [vmem:[%s178 + $0x58] sm:$0xff]
      %v270 = vld [vmem:[%s178 + $0x60] sm:$0xff]
      %v271 = vld [vmem:[%s178 + $0x68] sm:$0xff]
      %v272 = vld [vmem:[%s178 + $0x70] sm:$0xff]
      %v273 = vld [vmem:[%s178 + $0x78] sm:$0xff]
      %v274 = vld [vmem:[%s178 + $0x80] sm:$0xff]
      %v275 = vld [vmem:[%s178 + $0x88] sm:$0xff]
      %v276 = vld [vmem:[%s178 + $0x90] sm:$0xff]
      %v277 = vld [vmem:[%s178 + $0x98] sm:$0xff]
      %v278 = vld [vmem:[%s178 + $0xa0] sm:$0xff]
      %v279 = vld [vmem:[%s178 + $0xa8] sm:$0xff]
      %v280 = vld [vmem:[%s178 + $0xb0] sm:$0xff]
      %v281 = vld [vmem:[%s178 + $0xb8] sm:$0xff]
      %v282 = vld [vmem:[%s178 + $0xc0] sm:$0xff]
      %v283 = vld [vmem:[%s178 + $0xc8] sm:$0xff]
      %v284 = vld [vmem:[%s178 + $0xd0] sm:$0xff]
      %v285 = vld [vmem:[%s178 + $0xd8] sm:$0xff]
      %v286 = vld [vmem:[%s178 + $0xe0] sm:$0xff]
      %v287 = vld [vmem:[%s178 + $0xe8] sm:$0xff]
      %v288 = vld [vmem:[%s178 + $0xf0] sm:$0xff]
      %v289 = vld [vmem:[%s178 + $0xf8] sm:$0xff]
      %v290 = vld [vmem:[%s184] sm:$0xff]
      %v291 = vld [vmem:[%s184 + $0x8] sm:$0xff]
      %v292 = vld [vmem:[%s184 + $0x10] sm:$0xff]
      %v293 = vld [vmem:[%s184 + $0x18] sm:$0xff]
      %295 = vset.pattern.permute.xlu0 0
      %296 = vperm.xlu0 %295, %v258
      %v297 = vpop.permute.xlu0 %296
      %300 = vset.pattern.permute.xlu0 0
      %301 = vperm.xlu0 %300, %v259
      %v302 = vpop.permute.xlu0 %301
      %305 = vset.pattern.permute.xlu0 0
      %306 = vperm.xlu0 %305, %v260
      %v307 = vpop.permute.xlu0 %306
      %310 = vset.pattern.permute.xlu0 0
      %311 = vperm.xlu0 %310, %v261
      %v312 = vpop.permute.xlu0 %311
      %315 = vset.pattern.permute.xlu0 0
      %316 = vperm.xlu0 %315, %v262
      %v317 = vpop.permute.xlu0 %316
      %320 = vset.pattern.permute.xlu0 0
      %321 = vperm.xlu0 %320, %v263
      %v322 = vpop.permute.xlu0 %321
      %325 = vset.pattern.permute.xlu0 0
      %326 = vperm.xlu0 %325, %v264
      %v327 = vpop.permute.xlu0 %326
      %330 = vset.pattern.permute.xlu0 0
      %331 = vperm.xlu0 %330, %v265
      %v332 = vpop.permute.xlu0 %331
      %335 = vset.pattern.permute.xlu0 0
      %336 = vperm.xlu0 %335, %v266
      %v337 = vpop.permute.xlu0 %336
      %340 = vset.pattern.permute.xlu0 0
      %341 = vperm.xlu0 %340, %v267
      %v342 = vpop.permute.xlu0 %341
      %345 = vset.pattern.permute.xlu0 0
      %346 = vperm.xlu0 %345, %v268
      %v347 = vpop.permute.xlu0 %346
      %350 = vset.pattern.permute.xlu0 0
      %351 = vperm.xlu0 %350, %v269
      %v352 = vpop.permute.xlu0 %351
      %355 = vset.pattern.permute.xlu0 0
      %356 = vperm.xlu0 %355, %v270
      %v357 = vpop.permute.xlu0 %356
      %360 = vset.pattern.permute.xlu0 0
      %361 = vperm.xlu0 %360, %v271
      %v362 = vpop.permute.xlu0 %361
      %365 = vset.pattern.permute.xlu0 0
      %366 = vperm.xlu0 %365, %v272
      %v367 = vpop.permute.xlu0 %366
      %370 = vset.pattern.permute.xlu0 0
      %371 = vperm.xlu0 %370, %v273
      %v372 = vpop.permute.xlu0 %371
      %375 = vset.pattern.permute.xlu0 0
      %376 = vperm.xlu0 %375, %v274
      %v377 = vpop.permute.xlu0 %376
      %380 = vset.pattern.permute.xlu0 0
      %381 = vperm.xlu0 %380, %v275
      %v382 = vpop.permute.xlu0 %381
      %385 = vset.pattern.permute.xlu0 0
      %386 = vperm.xlu0 %385, %v276
      %v387 = vpop.permute.xlu0 %386
      %390 = vset.pattern.permute.xlu0 0
      %391 = vperm.xlu0 %390, %v277
      %v392 = vpop.permute.xlu0 %391
      %395 = vset.pattern.permute.xlu0 0
      %396 = vperm.xlu0 %395, %v278
      %v397 = vpop.permute.xlu0 %396
      %400 = vset.pattern.permute.xlu0 0
      %401 = vperm.xlu0 %400, %v279
      %v402 = vpop.permute.xlu0 %401
      %405 = vset.pattern.permute.xlu0 0
      %406 = vperm.xlu0 %405, %v280
      %v407 = vpop.permute.xlu0 %406
      %410 = vset.pattern.permute.xlu0 0
      %411 = vperm.xlu0 %410, %v281
      %v412 = vpop.permute.xlu0 %411
      %415 = vset.pattern.permute.xlu0 0
      %416 = vperm.xlu0 %415, %v282
      %v417 = vpop.permute.xlu0 %416
      %420 = vset.pattern.permute.xlu0 0
      %421 = vperm.xlu0 %420, %v283
      %v422 = vpop.permute.xlu0 %421
      %425 = vset.pattern.permute.xlu0 0
      %426 = vperm.xlu0 %425, %v284
      %v427 = vpop.permute.xlu0 %426
      %430 = vset.pattern.permute.xlu0 0
      %431 = vperm.xlu0 %430, %v285
      %v432 = vpop.permute.xlu0 %431
      %435 = vset.pattern.permute.xlu0 0
      %436 = vperm.xlu0 %435, %v286
      %v437 = vpop.permute.xlu0 %436
      %440 = vset.pattern.permute.xlu0 0
      %441 = vperm.xlu0 %440, %v287
      %v442 = vpop.permute.xlu0 %441
      %445 = vset.pattern.permute.xlu0 0
      %446 = vperm.xlu0 %445, %v288
      %v447 = vpop.permute.xlu0 %446
      %450 = vset.pattern.permute.xlu0 0
      %451 = vperm.xlu0 %450, %v289
      %v452 = vpop.permute.xlu0 %451
      %v458 = vlaneseq
      %v459 = vshrl.u32 %v458, 7
      %v460 = vsub.s32 0, %v459
      %v461 = vrot.slane %v290, %v460
      %v462 = vlaneseq
      %v463 = vshrl.u32 %v462, 7
      %v464 = vsub.s32 4, %v463
      %v465 = vrot.slane %v290, %v464
      %v466 = vlaneseq
      %v467 = vshrl.u32 %v466, 7
      %v468 = vsub.s32 0, %v467
      %v469 = vrot.slane %v291, %v468
      %v470 = vlaneseq
      %v471 = vshrl.u32 %v470, 7
      %v472 = vsub.s32 4, %v471
      %v473 = vrot.slane %v291, %v472
      %v474 = vlaneseq
      %v475 = vshrl.u32 %v474, 7
      %v476 = vsub.s32 0, %v475
      %v477 = vrot.slane %v292, %v476
      %v478 = vlaneseq
      %v479 = vshrl.u32 %v478, 7
      %v480 = vsub.s32 4, %v479
      %v481 = vrot.slane %v292, %v480
      %v482 = vlaneseq
      %v483 = vshrl.u32 %v482, 7
      %v484 = vsub.s32 0, %v483
      %v485 = vrot.slane %v293, %v484
      %v486 = vlaneseq
      %v487 = vshrl.u32 %v486, 7
      %v488 = vsub.s32 4, %v487
      %v489 = vrot.slane %v293, %v488
      %v498 = vlaneseq
      %v499 = vshrl.u32 %v498, 7
      %v500 = vsub.s32 0, %v499
      %v501 = vrot.slane %v461, %v500
      %v502 = vlaneseq
      %v503 = vshrl.u32 %v502, 7
      %v504 = vsub.s32 0, %v503
      %v505 = vrot.slane %v465, %v504
      %v506 = vlaneseq
      %v507 = vshrl.u32 %v506, 7
      %v508 = vsub.s32 0, %v507
      %v509 = vrot.slane %v469, %v508
      %v510 = vlaneseq
      %v511 = vshrl.u32 %v510, 7
      %v512 = vsub.s32 0, %v511
      %v513 = vrot.slane %v473, %v512
      %v514 = vlaneseq
      %v515 = vshrl.u32 %v514, 7
      %v516 = vsub.s32 0, %v515
      %v517 = vrot.slane %v477, %v516
      %v518 = vlaneseq
      %v519 = vshrl.u32 %v518, 7
      %v520 = vsub.s32 0, %v519
      %v521 = vrot.slane %v481, %v520
      %v522 = vlaneseq
      %v523 = vshrl.u32 %v522, 7
      %v524 = vsub.s32 0, %v523
      %v525 = vrot.slane %v485, %v524
      %v526 = vlaneseq
      %v527 = vshrl.u32 %v526, 7
      %v528 = vsub.s32 0, %v527
      %v529 = vrot.slane %v489, %v528
      %v530 = vsub.f32 %v297, %v501
      %v531 = vsub.f32 %v297, %v505
      %v532 = vsub.f32 %v297, %v509
      %v533 = vsub.f32 %v297, %v513
      %v534 = vsub.f32 %v297, %v517
      %v535 = vsub.f32 %v297, %v521
      %v536 = vsub.f32 %v297, %v525
      %v537 = vsub.f32 %v297, %v529
      %v538 = vsub.f32 %v302, %v501
      %v539 = vsub.f32 %v302, %v505
      %v540 = vsub.f32 %v302, %v509
      %v541 = vsub.f32 %v302, %v513
      %v542 = vsub.f32 %v302, %v517
      %v543 = vsub.f32 %v302, %v521
      %v544 = vsub.f32 %v302, %v525
      %v545 = vsub.f32 %v302, %v529
      %v546 = vsub.f32 %v307, %v501
      %v547 = vsub.f32 %v307, %v505
      %v548 = vsub.f32 %v307, %v509
      %v549 = vsub.f32 %v307, %v513
      %v550 = vsub.f32 %v307, %v517
      %v551 = vsub.f32 %v307, %v521
      %v552 = vsub.f32 %v307, %v525
      %v553 = vsub.f32 %v307, %v529
      %v554 = vsub.f32 %v312, %v501
      %v555 = vsub.f32 %v312, %v505
      %v556 = vsub.f32 %v312, %v509
      %v557 = vsub.f32 %v312, %v513
      %v558 = vsub.f32 %v312, %v517
      %v559 = vsub.f32 %v312, %v521
      %v560 = vsub.f32 %v312, %v525
      %v561 = vsub.f32 %v312, %v529
      %v562 = vsub.f32 %v317, %v501
      %v563 = vsub.f32 %v317, %v505
      %v564 = vsub.f32 %v317, %v509
      %v565 = vsub.f32 %v317, %v513
      %v566 = vsub.f32 %v317, %v517
      %v567 = vsub.f32 %v317, %v521
      %v568 = vsub.f32 %v317, %v525
      %v569 = vsub.f32 %v317, %v529
      %v570 = vsub.f32 %v322, %v501
      %v571 = vsub.f32 %v322, %v505
      %v572 = vsub.f32 %v322, %v509
      %v573 = vsub.f32 %v322, %v513
      %v574 = vsub.f32 %v322, %v517
      %v575 = vsub.f32 %v322, %v521
      %v576 = vsub.f32 %v322, %v525
      %v577 = vsub.f32 %v322, %v529
      %v578 = vsub.f32 %v327, %v501
      %v579 = vsub.f32 %v327, %v505
      %v580 = vsub.f32 %v327, %v509
      %v581 = vsub.f32 %v327, %v513
      %v582 = vsub.f32 %v327, %v517
      %v583 = vsub.f32 %v327, %v521
      %v584 = vsub.f32 %v327, %v525
      %v585 = vsub.f32 %v327, %v529
      %v586 = vsub.f32 %v332, %v501
      %v587 = vsub.f32 %v332, %v505
      %v588 = vsub.f32 %v332, %v509
      %v589 = vsub.f32 %v332, %v513
      %v590 = vsub.f32 %v332, %v517
      %v591 = vsub.f32 %v332, %v521
      %v592 = vsub.f32 %v332, %v525
      %v593 = vsub.f32 %v332, %v529
      %v594 = vsub.f32 %v337, %v501
      %v595 = vsub.f32 %v337, %v505
      %v596 = vsub.f32 %v337, %v509
      %v597 = vsub.f32 %v337, %v513
      %v598 = vsub.f32 %v337, %v517
      %v599 = vsub.f32 %v337, %v521
      %v600 = vsub.f32 %v337, %v525
      %v601 = vsub.f32 %v337, %v529
      %v602 = vsub.f32 %v342, %v501
      %v603 = vsub.f32 %v342, %v505
      %v604 = vsub.f32 %v342, %v509
      %v605 = vsub.f32 %v342, %v513
      %v606 = vsub.f32 %v342, %v517
      %v607 = vsub.f32 %v342, %v521
      %v608 = vsub.f32 %v342, %v525
      %v609 = vsub.f32 %v342, %v529
      %v610 = vsub.f32 %v347, %v501
      %v611 = vsub.f32 %v347, %v505
      %v612 = vsub.f32 %v347, %v509
      %v613 = vsub.f32 %v347, %v513
      %v614 = vsub.f32 %v347, %v517
      %v615 = vsub.f32 %v347, %v521
      %v616 = vsub.f32 %v347, %v525
      %v617 = vsub.f32 %v347, %v529
      %v618 = vsub.f32 %v352, %v501
      %v619 = vsub.f32 %v352, %v505
      %v620 = vsub.f32 %v352, %v509
      %v621 = vsub.f32 %v352, %v513
      %v622 = vsub.f32 %v352, %v517
      %v623 = vsub.f32 %v352, %v521
      %v624 = vsub.f32 %v352, %v525
      %v625 = vsub.f32 %v352, %v529
      %v626 = vsub.f32 %v357, %v501
      %v627 = vsub.f32 %v357, %v505
      %v628 = vsub.f32 %v357, %v509
      %v629 = vsub.f32 %v357, %v513
      %v630 = vsub.f32 %v357, %v517
      %v631 = vsub.f32 %v357, %v521
      %v632 = vsub.f32 %v357, %v525
      %v633 = vsub.f32 %v357, %v529
      %v634 = vsub.f32 %v362, %v501
      %v635 = vsub.f32 %v362, %v505
      %v636 = vsub.f32 %v362, %v509
      %v637 = vsub.f32 %v362, %v513
      %v638 = vsub.f32 %v362, %v517
      %v639 = vsub.f32 %v362, %v521
      %v640 = vsub.f32 %v362, %v525
      %v641 = vsub.f32 %v362, %v529
      %v642 = vsub.f32 %v367, %v501
      %v643 = vsub.f32 %v367, %v505
      %v644 = vsub.f32 %v367, %v509
      %v645 = vsub.f32 %v367, %v513
      %v646 = vsub.f32 %v367, %v517
      %v647 = vsub.f32 %v367, %v521
      %v648 = vsub.f32 %v367, %v525
      %v649 = vsub.f32 %v367, %v529
      %v650 = vsub.f32 %v372, %v501
      %v651 = vsub.f32 %v372, %v505
      %v652 = vsub.f32 %v372, %v509
      %v653 = vsub.f32 %v372, %v513
      %v654 = vsub.f32 %v372, %v517
      %v655 = vsub.f32 %v372, %v521
      %v656 = vsub.f32 %v372, %v525
      %v657 = vsub.f32 %v372, %v529
      %v658 = vsub.f32 %v377, %v501
      %v659 = vsub.f32 %v377, %v505
      %v660 = vsub.f32 %v377, %v509
      %v661 = vsub.f32 %v377, %v513
      %v662 = vsub.f32 %v377, %v517
      %v663 = vsub.f32 %v377, %v521
      %v664 = vsub.f32 %v377, %v525
      %v665 = vsub.f32 %v377, %v529
      %v666 = vsub.f32 %v382, %v501
      %v667 = vsub.f32 %v382, %v505
      %v668 = vsub.f32 %v382, %v509
      %v669 = vsub.f32 %v382, %v513
      %v670 = vsub.f32 %v382, %v517
      %v671 = vsub.f32 %v382, %v521
      %v672 = vsub.f32 %v382, %v525
      %v673 = vsub.f32 %v382, %v529
      %v674 = vsub.f32 %v387, %v501
      %v675 = vsub.f32 %v387, %v505
      %v676 = vsub.f32 %v387, %v509
      %v677 = vsub.f32 %v387, %v513
      %v678 = vsub.f32 %v387, %v517
      %v679 = vsub.f32 %v387, %v521
      %v680 = vsub.f32 %v387, %v525
      %v681 = vsub.f32 %v387, %v529
      %v682 = vsub.f32 %v392, %v501
      %v683 = vsub.f32 %v392, %v505
      %v684 = vsub.f32 %v392, %v509
      %v685 = vsub.f32 %v392, %v513
      %v686 = vsub.f32 %v392, %v517
      %v687 = vsub.f32 %v392, %v521
      %v688 = vsub.f32 %v392, %v525
      %v689 = vsub.f32 %v392, %v529
      %v690 = vsub.f32 %v397, %v501
      %v691 = vsub.f32 %v397, %v505
      %v692 = vsub.f32 %v397, %v509
      %v693 = vsub.f32 %v397, %v513
      %v694 = vsub.f32 %v397, %v517
      %v695 = vsub.f32 %v397, %v521
      %v696 = vsub.f32 %v397, %v525
      %v697 = vsub.f32 %v397, %v529
      %v698 = vsub.f32 %v402, %v501
      %v699 = vsub.f32 %v402, %v505
      %v700 = vsub.f32 %v402, %v509
      %v701 = vsub.f32 %v402, %v513
      %v702 = vsub.f32 %v402, %v517
      %v703 = vsub.f32 %v402, %v521
      %v704 = vsub.f32 %v402, %v525
      %v705 = vsub.f32 %v402, %v529
      %v706 = vsub.f32 %v407, %v501
      %v707 = vsub.f32 %v407, %v505
      %v708 = vsub.f32 %v407, %v509
      %v709 = vsub.f32 %v407, %v513
      %v710 = vsub.f32 %v407, %v517
      %v711 = vsub.f32 %v407, %v521
      %v712 = vsub.f32 %v407, %v525
      %v713 = vsub.f32 %v407, %v529
      %v714 = vsub.f32 %v412, %v501
      %v715 = vsub.f32 %v412, %v505
      %v716 = vsub.f32 %v412, %v509
      %v717 = vsub.f32 %v412, %v513
      %v718 = vsub.f32 %v412, %v517
      %v719 = vsub.f32 %v412, %v521
      %v720 = vsub.f32 %v412, %v525
      %v721 = vsub.f32 %v412, %v529
      %v722 = vsub.f32 %v417, %v501
      %v723 = vsub.f32 %v417, %v505
      %v724 = vsub.f32 %v417, %v509
      %v725 = vsub.f32 %v417, %v513
      %v726 = vsub.f32 %v417, %v517
      %v727 = vsub.f32 %v417, %v521
      %v728 = vsub.f32 %v417, %v525
      %v729 = vsub.f32 %v417, %v529
      %v730 = vsub.f32 %v422, %v501
      %v731 = vsub.f32 %v422, %v505
      %v732 = vsub.f32 %v422, %v509
      %v733 = vsub.f32 %v422, %v513
      %v734 = vsub.f32 %v422, %v517
      %v735 = vsub.f32 %v422, %v521
      %v736 = vsub.f32 %v422, %v525
      %v737 = vsub.f32 %v422, %v529
      %v738 = vsub.f32 %v427, %v501
      %v739 = vsub.f32 %v427, %v505
      %v740 = vsub.f32 %v427, %v509
      %v741 = vsub.f32 %v427, %v513
      %v742 = vsub.f32 %v427, %v517
      %v743 = vsub.f32 %v427, %v521
      %v744 = vsub.f32 %v427, %v525
      %v745 = vsub.f32 %v427, %v529
      %v746 = vsub.f32 %v432, %v501
      %v747 = vsub.f32 %v432, %v505
      %v748 = vsub.f32 %v432, %v509
      %v749 = vsub.f32 %v432, %v513
      %v750 = vsub.f32 %v432, %v517
      %v751 = vsub.f32 %v432, %v521
      %v752 = vsub.f32 %v432, %v525
      %v753 = vsub.f32 %v432, %v529
      %v754 = vsub.f32 %v437, %v501
      %v755 = vsub.f32 %v437, %v505
      %v756 = vsub.f32 %v437, %v509
      %v757 = vsub.f32 %v437, %v513
      %v758 = vsub.f32 %v437, %v517
      %v759 = vsub.f32 %v437, %v521
      %v760 = vsub.f32 %v437, %v525
      %v761 = vsub.f32 %v437, %v529
      %v762 = vsub.f32 %v442, %v501
      %v763 = vsub.f32 %v442, %v505
      %v764 = vsub.f32 %v442, %v509
      %v765 = vsub.f32 %v442, %v513
      %v766 = vsub.f32 %v442, %v517
      %v767 = vsub.f32 %v442, %v521
      %v768 = vsub.f32 %v442, %v525
      %v769 = vsub.f32 %v442, %v529
      %v770 = vsub.f32 %v447, %v501
      %v771 = vsub.f32 %v447, %v505
      %v772 = vsub.f32 %v447, %v509
      %v773 = vsub.f32 %v447, %v513
      %v774 = vsub.f32 %v447, %v517
      %v775 = vsub.f32 %v447, %v521
      %v776 = vsub.f32 %v447, %v525
      %v777 = vsub.f32 %v447, %v529
      %v778 = vsub.f32 %v452, %v501
      %v779 = vsub.f32 %v452, %v505
      %v780 = vsub.f32 %v452, %v509
      %v781 = vsub.f32 %v452, %v513
      %v782 = vsub.f32 %v452, %v517
      %v783 = vsub.f32 %v452, %v521
      %v784 = vsub.f32 %v452, %v525
      %v785 = vsub.f32 %v452, %v529
      %786 = vset.pattern.permute.xlu0 1
      %787 = vperm.xlu0 %786, %v258
      %v788 = vpop.permute.xlu0 %787
      %790 = vset.pattern.permute.xlu0 1
      %791 = vperm.xlu0 %790, %v259
      %v792 = vpop.permute.xlu0 %791
      %794 = vset.pattern.permute.xlu0 1
      %795 = vperm.xlu0 %794, %v260
      %v796 = vpop.permute.xlu0 %795
      %798 = vset.pattern.permute.xlu0 1
      %799 = vperm.xlu0 %798, %v261
      %v800 = vpop.permute.xlu0 %799
      %802 = vset.pattern.permute.xlu0 1
      %803 = vperm.xlu0 %802, %v262
      %v804 = vpop.permute.xlu0 %803
      %806 = vset.pattern.permute.xlu0 1
      %807 = vperm.xlu0 %806, %v263
      %v808 = vpop.permute.xlu0 %807
      %810 = vset.pattern.permute.xlu0 1
      %811 = vperm.xlu0 %810, %v264
      %v812 = vpop.permute.xlu0 %811
      %814 = vset.pattern.permute.xlu0 1
      %815 = vperm.xlu0 %814, %v265
      %v816 = vpop.permute.xlu0 %815
      %818 = vset.pattern.permute.xlu0 1
      %819 = vperm.xlu0 %818, %v266
      %v820 = vpop.permute.xlu0 %819
      %822 = vset.pattern.permute.xlu0 1
      %823 = vperm.xlu0 %822, %v267
      %v824 = vpop.permute.xlu0 %823
      %826 = vset.pattern.permute.xlu0 1
      %827 = vperm.xlu0 %826, %v268
      %v828 = vpop.permute.xlu0 %827
      %830 = vset.pattern.permute.xlu0 1
      %831 = vperm.xlu0 %830, %v269
      %v832 = vpop.permute.xlu0 %831
      %834 = vset.pattern.permute.xlu0 1
      %835 = vperm.xlu0 %834, %v270
      %v836 = vpop.permute.xlu0 %835
      %838 = vset.pattern.permute.xlu0 1
      %839 = vperm.xlu0 %838, %v271
      %v840 = vpop.permute.xlu0 %839
      %842 = vset.pattern.permute.xlu0 1
      %843 = vperm.xlu0 %842, %v272
      %v844 = vpop.permute.xlu0 %843
      %846 = vset.pattern.permute.xlu0 1
      %847 = vperm.xlu0 %846, %v273
      %v848 = vpop.permute.xlu0 %847
      %850 = vset.pattern.permute.xlu0 1
      %851 = vperm.xlu0 %850, %v274
      %v852 = vpop.permute.xlu0 %851
      %854 = vset.pattern.permute.xlu0 1
      %855 = vperm.xlu0 %854, %v275
      %v856 = vpop.permute.xlu0 %855
      %858 = vset.pattern.permute.xlu0 1
      %859 = vperm.xlu0 %858, %v276
      %v860 = vpop.permute.xlu0 %859
      %862 = vset.pattern.permute.xlu0 1
      %863 = vperm.xlu0 %862, %v277
      %v864 = vpop.permute.xlu0 %863
      %866 = vset.pattern.permute.xlu0 1
      %867 = vperm.xlu0 %866, %v278
      %v868 = vpop.permute.xlu0 %867
      %870 = vset.pattern.permute.xlu0 1
      %871 = vperm.xlu0 %870, %v279
      %v872 = vpop.permute.xlu0 %871
      %874 = vset.pattern.permute.xlu0 1
      %875 = vperm.xlu0 %874, %v280
      %v876 = vpop.permute.xlu0 %875
      %878 = vset.pattern.permute.xlu0 1
      %879 = vperm.xlu0 %878, %v281
      %v880 = vpop.permute.xlu0 %879
      %882 = vset.pattern.permute.xlu0 1
      %883 = vperm.xlu0 %882, %v282
      %v884 = vpop.permute.xlu0 %883
      %886 = vset.pattern.permute.xlu0 1
      %887 = vperm.xlu0 %886, %v283
      %v888 = vpop.permute.xlu0 %887
      %890 = vset.pattern.permute.xlu0 1
      %891 = vperm.xlu0 %890, %v284
      %v892 = vpop.permute.xlu0 %891
      %894 = vset.pattern.permute.xlu0 1
      %895 = vperm.xlu0 %894, %v285
      %v896 = vpop.permute.xlu0 %895
      %898 = vset.pattern.permute.xlu0 1
      %899 = vperm.xlu0 %898, %v286
      %v900 = vpop.permute.xlu0 %899
      %902 = vset.pattern.permute.xlu0 1
      %903 = vperm.xlu0 %902, %v287
      %v904 = vpop.permute.xlu0 %903
      %906 = vset.pattern.permute.xlu0 1
      %907 = vperm.xlu0 %906, %v288
      %v908 = vpop.permute.xlu0 %907
      %910 = vset.pattern.permute.xlu0 1
      %911 = vperm.xlu0 %910, %v289
      %v912 = vpop.permute.xlu0 %911
      %v914 = vlaneseq
      %v915 = vshrl.u32 %v914, 7
      %v916 = vsub.s32 1, %v915
      %v917 = vrot.slane %v290, %v916
      %v918 = vlaneseq
      %v919 = vshrl.u32 %v918, 7
      %v920 = vsub.s32 5, %v919
      %v921 = vrot.slane %v290, %v920
      %v922 = vlaneseq
      %v923 = vshrl.u32 %v922, 7
      %v924 = vsub.s32 1, %v923
      %v925 = vrot.slane %v291, %v924
      %v926 = vlaneseq
      %v927 = vshrl.u32 %v926, 7
      %v928 = vsub.s32 5, %v927
      %v929 = vrot.slane %v291, %v928
      %v930 = vlaneseq
      %v931 = vshrl.u32 %v930, 7
      %v932 = vsub.s32 1, %v931
      %v933 = vrot.slane %v292, %v932
      %v934 = vlaneseq
      %v935 = vshrl.u32 %v934, 7
      %v936 = vsub.s32 5, %v935
      %v937 = vrot.slane %v292, %v936
      %v938 = vlaneseq
      %v939 = vshrl.u32 %v938, 7
      %v940 = vsub.s32 1, %v939
      %v941 = vrot.slane %v293, %v940
      %v942 = vlaneseq
      %v943 = vshrl.u32 %v942, 7
      %v944 = vsub.s32 5, %v943
      %v945 = vrot.slane %v293, %v944
      %v954 = vlaneseq
      %v955 = vshrl.u32 %v954, 7
      %v956 = vsub.s32 1, %v955
      %v957 = vrot.slane %v917, %v956
      %v958 = vlaneseq
      %v959 = vshrl.u32 %v958, 7
      %v960 = vsub.s32 1, %v959
      %v961 = vrot.slane %v921, %v960
      %v962 = vlaneseq
      %v963 = vshrl.u32 %v962, 7
      %v964 = vsub.s32 1, %v963
      %v965 = vrot.slane %v925, %v964
      %v966 = vlaneseq
      %v967 = vshrl.u32 %v966, 7
      %v968 = vsub.s32 1, %v967
      %v969 = vrot.slane %v929, %v968
      %v970 = vlaneseq
      %v971 = vshrl.u32 %v970, 7
      %v972 = vsub.s32 1, %v971
      %v973 = vrot.slane %v933, %v972
      %v974 = vlaneseq
      %v975 = vshrl.u32 %v974, 7
      %v976 = vsub.s32 1, %v975
      %v977 = vrot.slane %v937, %v976
      %v978 = vlaneseq
      %v979 = vshrl.u32 %v978, 7
      %v980 = vsub.s32 1, %v979
      %v981 = vrot.slane %v941, %v980
      %v982 = vlaneseq
      %v983 = vshrl.u32 %v982, 7
      %v984 = vsub.s32 1, %v983
      %v985 = vrot.slane %v945, %v984
      %v986 = vsub.f32 %v788, %v957
      %v987 = vsub.f32 %v788, %v961
      %v988 = vsub.f32 %v788, %v965
      %v989 = vsub.f32 %v788, %v969
      %v990 = vsub.f32 %v788, %v973
      %v991 = vsub.f32 %v788, %v977
      %v992 = vsub.f32 %v788, %v981
      %v993 = vsub.f32 %v788, %v985
      %v994 = vsub.f32 %v792, %v957
      %v995 = vsub.f32 %v792, %v961
      %v996 = vsub.f32 %v792, %v965
      %v997 = vsub.f32 %v792, %v969
      %v998 = vsub.f32 %v792, %v973
      %v999 = vsub.f32 %v792, %v977
      %v1000 = vsub.f32 %v792, %v981
      %v1001 = vsub.f32 %v792, %v985
      %v1002 = vsub.f32 %v796, %v957
      %v1003 = vsub.f32 %v796, %v961
      %v1004 = vsub.f32 %v796, %v965
      %v1005 = vsub.f32 %v796, %v969
      %v1006 = vsub.f32 %v796, %v973
      %v1007 = vsub.f32 %v796, %v977
      %v1008 = vsub.f32 %v796, %v981
      %v1009 = vsub.f32 %v796, %v985
      %v1010 = vsub.f32 %v800, %v957
      %v1011 = vsub.f32 %v800, %v961
      %v1012 = vsub.f32 %v800, %v965
      %v1013 = vsub.f32 %v800, %v969
      %v1014 = vsub.f32 %v800, %v973
      %v1015 = vsub.f32 %v800, %v977
      %v1016 = vsub.f32 %v800, %v981
      %v1017 = vsub.f32 %v800, %v985
      %v1018 = vsub.f32 %v804, %v957
      %v1019 = vsub.f32 %v804, %v961
      %v1020 = vsub.f32 %v804, %v965
      %v1021 = vsub.f32 %v804, %v969
      %v1022 = vsub.f32 %v804, %v973
      %v1023 = vsub.f32 %v804, %v977
      %v1024 = vsub.f32 %v804, %v981
      %v1025 = vsub.f32 %v804, %v985
      %v1026 = vsub.f32 %v808, %v957
      %v1027 = vsub.f32 %v808, %v961
      %v1028 = vsub.f32 %v808, %v965
      %v1029 = vsub.f32 %v808, %v969
      %v1030 = vsub.f32 %v808, %v973
      %v1031 = vsub.f32 %v808, %v977
      %v1032 = vsub.f32 %v808, %v981
      %v1033 = vsub.f32 %v808, %v985
      %v1034 = vsub.f32 %v812, %v957
      %v1035 = vsub.f32 %v812, %v961
      %v1036 = vsub.f32 %v812, %v965
      %v1037 = vsub.f32 %v812, %v969
      %v1038 = vsub.f32 %v812, %v973
      %v1039 = vsub.f32 %v812, %v977
      %v1040 = vsub.f32 %v812, %v981
      %v1041 = vsub.f32 %v812, %v985
      %v1042 = vsub.f32 %v816, %v957
      %v1043 = vsub.f32 %v816, %v961
      %v1044 = vsub.f32 %v816, %v965
      %v1045 = vsub.f32 %v816, %v969
      %v1046 = vsub.f32 %v816, %v973
      %v1047 = vsub.f32 %v816, %v977
      %v1048 = vsub.f32 %v816, %v981
      %v1049 = vsub.f32 %v816, %v985
      %v1050 = vsub.f32 %v820, %v957
      %v1051 = vsub.f32 %v820, %v961
      %v1052 = vsub.f32 %v820, %v965
      %v1053 = vsub.f32 %v820, %v969
      %v1054 = vsub.f32 %v820, %v973
      %v1055 = vsub.f32 %v820, %v977
      %v1056 = vsub.f32 %v820, %v981
      %v1057 = vsub.f32 %v820, %v985
      %v1058 = vsub.f32 %v824, %v957
      %v1059 = vsub.f32 %v824, %v961
      %v1060 = vsub.f32 %v824, %v965
      %v1061 = vsub.f32 %v824, %v969
      %v1062 = vsub.f32 %v824, %v973
      %v1063 = vsub.f32 %v824, %v977
      %v1064 = vsub.f32 %v824, %v981
      %v1065 = vsub.f32 %v824, %v985
      %v1066 = vsub.f32 %v828, %v957
      %v1067 = vsub.f32 %v828, %v961
      %v1068 = vsub.f32 %v828, %v965
      %v1069 = vsub.f32 %v828, %v969
      %v1070 = vsub.f32 %v828, %v973
      %v1071 = vsub.f32 %v828, %v977
      %v1072 = vsub.f32 %v828, %v981
      %v1073 = vsub.f32 %v828, %v985
      %v1074 = vsub.f32 %v832, %v957
      %v1075 = vsub.f32 %v832, %v961
      %v1076 = vsub.f32 %v832, %v965
      %v1077 = vsub.f32 %v832, %v969
      %v1078 = vsub.f32 %v832, %v973
      %v1079 = vsub.f32 %v832, %v977
      %v1080 = vsub.f32 %v832, %v981
      %v1081 = vsub.f32 %v832, %v985
      %v1082 = vsub.f32 %v836, %v957
      %v1083 = vsub.f32 %v836, %v961
      %v1084 = vsub.f32 %v836, %v965
      %v1085 = vsub.f32 %v836, %v969
      %v1086 = vsub.f32 %v836, %v973
      %v1087 = vsub.f32 %v836, %v977
      %v1088 = vsub.f32 %v836, %v981
      %v1089 = vsub.f32 %v836, %v985
      %v1090 = vsub.f32 %v840, %v957
      %v1091 = vsub.f32 %v840, %v961
      %v1092 = vsub.f32 %v840, %v965
      %v1093 = vsub.f32 %v840, %v969
      %v1094 = vsub.f32 %v840, %v973
      %v1095 = vsub.f32 %v840, %v977
      %v1096 = vsub.f32 %v840, %v981
      %v1097 = vsub.f32 %v840, %v985
      %v1098 = vsub.f32 %v844, %v957
      %v1099 = vsub.f32 %v844, %v961
      %v1100 = vsub.f32 %v844, %v965
      %v1101 = vsub.f32 %v844, %v969
      %v1102 = vsub.f32 %v844, %v973
      %v1103 = vsub.f32 %v844, %v977
      %v1104 = vsub.f32 %v844, %v981
      %v1105 = vsub.f32 %v844, %v985
      %v1106 = vsub.f32 %v848, %v957
      %v1107 = vsub.f32 %v848, %v961
      %v1108 = vsub.f32 %v848, %v965
      %v1109 = vsub.f32 %v848, %v969
      %v1110 = vsub.f32 %v848, %v973
      %v1111 = vsub.f32 %v848, %v977
      %v1112 = vsub.f32 %v848, %v981
      %v1113 = vsub.f32 %v848, %v985
      %v1114 = vsub.f32 %v852, %v957
      %v1115 = vsub.f32 %v852, %v961
      %v1116 = vsub.f32 %v852, %v965
      %v1117 = vsub.f32 %v852, %v969
      %v1118 = vsub.f32 %v852, %v973
      %v1119 = vsub.f32 %v852, %v977
      %v1120 = vsub.f32 %v852, %v981
      %v1121 = vsub.f32 %v852, %v985
      %v1122 = vsub.f32 %v856, %v957
      %v1123 = vsub.f32 %v856, %v961
      %v1124 = vsub.f32 %v856, %v965
      %v1125 = vsub.f32 %v856, %v969
      %v1126 = vsub.f32 %v856, %v973
      %v1127 = vsub.f32 %v856, %v977
      %v1128 = vsub.f32 %v856, %v981
      %v1129 = vsub.f32 %v856, %v985
      %v1130 = vsub.f32 %v860, %v957
      %v1131 = vsub.f32 %v860, %v961
      %v1132 = vsub.f32 %v860, %v965
      %v1133 = vsub.f32 %v860, %v969
      %v1134 = vsub.f32 %v860, %v973
      %v1135 = vsub.f32 %v860, %v977
      %v1136 = vsub.f32 %v860, %v981
      %v1137 = vsub.f32 %v860, %v985
      %v1138 = vsub.f32 %v864, %v957
      %v1139 = vsub.f32 %v864, %v961
      %v1140 = vsub.f32 %v864, %v965
      %v1141 = vsub.f32 %v864, %v969
      %v1142 = vsub.f32 %v864, %v973
      %v1143 = vsub.f32 %v864, %v977
      %v1144 = vsub.f32 %v864, %v981
      %v1145 = vsub.f32 %v864, %v985
      %v1146 = vsub.f32 %v868, %v957
      %v1147 = vsub.f32 %v868, %v961
      %v1148 = vsub.f32 %v868, %v965
      %v1149 = vsub.f32 %v868, %v969
      %v1150 = vsub.f32 %v868, %v973
      %v1151 = vsub.f32 %v868, %v977
      %v1152 = vsub.f32 %v868, %v981
      %v1153 = vsub.f32 %v868, %v985
      %v1154 = vsub.f32 %v872, %v957
      %v1155 = vsub.f32 %v872, %v961
      %v1156 = vsub.f32 %v872, %v965
      %v1157 = vsub.f32 %v872, %v969
      %v1158 = vsub.f32 %v872, %v973
      %v1159 = vsub.f32 %v872, %v977
      %v1160 = vsub.f32 %v872, %v981
      %v1161 = vsub.f32 %v872, %v985
      %v1162 = vsub.f32 %v876, %v957
      %v1163 = vsub.f32 %v876, %v961
      %v1164 = vsub.f32 %v876, %v965
      %v1165 = vsub.f32 %v876, %v969
      %v1166 = vsub.f32 %v876, %v973
      %v1167 = vsub.f32 %v876, %v977
      %v1168 = vsub.f32 %v876, %v981
      %v1169 = vsub.f32 %v876, %v985
      %v1170 = vsub.f32 %v880, %v957
      %v1171 = vsub.f32 %v880, %v961
      %v1172 = vsub.f32 %v880, %v965
      %v1173 = vsub.f32 %v880, %v969
      %v1174 = vsub.f32 %v880, %v973
      %v1175 = vsub.f32 %v880, %v977
      %v1176 = vsub.f32 %v880, %v981
      %v1177 = vsub.f32 %v880, %v985
      %v1178 = vsub.f32 %v884, %v957
      %v1179 = vsub.f32 %v884, %v961
      %v1180 = vsub.f32 %v884, %v965
      %v1181 = vsub.f32 %v884, %v969
      %v1182 = vsub.f32 %v884, %v973
      %v1183 = vsub.f32 %v884, %v977
      %v1184 = vsub.f32 %v884, %v981
      %v1185 = vsub.f32 %v884, %v985
      %v1186 = vsub.f32 %v888, %v957
      %v1187 = vsub.f32 %v888, %v961
      %v1188 = vsub.f32 %v888, %v965
      %v1189 = vsub.f32 %v888, %v969
      %v1190 = vsub.f32 %v888, %v973
      %v1191 = vsub.f32 %v888, %v977
      %v1192 = vsub.f32 %v888, %v981
      %v1193 = vsub.f32 %v888, %v985
      %v1194 = vsub.f32 %v892, %v957
      %v1195 = vsub.f32 %v892, %v961
      %v1196 = vsub.f32 %v892, %v965
      %v1197 = vsub.f32 %v892, %v969
      %v1198 = vsub.f32 %v892, %v973
      %v1199 = vsub.f32 %v892, %v977
      %v1200 = vsub.f32 %v892, %v981
      %v1201 = vsub.f32 %v892, %v985
      %v1202 = vsub.f32 %v896, %v957
      %v1203 = vsub.f32 %v896, %v961
      %v1204 = vsub.f32 %v896, %v965
      %v1205 = vsub.f32 %v896, %v969
      %v1206 = vsub.f32 %v896, %v973
      %v1207 = vsub.f32 %v896, %v977
      %v1208 = vsub.f32 %v896, %v981
      %v1209 = vsub.f32 %v896, %v985
      %v1210 = vsub.f32 %v900, %v957
      %v1211 = vsub.f32 %v900, %v961
      %v1212 = vsub.f32 %v900, %v965
      %v1213 = vsub.f32 %v900, %v969
      %v1214 = vsub.f32 %v900, %v973
      %v1215 = vsub.f32 %v900, %v977
      %v1216 = vsub.f32 %v900, %v981
      %v1217 = vsub.f32 %v900, %v985
      %v1218 = vsub.f32 %v904, %v957
      %v1219 = vsub.f32 %v904, %v961
      %v1220 = vsub.f32 %v904, %v965
      %v1221 = vsub.f32 %v904, %v969
      %v1222 = vsub.f32 %v904, %v973
      %v1223 = vsub.f32 %v904, %v977
      %v1224 = vsub.f32 %v904, %v981
      %v1225 = vsub.f32 %v904, %v985
      %v1226 = vsub.f32 %v908, %v957
      %v1227 = vsub.f32 %v908, %v961
      %v1228 = vsub.f32 %v908, %v965
      %v1229 = vsub.f32 %v908, %v969
      %v1230 = vsub.f32 %v908, %v973
      %v1231 = vsub.f32 %v908, %v977
      %v1232 = vsub.f32 %v908, %v981
      %v1233 = vsub.f32 %v908, %v985
      %v1234 = vsub.f32 %v912, %v957
      %v1235 = vsub.f32 %v912, %v961
      %v1236 = vsub.f32 %v912, %v965
      %v1237 = vsub.f32 %v912, %v969
      %v1238 = vsub.f32 %v912, %v973
      %v1239 = vsub.f32 %v912, %v977
      %v1240 = vsub.f32 %v912, %v981
      %v1241 = vsub.f32 %v912, %v985
      %1242 = vset.pattern.permute.xlu0 2
      %1243 = vperm.xlu0 %1242, %v258
      %v1244 = vpop.permute.xlu0 %1243
      %1246 = vset.pattern.permute.xlu0 2
      %1247 = vperm.xlu0 %1246, %v259
      %v1248 = vpop.permute.xlu0 %1247
      %1250 = vset.pattern.permute.xlu0 2
      %1251 = vperm.xlu0 %1250, %v260
      %v1252 = vpop.permute.xlu0 %1251
      %1254 = vset.pattern.permute.xlu0 2
      %1255 = vperm.xlu0 %1254, %v261
      %v1256 = vpop.permute.xlu0 %1255
      %1258 = vset.pattern.permute.xlu0 2
      %1259 = vperm.xlu0 %1258, %v262
      %v1260 = vpop.permute.xlu0 %1259
      %1262 = vset.pattern.permute.xlu0 2
      %1263 = vperm.xlu0 %1262, %v263
      %v1264 = vpop.permute.xlu0 %1263
      %1266 = vset.pattern.permute.xlu0 2
      %1267 = vperm.xlu0 %1266, %v264
      %v1268 = vpop.permute.xlu0 %1267
      %1270 = vset.pattern.permute.xlu0 2
      %1271 = vperm.xlu0 %1270, %v265
      %v1272 = vpop.permute.xlu0 %1271
      %1274 = vset.pattern.permute.xlu0 2
      %1275 = vperm.xlu0 %1274, %v266
      %v1276 = vpop.permute.xlu0 %1275
      %1278 = vset.pattern.permute.xlu0 2
      %1279 = vperm.xlu0 %1278, %v267
      %v1280 = vpop.permute.xlu0 %1279
      %1282 = vset.pattern.permute.xlu0 2
      %1283 = vperm.xlu0 %1282, %v268
      %v1284 = vpop.permute.xlu0 %1283
      %1286 = vset.pattern.permute.xlu0 2
      %1287 = vperm.xlu0 %1286, %v269
      %v1288 = vpop.permute.xlu0 %1287
      %1290 = vset.pattern.permute.xlu0 2
      %1291 = vperm.xlu0 %1290, %v270
      %v1292 = vpop.permute.xlu0 %1291
      %1294 = vset.pattern.permute.xlu0 2
      %1295 = vperm.xlu0 %1294, %v271
      %v1296 = vpop.permute.xlu0 %1295
      %1298 = vset.pattern.permute.xlu0 2
      %1299 = vperm.xlu0 %1298, %v272
      %v1300 = vpop.permute.xlu0 %1299
      %1302 = vset.pattern.permute.xlu0 2
      %1303 = vperm.xlu0 %1302, %v273
      %v1304 = vpop.permute.xlu0 %1303
      %1306 = vset.pattern.permute.xlu0 2
      %1307 = vperm.xlu0 %1306, %v274
      %v1308 = vpop.permute.xlu0 %1307
      %1310 = vset.pattern.permute.xlu0 2
      %1311 = vperm.xlu0 %1310, %v275
      %v1312 = vpop.permute.xlu0 %1311
      %1314 = vset.pattern.permute.xlu0 2
      %1315 = vperm.xlu0 %1314, %v276
      %v1316 = vpop.permute.xlu0 %1315
      %1318 = vset.pattern.permute.xlu0 2
      %1319 = vperm.xlu0 %1318, %v277
      %v1320 = vpop.permute.xlu0 %1319
      %1322 = vset.pattern.permute.xlu0 2
      %1323 = vperm.xlu0 %1322, %v278
      %v1324 = vpop.permute.xlu0 %1323
      %1326 = vset.pattern.permute.xlu0 2
      %1327 = vperm.xlu0 %1326, %v279
      %v1328 = vpop.permute.xlu0 %1327
      %1330 = vset.pattern.permute.xlu0 2
      %1331 = vperm.xlu0 %1330, %v280
      %v1332 = vpop.permute.xlu0 %1331
      %1334 = vset.pattern.permute.xlu0 2
      %1335 = vperm.xlu0 %1334, %v281
      %v1336 = vpop.permute.xlu0 %1335
      %1338 = vset.pattern.permute.xlu0 2
      %1339 = vperm.xlu0 %1338, %v282
      %v1340 = vpop.permute.xlu0 %1339
      %1342 = vset.pattern.permute.xlu0 2
      %1343 = vperm.xlu0 %1342, %v283
      %v1344 = vpop.permute.xlu0 %1343
      %1346 = vset.pattern.permute.xlu0 2
      %1347 = vperm.xlu0 %1346, %v284
      %v1348 = vpop.permute.xlu0 %1347
      %1350 = vset.pattern.permute.xlu0 2
      %1351 = vperm.xlu0 %1350, %v285
      %v1352 = vpop.permute.xlu0 %1351
      %1354 = vset.pattern.permute.xlu0 2
      %1355 = vperm.xlu0 %1354, %v286
      %v1356 = vpop.permute.xlu0 %1355
      %1358 = vset.pattern.permute.xlu0 2
      %1359 = vperm.xlu0 %1358, %v287
      %v1360 = vpop.permute.xlu0 %1359
      %1362 = vset.pattern.permute.xlu0 2
      %1363 = vperm.xlu0 %1362, %v288
      %v1364 = vpop.permute.xlu0 %1363
      %1366 = vset.pattern.permute.xlu0 2
      %1367 = vperm.xlu0 %1366, %v289
      %v1368 = vpop.permute.xlu0 %1367
      %v1370 = vlaneseq
      %v1371 = vshrl.u32 %v1370, 7
      %v1372 = vsub.s32 2, %v1371
      %v1373 = vrot.slane %v290, %v1372
      %v1374 = vlaneseq
      %v1375 = vshrl.u32 %v1374, 7
      %v1376 = vsub.s32 6, %v1375
      %v1377 = vrot.slane %v290, %v1376
      %v1378 = vlaneseq
      %v1379 = vshrl.u32 %v1378, 7
      %v1380 = vsub.s32 2, %v1379
      %v1381 = vrot.slane %v291, %v1380
      %v1382 = vlaneseq
      %v1383 = vshrl.u32 %v1382, 7
      %v1384 = vsub.s32 6, %v1383
      %v1385 = vrot.slane %v291, %v1384
      %v1386 = vlaneseq
      %v1387 = vshrl.u32 %v1386, 7
      %v1388 = vsub.s32 2, %v1387
      %v1389 = vrot.slane %v292, %v1388
      %v1390 = vlaneseq
      %v1391 = vshrl.u32 %v1390, 7
      %v1392 = vsub.s32 6, %v1391
      %v1393 = vrot.slane %v292, %v1392
      %v1394 = vlaneseq
      %v1395 = vshrl.u32 %v1394, 7
      %v1396 = vsub.s32 2, %v1395
      %v1397 = vrot.slane %v293, %v1396
      %v1398 = vlaneseq
      %v1399 = vshrl.u32 %v1398, 7
      %v1400 = vsub.s32 6, %v1399
      %v1401 = vrot.slane %v293, %v1400
      %v1410 = vlaneseq
      %v1411 = vshrl.u32 %v1410, 7
      %v1412 = vsub.s32 2, %v1411
      %v1413 = vrot.slane %v1373, %v1412
      %v1414 = vlaneseq
      %v1415 = vshrl.u32 %v1414, 7
      %v1416 = vsub.s32 2, %v1415
      %v1417 = vrot.slane %v1377, %v1416
      %v1418 = vlaneseq
      %v1419 = vshrl.u32 %v1418, 7
      %v1420 = vsub.s32 2, %v1419
      %v1421 = vrot.slane %v1381, %v1420
      %v1422 = vlaneseq
      %v1423 = vshrl.u32 %v1422, 7
      %v1424 = vsub.s32 2, %v1423
      %v1425 = vrot.slane %v1385, %v1424
      %v1426 = vlaneseq
      %v1427 = vshrl.u32 %v1426, 7
      %v1428 = vsub.s32 2, %v1427
      %v1429 = vrot.slane %v1389, %v1428
      %v1430 = vlaneseq
      %v1431 = vshrl.u32 %v1430, 7
      %v1432 = vsub.s32 2, %v1431
      %v1433 = vrot.slane %v1393, %v1432
      %v1434 = vlaneseq
      %v1435 = vshrl.u32 %v1434, 7
      %v1436 = vsub.s32 2, %v1435
      %v1437 = vrot.slane %v1397, %v1436
      %v1438 = vlaneseq
      %v1439 = vshrl.u32 %v1438, 7
      %v1440 = vsub.s32 2, %v1439
      %v1441 = vrot.slane %v1401, %v1440
      %v1442 = vsub.f32 %v1244, %v1413
      %v1443 = vsub.f32 %v1244, %v1417
      %v1444 = vsub.f32 %v1244, %v1421
      %v1445 = vsub.f32 %v1244, %v1425
      %v1446 = vsub.f32 %v1244, %v1429
      %v1447 = vsub.f32 %v1244, %v1433
      %v1448 = vsub.f32 %v1244, %v1437
      %v1449 = vsub.f32 %v1244, %v1441
      %v1450 = vsub.f32 %v1248, %v1413
      %v1451 = vsub.f32 %v1248, %v1417
      %v1452 = vsub.f32 %v1248, %v1421
      %v1453 = vsub.f32 %v1248, %v1425
      %v1454 = vsub.f32 %v1248, %v1429
      %v1455 = vsub.f32 %v1248, %v1433
      %v1456 = vsub.f32 %v1248, %v1437
      %v1457 = vsub.f32 %v1248, %v1441
      %v1458 = vsub.f32 %v1252, %v1413
      %v1459 = vsub.f32 %v1252, %v1417
      %v1460 = vsub.f32 %v1252, %v1421
      %v1461 = vsub.f32 %v1252, %v1425
      %v1462 = vsub.f32 %v1252, %v1429
      %v1463 = vsub.f32 %v1252, %v1433
      %v1464 = vsub.f32 %v1252, %v1437
      %v1465 = vsub.f32 %v1252, %v1441
      %v1466 = vsub.f32 %v1256, %v1413
      %v1467 = vsub.f32 %v1256, %v1417
      %v1468 = vsub.f32 %v1256, %v1421
      %v1469 = vsub.f32 %v1256, %v1425
      %v1470 = vsub.f32 %v1256, %v1429
      %v1471 = vsub.f32 %v1256, %v1433
      %v1472 = vsub.f32 %v1256, %v1437
      %v1473 = vsub.f32 %v1256, %v1441
      %v1474 = vsub.f32 %v1260, %v1413
      %v1475 = vsub.f32 %v1260, %v1417
      %v1476 = vsub.f32 %v1260, %v1421
      %v1477 = vsub.f32 %v1260, %v1425
      %v1478 = vsub.f32 %v1260, %v1429
      %v1479 = vsub.f32 %v1260, %v1433
      %v1480 = vsub.f32 %v1260, %v1437
      %v1481 = vsub.f32 %v1260, %v1441
      %v1482 = vsub.f32 %v1264, %v1413
      %v1483 = vsub.f32 %v1264, %v1417
      %v1484 = vsub.f32 %v1264, %v1421
      %v1485 = vsub.f32 %v1264, %v1425
      %v1486 = vsub.f32 %v1264, %v1429
      %v1487 = vsub.f32 %v1264, %v1433
      %v1488 = vsub.f32 %v1264, %v1437
      %v1489 = vsub.f32 %v1264, %v1441
      %v1490 = vsub.f32 %v1268, %v1413
      %v1491 = vsub.f32 %v1268, %v1417
      %v1492 = vsub.f32 %v1268, %v1421
      %v1493 = vsub.f32 %v1268, %v1425
      %v1494 = vsub.f32 %v1268, %v1429
      %v1495 = vsub.f32 %v1268, %v1433
      %v1496 = vsub.f32 %v1268, %v1437
      %v1497 = vsub.f32 %v1268, %v1441
      %v1498 = vsub.f32 %v1272, %v1413
      %v1499 = vsub.f32 %v1272, %v1417
      %v1500 = vsub.f32 %v1272, %v1421
      %v1501 = vsub.f32 %v1272, %v1425
      %v1502 = vsub.f32 %v1272, %v1429
      %v1503 = vsub.f32 %v1272, %v1433
      %v1504 = vsub.f32 %v1272, %v1437
      %v1505 = vsub.f32 %v1272, %v1441
      %v1506 = vsub.f32 %v1276, %v1413
      %v1507 = vsub.f32 %v1276, %v1417
      %v1508 = vsub.f32 %v1276, %v1421
      %v1509 = vsub.f32 %v1276, %v1425
      %v1510 = vsub.f32 %v1276, %v1429
      %v1511 = vsub.f32 %v1276, %v1433
      %v1512 = vsub.f32 %v1276, %v1437
      %v1513 = vsub.f32 %v1276, %v1441
      %v1514 = vsub.f32 %v1280, %v1413
      %v1515 = vsub.f32 %v1280, %v1417
      %v1516 = vsub.f32 %v1280, %v1421
      %v1517 = vsub.f32 %v1280, %v1425
      %v1518 = vsub.f32 %v1280, %v1429
      %v1519 = vsub.f32 %v1280, %v1433
      %v1520 = vsub.f32 %v1280, %v1437
      %v1521 = vsub.f32 %v1280, %v1441
      %v1522 = vsub.f32 %v1284, %v1413
      %v1523 = vsub.f32 %v1284, %v1417
      %v1524 = vsub.f32 %v1284, %v1421
      %v1525 = vsub.f32 %v1284, %v1425
      %v1526 = vsub.f32 %v1284, %v1429
      %v1527 = vsub.f32 %v1284, %v1433
      %v1528 = vsub.f32 %v1284, %v1437
      %v1529 = vsub.f32 %v1284, %v1441
      %v1530 = vsub.f32 %v1288, %v1413
      %v1531 = vsub.f32 %v1288, %v1417
      %v1532 = vsub.f32 %v1288, %v1421
      %v1533 = vsub.f32 %v1288, %v1425
      %v1534 = vsub.f32 %v1288, %v1429
      %v1535 = vsub.f32 %v1288, %v1433
      %v1536 = vsub.f32 %v1288, %v1437
      %v1537 = vsub.f32 %v1288, %v1441
      %v1538 = vsub.f32 %v1292, %v1413
      %v1539 = vsub.f32 %v1292, %v1417
      %v1540 = vsub.f32 %v1292, %v1421
      %v1541 = vsub.f32 %v1292, %v1425
      %v1542 = vsub.f32 %v1292, %v1429
      %v1543 = vsub.f32 %v1292, %v1433
      %v1544 = vsub.f32 %v1292, %v1437
      %v1545 = vsub.f32 %v1292, %v1441
      %v1546 = vsub.f32 %v1296, %v1413
      %v1547 = vsub.f32 %v1296, %v1417
      %v1548 = vsub.f32 %v1296, %v1421
      %v1549 = vsub.f32 %v1296, %v1425
      %v1550 = vsub.f32 %v1296, %v1429
      %v1551 = vsub.f32 %v1296, %v1433
      %v1552 = vsub.f32 %v1296, %v1437
      %v1553 = vsub.f32 %v1296, %v1441
      %v1554 = vsub.f32 %v1300, %v1413
      %v1555 = vsub.f32 %v1300, %v1417
      %v1556 = vsub.f32 %v1300, %v1421
      %v1557 = vsub.f32 %v1300, %v1425
      %v1558 = vsub.f32 %v1300, %v1429
      %v1559 = vsub.f32 %v1300, %v1433
      %v1560 = vsub.f32 %v1300, %v1437
      %v1561 = vsub.f32 %v1300, %v1441
      %v1562 = vsub.f32 %v1304, %v1413
      %v1563 = vsub.f32 %v1304, %v1417
      %v1564 = vsub.f32 %v1304, %v1421
      %v1565 = vsub.f32 %v1304, %v1425
      %v1566 = vsub.f32 %v1304, %v1429
      %v1567 = vsub.f32 %v1304, %v1433
      %v1568 = vsub.f32 %v1304, %v1437
      %v1569 = vsub.f32 %v1304, %v1441
      %v1570 = vsub.f32 %v1308, %v1413
      %v1571 = vsub.f32 %v1308, %v1417
      %v1572 = vsub.f32 %v1308, %v1421
      %v1573 = vsub.f32 %v1308, %v1425
      %v1574 = vsub.f32 %v1308, %v1429
      %v1575 = vsub.f32 %v1308, %v1433
      %v1576 = vsub.f32 %v1308, %v1437
      %v1577 = vsub.f32 %v1308, %v1441
      %v1578 = vsub.f32 %v1312, %v1413
      %v1579 = vsub.f32 %v1312, %v1417
      %v1580 = vsub.f32 %v1312, %v1421
      %v1581 = vsub.f32 %v1312, %v1425
      %v1582 = vsub.f32 %v1312, %v1429
      %v1583 = vsub.f32 %v1312, %v1433
      %v1584 = vsub.f32 %v1312, %v1437
      %v1585 = vsub.f32 %v1312, %v1441
      %v1586 = vsub.f32 %v1316, %v1413
      %v1587 = vsub.f32 %v1316, %v1417
      %v1588 = vsub.f32 %v1316, %v1421
      %v1589 = vsub.f32 %v1316, %v1425
      %v1590 = vsub.f32 %v1316, %v1429
      %v1591 = vsub.f32 %v1316, %v1433
      %v1592 = vsub.f32 %v1316, %v1437
      %v1593 = vsub.f32 %v1316, %v1441
      %v1594 = vsub.f32 %v1320, %v1413
      %v1595 = vsub.f32 %v1320, %v1417
      %v1596 = vsub.f32 %v1320, %v1421
      %v1597 = vsub.f32 %v1320, %v1425
      %v1598 = vsub.f32 %v1320, %v1429
      %v1599 = vsub.f32 %v1320, %v1433
      %v1600 = vsub.f32 %v1320, %v1437
      %v1601 = vsub.f32 %v1320, %v1441
      %v1602 = vsub.f32 %v1324, %v1413
      %v1603 = vsub.f32 %v1324, %v1417
      %v1604 = vsub.f32 %v1324, %v1421
      %v1605 = vsub.f32 %v1324, %v1425
      %v1606 = vsub.f32 %v1324, %v1429
      %v1607 = vsub.f32 %v1324, %v1433
      %v1608 = vsub.f32 %v1324, %v1437
      %v1609 = vsub.f32 %v1324, %v1441
      %v1610 = vsub.f32 %v1328, %v1413
      %v1611 = vsub.f32 %v1328, %v1417
      %v1612 = vsub.f32 %v1328, %v1421
      %v1613 = vsub.f32 %v1328, %v1425
      %v1614 = vsub.f32 %v1328, %v1429
      %v1615 = vsub.f32 %v1328, %v1433
      %v1616 = vsub.f32 %v1328, %v1437
      %v1617 = vsub.f32 %v1328, %v1441
      %v1618 = vsub.f32 %v1332, %v1413
      %v1619 = vsub.f32 %v1332, %v1417
      %v1620 = vsub.f32 %v1332, %v1421
      %v1621 = vsub.f32 %v1332, %v1425
      %v1622 = vsub.f32 %v1332, %v1429
      %v1623 = vsub.f32 %v1332, %v1433
      %v1624 = vsub.f32 %v1332, %v1437
      %v1625 = vsub.f32 %v1332, %v1441
      %v1626 = vsub.f32 %v1336, %v1413
      %v1627 = vsub.f32 %v1336, %v1417
      %v1628 = vsub.f32 %v1336, %v1421
      %v1629 = vsub.f32 %v1336, %v1425
      %v1630 = vsub.f32 %v1336, %v1429
      %v1631 = vsub.f32 %v1336, %v1433
      %v1632 = vsub.f32 %v1336, %v1437
      %v1633 = vsub.f32 %v1336, %v1441
      %v1634 = vsub.f32 %v1340, %v1413
      %v1635 = vsub.f32 %v1340, %v1417
      %v1636 = vsub.f32 %v1340, %v1421
      %v1637 = vsub.f32 %v1340, %v1425
      %v1638 = vsub.f32 %v1340, %v1429
      %v1639 = vsub.f32 %v1340, %v1433
      %v1640 = vsub.f32 %v1340, %v1437
      %v1641 = vsub.f32 %v1340, %v1441
      %v1642 = vsub.f32 %v1344, %v1413
      %v1643 = vsub.f32 %v1344, %v1417
      %v1644 = vsub.f32 %v1344, %v1421
      %v1645 = vsub.f32 %v1344, %v1425
      %v1646 = vsub.f32 %v1344, %v1429
      %v1647 = vsub.f32 %v1344, %v1433
      %v1648 = vsub.f32 %v1344, %v1437
      %v1649 = vsub.f32 %v1344, %v1441
      %v1650 = vsub.f32 %v1348, %v1413
      %v1651 = vsub.f32 %v1348, %v1417
      %v1652 = vsub.f32 %v1348, %v1421
      %v1653 = vsub.f32 %v1348, %v1425
      %v1654 = vsub.f32 %v1348, %v1429
      %v1655 = vsub.f32 %v1348, %v1433
      %v1656 = vsub.f32 %v1348, %v1437
      %v1657 = vsub.f32 %v1348, %v1441
      %v1658 = vsub.f32 %v1352, %v1413
      %v1659 = vsub.f32 %v1352, %v1417
      %v1660 = vsub.f32 %v1352, %v1421
      %v1661 = vsub.f32 %v1352, %v1425
      %v1662 = vsub.f32 %v1352, %v1429
      %v1663 = vsub.f32 %v1352, %v1433
      %v1664 = vsub.f32 %v1352, %v1437
      %v1665 = vsub.f32 %v1352, %v1441
      %v1666 = vsub.f32 %v1356, %v1413
      %v1667 = vsub.f32 %v1356, %v1417
      %v1668 = vsub.f32 %v1356, %v1421
      %v1669 = vsub.f32 %v1356, %v1425
      %v1670 = vsub.f32 %v1356, %v1429
      %v1671 = vsub.f32 %v1356, %v1433
      %v1672 = vsub.f32 %v1356, %v1437
      %v1673 = vsub.f32 %v1356, %v1441
      %v1674 = vsub.f32 %v1360, %v1413
      %v1675 = vsub.f32 %v1360, %v1417
      %v1676 = vsub.f32 %v1360, %v1421
      %v1677 = vsub.f32 %v1360, %v1425
      %v1678 = vsub.f32 %v1360, %v1429
      %v1679 = vsub.f32 %v1360, %v1433
      %v1680 = vsub.f32 %v1360, %v1437
      %v1681 = vsub.f32 %v1360, %v1441
      %v1682 = vsub.f32 %v1364, %v1413
      %v1683 = vsub.f32 %v1364, %v1417
      %v1684 = vsub.f32 %v1364, %v1421
      %v1685 = vsub.f32 %v1364, %v1425
      %v1686 = vsub.f32 %v1364, %v1429
      %v1687 = vsub.f32 %v1364, %v1433
      %v1688 = vsub.f32 %v1364, %v1437
      %v1689 = vsub.f32 %v1364, %v1441
      %v1690 = vsub.f32 %v1368, %v1413
      %v1691 = vsub.f32 %v1368, %v1417
      %v1692 = vsub.f32 %v1368, %v1421
      %v1693 = vsub.f32 %v1368, %v1425
      %v1694 = vsub.f32 %v1368, %v1429
      %v1695 = vsub.f32 %v1368, %v1433
      %v1696 = vsub.f32 %v1368, %v1437
      %v1697 = vsub.f32 %v1368, %v1441
      %v1698 = vmul.f32 %v530, %v530
      %v1699 = vmul.f32 %v531, %v531
      %v1700 = vmul.f32 %v532, %v532
      %v1701 = vmul.f32 %v533, %v533
      %v1702 = vmul.f32 %v534, %v534
      %v1703 = vmul.f32 %v535, %v535
      %v1704 = vmul.f32 %v536, %v536
      %v1705 = vmul.f32 %v537, %v537
      %v1706 = vmul.f32 %v538, %v538
      %v1707 = vmul.f32 %v539, %v539
      %v1708 = vmul.f32 %v540, %v540
      %v1709 = vmul.f32 %v541, %v541
      %v1710 = vmul.f32 %v542, %v542
      %v1711 = vmul.f32 %v543, %v543
      %v1712 = vmul.f32 %v544, %v544
      %v1713 = vmul.f32 %v545, %v545
      %v1714 = vmul.f32 %v546, %v546
      %v1715 = vmul.f32 %v547, %v547
      %v1716 = vmul.f32 %v548, %v548
      %v1717 = vmul.f32 %v549, %v549
      %v1718 = vmul.f32 %v550, %v550
      %v1719 = vmul.f32 %v551, %v551
      %v1720 = vmul.f32 %v552, %v552
      %v1721 = vmul.f32 %v553, %v553
      %v1722 = vmul.f32 %v554, %v554
      %v1723 = vmul.f32 %v555, %v555
      %v1724 = vmul.f32 %v556, %v556
      %v1725 = vmul.f32 %v557, %v557
      %v1726 = vmul.f32 %v558, %v558
      %v1727 = vmul.f32 %v559, %v559
      %v1728 = vmul.f32 %v560, %v560
      %v1729 = vmul.f32 %v561, %v561
      %v1730 = vmul.f32 %v562, %v562
      %v1731 = vmul.f32 %v563, %v563
      %v1732 = vmul.f32 %v564, %v564
      %v1733 = vmul.f32 %v565, %v565
      %v1734 = vmul.f32 %v566, %v566
      %v1735 = vmul.f32 %v567, %v567
      %v1736 = vmul.f32 %v568, %v568
      %v1737 = vmul.f32 %v569, %v569
      %v1738 = vmul.f32 %v570, %v570
      %v1739 = vmul.f32 %v571, %v571
      %v1740 = vmul.f32 %v572, %v572
      %v1741 = vmul.f32 %v573, %v573
      %v1742 = vmul.f32 %v574, %v574
      %v1743 = vmul.f32 %v575, %v575
      %v1744 = vmul.f32 %v576, %v576
      %v1745 = vmul.f32 %v577, %v577
      %v1746 = vmul.f32 %v578, %v578
      %v1747 = vmul.f32 %v579, %v579
      %v1748 = vmul.f32 %v580, %v580
      %v1749 = vmul.f32 %v581, %v581
      %v1750 = vmul.f32 %v582, %v582
      %v1751 = vmul.f32 %v583, %v583
      %v1752 = vmul.f32 %v584, %v584
      %v1753 = vmul.f32 %v585, %v585
      %v1754 = vmul.f32 %v586, %v586
      %v1755 = vmul.f32 %v587, %v587
      %v1756 = vmul.f32 %v588, %v588
      %v1757 = vmul.f32 %v589, %v589
      %v1758 = vmul.f32 %v590, %v590
      %v1759 = vmul.f32 %v591, %v591
      %v1760 = vmul.f32 %v592, %v592
      %v1761 = vmul.f32 %v593, %v593
      %v1762 = vmul.f32 %v594, %v594
      %v1763 = vmul.f32 %v595, %v595
      %v1764 = vmul.f32 %v596, %v596
      %v1765 = vmul.f32 %v597, %v597
      %v1766 = vmul.f32 %v598, %v598
      %v1767 = vmul.f32 %v599, %v599
      %v1768 = vmul.f32 %v600, %v600
      %v1769 = vmul.f32 %v601, %v601
      %v1770 = vmul.f32 %v602, %v602
      %v1771 = vmul.f32 %v603, %v603
      %v1772 = vmul.f32 %v604, %v604
      %v1773 = vmul.f32 %v605, %v605
      %v1774 = vmul.f32 %v606, %v606
      %v1775 = vmul.f32 %v607, %v607
      %v1776 = vmul.f32 %v608, %v608
      %v1777 = vmul.f32 %v609, %v609
      %v1778 = vmul.f32 %v610, %v610
      %v1779 = vmul.f32 %v611, %v611
      %v1780 = vmul.f32 %v612, %v612
      %v1781 = vmul.f32 %v613, %v613
      %v1782 = vmul.f32 %v614, %v614
      %v1783 = vmul.f32 %v615, %v615
      %v1784 = vmul.f32 %v616, %v616
      %v1785 = vmul.f32 %v617, %v617
      %v1786 = vmul.f32 %v618, %v618
      %v1787 = vmul.f32 %v619, %v619
      %v1788 = vmul.f32 %v620, %v620
      %v1789 = vmul.f32 %v621, %v621
      %v1790 = vmul.f32 %v622, %v622
      %v1791 = vmul.f32 %v623, %v623
      %v1792 = vmul.f32 %v624, %v624
      %v1793 = vmul.f32 %v625, %v625
      %v1794 = vmul.f32 %v626, %v626
      %v1795 = vmul.f32 %v627, %v627
      %v1796 = vmul.f32 %v628, %v628
      %v1797 = vmul.f32 %v629, %v629
      %v1798 = vmul.f32 %v630, %v630
      %v1799 = vmul.f32 %v631, %v631
      %v1800 = vmul.f32 %v632, %v632
      %v1801 = vmul.f32 %v633, %v633
      %v1802 = vmul.f32 %v634, %v634
      %v1803 = vmul.f32 %v635, %v635
      %v1804 = vmul.f32 %v636, %v636
      %v1805 = vmul.f32 %v637, %v637
      %v1806 = vmul.f32 %v638, %v638
      %v1807 = vmul.f32 %v639, %v639
      %v1808 = vmul.f32 %v640, %v640
      %v1809 = vmul.f32 %v641, %v641
      %v1810 = vmul.f32 %v642, %v642
      %v1811 = vmul.f32 %v643, %v643
      %v1812 = vmul.f32 %v644, %v644
      %v1813 = vmul.f32 %v645, %v645
      %v1814 = vmul.f32 %v646, %v646
      %v1815 = vmul.f32 %v647, %v647
      %v1816 = vmul.f32 %v648, %v648
      %v1817 = vmul.f32 %v649, %v649
      %v1818 = vmul.f32 %v650, %v650
      %v1819 = vmul.f32 %v651, %v651
      %v1820 = vmul.f32 %v652, %v652
      %v1821 = vmul.f32 %v653, %v653
      %v1822 = vmul.f32 %v654, %v654
      %v1823 = vmul.f32 %v655, %v655
      %v1824 = vmul.f32 %v656, %v656
      %v1825 = vmul.f32 %v657, %v657
      %v1826 = vmul.f32 %v658, %v658
      %v1827 = vmul.f32 %v659, %v659
      %v1828 = vmul.f32 %v660, %v660
      %v1829 = vmul.f32 %v661, %v661
      %v1830 = vmul.f32 %v662, %v662
      %v1831 = vmul.f32 %v663, %v663
      %v1832 = vmul.f32 %v664, %v664
      %v1833 = vmul.f32 %v665, %v665
      %v1834 = vmul.f32 %v666, %v666
      %v1835 = vmul.f32 %v667, %v667
      %v1836 = vmul.f32 %v668, %v668
      %v1837 = vmul.f32 %v669, %v669
      %v1838 = vmul.f32 %v670, %v670
      %v1839 = vmul.f32 %v671, %v671
      %v1840 = vmul.f32 %v672, %v672
      %v1841 = vmul.f32 %v673, %v673
      %v1842 = vmul.f32 %v674, %v674
      %v1843 = vmul.f32 %v675, %v675
      %v1844 = vmul.f32 %v676, %v676
      %v1845 = vmul.f32 %v677, %v677
      %v1846 = vmul.f32 %v678, %v678
      %v1847 = vmul.f32 %v679, %v679
      %v1848 = vmul.f32 %v680, %v680
      %v1849 = vmul.f32 %v681, %v681
      %v1850 = vmul.f32 %v682, %v682
      %v1851 = vmul.f32 %v683, %v683
      %v1852 = vmul.f32 %v684, %v684
      %v1853 = vmul.f32 %v685, %v685
      %v1854 = vmul.f32 %v686, %v686
      %v1855 = vmul.f32 %v687, %v687
      %v1856 = vmul.f32 %v688, %v688
      %v1857 = vmul.f32 %v689, %v689
      %v1858 = vmul.f32 %v690, %v690
      %v1859 = vmul.f32 %v691, %v691
      %v1860 = vmul.f32 %v692, %v692
      %v1861 = vmul.f32 %v693, %v693
      %v1862 = vmul.f32 %v694, %v694
      %v1863 = vmul.f32 %v695, %v695
      %v1864 = vmul.f32 %v696, %v696
      %v1865 = vmul.f32 %v697, %v697
      %v1866 = vmul.f32 %v698, %v698
      %v1867 = vmul.f32 %v699, %v699
      %v1868 = vmul.f32 %v700, %v700
      %v1869 = vmul.f32 %v701, %v701
      %v1870 = vmul.f32 %v702, %v702
      %v1871 = vmul.f32 %v703, %v703
      %v1872 = vmul.f32 %v704, %v704
      %v1873 = vmul.f32 %v705, %v705
      %v1874 = vmul.f32 %v706, %v706
      %v1875 = vmul.f32 %v707, %v707
      %v1876 = vmul.f32 %v708, %v708
      %v1877 = vmul.f32 %v709, %v709
      %v1878 = vmul.f32 %v710, %v710
      %v1879 = vmul.f32 %v711, %v711
      %v1880 = vmul.f32 %v712, %v712
      %v1881 = vmul.f32 %v713, %v713
      %v1882 = vmul.f32 %v714, %v714
      %v1883 = vmul.f32 %v715, %v715
      %v1884 = vmul.f32 %v716, %v716
      %v1885 = vmul.f32 %v717, %v717
      %v1886 = vmul.f32 %v718, %v718
      %v1887 = vmul.f32 %v719, %v719
      %v1888 = vmul.f32 %v720, %v720
      %v1889 = vmul.f32 %v721, %v721
      %v1890 = vmul.f32 %v722, %v722
      %v1891 = vmul.f32 %v723, %v723
      %v1892 = vmul.f32 %v724, %v724
      %v1893 = vmul.f32 %v725, %v725
      %v1894 = vmul.f32 %v726, %v726
      %v1895 = vmul.f32 %v727, %v727
      %v1896 = vmul.f32 %v728, %v728
      %v1897 = vmul.f32 %v729, %v729
      %v1898 = vmul.f32 %v730, %v730
      %v1899 = vmul.f32 %v731, %v731
      %v1900 = vmul.f32 %v732, %v732
      %v1901 = vmul.f32 %v733, %v733
      %v1902 = vmul.f32 %v734, %v734
      %v1903 = vmul.f32 %v735, %v735
      %v1904 = vmul.f32 %v736, %v736
      %v1905 = vmul.f32 %v737, %v737
      %v1906 = vmul.f32 %v738, %v738
      %v1907 = vmul.f32 %v739, %v739
      %v1908 = vmul.f32 %v740, %v740
      %v1909 = vmul.f32 %v741, %v741
      %v1910 = vmul.f32 %v742, %v742
      %v1911 = vmul.f32 %v743, %v743
      %v1912 = vmul.f32 %v744, %v744
      %v1913 = vmul.f32 %v745, %v745
      %v1914 = vmul.f32 %v746, %v746
      %v1915 = vmul.f32 %v747, %v747
      %v1916 = vmul.f32 %v748, %v748
      %v1917 = vmul.f32 %v749, %v749
      %v1918 = vmul.f32 %v750, %v750
      %v1919 = vmul.f32 %v751, %v751
      %v1920 = vmul.f32 %v752, %v752
      %v1921 = vmul.f32 %v753, %v753
      %v1922 = vmul.f32 %v754, %v754
      %v1923 = vmul.f32 %v755, %v755
      %v1924 = vmul.f32 %v756, %v756
      %v1925 = vmul.f32 %v757, %v757
      %v1926 = vmul.f32 %v758, %v758
      %v1927 = vmul.f32 %v759, %v759
      %v1928 = vmul.f32 %v760, %v760
      %v1929 = vmul.f32 %v761, %v761
      %v1930 = vmul.f32 %v762, %v762
      %v1931 = vmul.f32 %v763, %v763
      %v1932 = vmul.f32 %v764, %v764
      %v1933 = vmul.f32 %v765, %v765
      %v1934 = vmul.f32 %v766, %v766
      %v1935 = vmul.f32 %v767, %v767
      %v1936 = vmul.f32 %v768, %v768
      %v1937 = vmul.f32 %v769, %v769
      %v1938 = vmul.f32 %v770, %v770
      %v1939 = vmul.f32 %v771, %v771
      %v1940 = vmul.f32 %v772, %v772
      %v1941 = vmul.f32 %v773, %v773
      %v1942 = vmul.f32 %v774, %v774
      %v1943 = vmul.f32 %v775, %v775
      %v1944 = vmul.f32 %v776, %v776
      %v1945 = vmul.f32 %v777, %v777
      %v1946 = vmul.f32 %v778, %v778
      %v1947 = vmul.f32 %v779, %v779
      %v1948 = vmul.f32 %v780, %v780
      %v1949 = vmul.f32 %v781, %v781
      %v1950 = vmul.f32 %v782, %v782
      %v1951 = vmul.f32 %v783, %v783
      %v1952 = vmul.f32 %v784, %v784
      %v1953 = vmul.f32 %v785, %v785
      %v1954 = vmul.f32 %v986, %v986
      %v1955 = vmul.f32 %v987, %v987
      %v1956 = vmul.f32 %v988, %v988
      %v1957 = vmul.f32 %v989, %v989
      %v1958 = vmul.f32 %v990, %v990
      %v1959 = vmul.f32 %v991, %v991
      %v1960 = vmul.f32 %v992, %v992
      %v1961 = vmul.f32 %v993, %v993
      %v1962 = vmul.f32 %v994, %v994
      %v1963 = vmul.f32 %v995, %v995
      %v1964 = vmul.f32 %v996, %v996
      %v1965 = vmul.f32 %v997, %v997
      %v1966 = vmul.f32 %v998, %v998
      %v1967 = vmul.f32 %v999, %v999
      %v1968 = vmul.f32 %v1000, %v1000
      %v1969 = vmul.f32 %v1001, %v1001
      %v1970 = vmul.f32 %v1002, %v1002
      %v1971 = vmul.f32 %v1003, %v1003
      %v1972 = vmul.f32 %v1004, %v1004
      %v1973 = vmul.f32 %v1005, %v1005
      %v1974 = vmul.f32 %v1006, %v1006
      %v1975 = vmul.f32 %v1007, %v1007
      %v1976 = vmul.f32 %v1008, %v1008
      %v1977 = vmul.f32 %v1009, %v1009
      %v1978 = vmul.f32 %v1010, %v1010
      %v1979 = vmul.f32 %v1011, %v1011
      %v1980 = vmul.f32 %v1012, %v1012
      %v1981 = vmul.f32 %v1013, %v1013
      %v1982 = vmul.f32 %v1014, %v1014
      %v1983 = vmul.f32 %v1015, %v1015
      %v1984 = vmul.f32 %v1016, %v1016
      %v1985 = vmul.f32 %v1017, %v1017
      %v1986 = vmul.f32 %v1018, %v1018
      %v1987 = vmul.f32 %v1019, %v1019
      %v1988 = vmul.f32 %v1020, %v1020
      %v1989 = vmul.f32 %v1021, %v1021
      %v1990 = vmul.f32 %v1022, %v1022
      %v1991 = vmul.f32 %v1023, %v1023
      %v1992 = vmul.f32 %v1024, %v1024
      %v1993 = vmul.f32 %v1025, %v1025
      %v1994 = vmul.f32 %v1026, %v1026
      %v1995 = vmul.f32 %v1027, %v1027
      %v1996 = vmul.f32 %v1028, %v1028
      %v1997 = vmul.f32 %v1029, %v1029
      %v1998 = vmul.f32 %v1030, %v1030
      %v1999 = vmul.f32 %v1031, %v1031
      %v2000 = vmul.f32 %v1032, %v1032
      %v2001 = vmul.f32 %v1033, %v1033
      %v2002 = vmul.f32 %v1034, %v1034
      %v2003 = vmul.f32 %v1035, %v1035
      %v2004 = vmul.f32 %v1036, %v1036
      %v2005 = vmul.f32 %v1037, %v1037
      %v2006 = vmul.f32 %v1038, %v1038
      %v2007 = vmul.f32 %v1039, %v1039
      %v2008 = vmul.f32 %v1040, %v1040
      %v2009 = vmul.f32 %v1041, %v1041
      %v2010 = vmul.f32 %v1042, %v1042
      %v2011 = vmul.f32 %v1043, %v1043
      %v2012 = vmul.f32 %v1044, %v1044
      %v2013 = vmul.f32 %v1045, %v1045
      %v2014 = vmul.f32 %v1046, %v1046
      %v2015 = vmul.f32 %v1047, %v1047
      %v2016 = vmul.f32 %v1048, %v1048
      %v2017 = vmul.f32 %v1049, %v1049
      %v2018 = vmul.f32 %v1050, %v1050
      %v2019 = vmul.f32 %v1051, %v1051
      %v2020 = vmul.f32 %v1052, %v1052
      %v2021 = vmul.f32 %v1053, %v1053
      %v2022 = vmul.f32 %v1054, %v1054
      %v2023 = vmul.f32 %v1055, %v1055
      %v2024 = vmul.f32 %v1056, %v1056
      %v2025 = vmul.f32 %v1057, %v1057
      %v2026 = vmul.f32 %v1058, %v1058
      %v2027 = vmul.f32 %v1059, %v1059
      %v2028 = vmul.f32 %v1060, %v1060
      %v2029 = vmul.f32 %v1061, %v1061
      %v2030 = vmul.f32 %v1062, %v1062
      %v2031 = vmul.f32 %v1063, %v1063
      %v2032 = vmul.f32 %v1064, %v1064
      %v2033 = vmul.f32 %v1065, %v1065
      %v2034 = vmul.f32 %v1066, %v1066
      %v2035 = vmul.f32 %v1067, %v1067
      %v2036 = vmul.f32 %v1068, %v1068
      %v2037 = vmul.f32 %v1069, %v1069
      %v2038 = vmul.f32 %v1070, %v1070
      %v2039 = vmul.f32 %v1071, %v1071
      %v2040 = vmul.f32 %v1072, %v1072
      %v2041 = vmul.f32 %v1073, %v1073
      %v2042 = vmul.f32 %v1074, %v1074
      %v2043 = vmul.f32 %v1075, %v1075
      %v2044 = vmul.f32 %v1076, %v1076
      %v2045 = vmul.f32 %v1077, %v1077
      %v2046 = vmul.f32 %v1078, %v1078
      %v2047 = vmul.f32 %v1079, %v1079
      %v2048 = vmul.f32 %v1080, %v1080
      %v2049 = vmul.f32 %v1081, %v1081
      %v2050 = vmul.f32 %v1082, %v1082
      %v2051 = vmul.f32 %v1083, %v1083
      %v2052 = vmul.f32 %v1084, %v1084
      %v2053 = vmul.f32 %v1085, %v1085
      %v2054 = vmul.f32 %v1086, %v1086
      %v2055 = vmul.f32 %v1087, %v1087
      %v2056 = vmul.f32 %v1088, %v1088
      %v2057 = vmul.f32 %v1089, %v1089
      %v2058 = vmul.f32 %v1090, %v1090
      %v2059 = vmul.f32 %v1091, %v1091
      %v2060 = vmul.f32 %v1092, %v1092
      %v2061 = vmul.f32 %v1093, %v1093
      %v2062 = vmul.f32 %v1094, %v1094
      %v2063 = vmul.f32 %v1095, %v1095
      %v2064 = vmul.f32 %v1096, %v1096
      %v2065 = vmul.f32 %v1097, %v1097
      %v2066 = vmul.f32 %v1098, %v1098
      %v2067 = vmul.f32 %v1099, %v1099
      %v2068 = vmul.f32 %v1100, %v1100
      %v2069 = vmul.f32 %v1101, %v1101
      %v2070 = vmul.f32 %v1102, %v1102
      %v2071 = vmul.f32 %v1103, %v1103
      %v2072 = vmul.f32 %v1104, %v1104
      %v2073 = vmul.f32 %v1105, %v1105
      %v2074 = vmul.f32 %v1106, %v1106
      %v2075 = vmul.f32 %v1107, %v1107
      %v2076 = vmul.f32 %v1108, %v1108
      %v2077 = vmul.f32 %v1109, %v1109
      %v2078 = vmul.f32 %v1110, %v1110
      %v2079 = vmul.f32 %v1111, %v1111
      %v2080 = vmul.f32 %v1112, %v1112
      %v2081 = vmul.f32 %v1113, %v1113
      %v2082 = vmul.f32 %v1114, %v1114
      %v2083 = vmul.f32 %v1115, %v1115
      %v2084 = vmul.f32 %v1116, %v1116
      %v2085 = vmul.f32 %v1117, %v1117
      %v2086 = vmul.f32 %v1118, %v1118
      %v2087 = vmul.f32 %v1119, %v1119
      %v2088 = vmul.f32 %v1120, %v1120
      %v2089 = vmul.f32 %v1121, %v1121
      %v2090 = vmul.f32 %v1122, %v1122
      %v2091 = vmul.f32 %v1123, %v1123
      %v2092 = vmul.f32 %v1124, %v1124
      %v2093 = vmul.f32 %v1125, %v1125
      %v2094 = vmul.f32 %v1126, %v1126
      %v2095 = vmul.f32 %v1127, %v1127
      %v2096 = vmul.f32 %v1128, %v1128
      %v2097 = vmul.f32 %v1129, %v1129
      %v2098 = vmul.f32 %v1130, %v1130
      %v2099 = vmul.f32 %v1131, %v1131
      %v2100 = vmul.f32 %v1132, %v1132
      %v2101 = vmul.f32 %v1133, %v1133
      %v2102 = vmul.f32 %v1134, %v1134
      %v2103 = vmul.f32 %v1135, %v1135
      %v2104 = vmul.f32 %v1136, %v1136
      %v2105 = vmul.f32 %v1137, %v1137
      %v2106 = vmul.f32 %v1138, %v1138
      %v2107 = vmul.f32 %v1139, %v1139
      %v2108 = vmul.f32 %v1140, %v1140
      %v2109 = vmul.f32 %v1141, %v1141
      %v2110 = vmul.f32 %v1142, %v1142
      %v2111 = vmul.f32 %v1143, %v1143
      %v2112 = vmul.f32 %v1144, %v1144
      %v2113 = vmul.f32 %v1145, %v1145
      %v2114 = vmul.f32 %v1146, %v1146
      %v2115 = vmul.f32 %v1147, %v1147
      %v2116 = vmul.f32 %v1148, %v1148
      %v2117 = vmul.f32 %v1149, %v1149
      %v2118 = vmul.f32 %v1150, %v1150
      %v2119 = vmul.f32 %v1151, %v1151
      %v2120 = vmul.f32 %v1152, %v1152
      %v2121 = vmul.f32 %v1153, %v1153
      %v2122 = vmul.f32 %v1154, %v1154
      %v2123 = vmul.f32 %v1155, %v1155
      %v2124 = vmul.f32 %v1156, %v1156
      %v2125 = vmul.f32 %v1157, %v1157
      %v2126 = vmul.f32 %v1158, %v1158
      %v2127 = vmul.f32 %v1159, %v1159
      %v2128 = vmul.f32 %v1160, %v1160
      %v2129 = vmul.f32 %v1161, %v1161
      %v2130 = vmul.f32 %v1162, %v1162
      %v2131 = vmul.f32 %v1163, %v1163
      %v2132 = vmul.f32 %v1164, %v1164
      %v2133 = vmul.f32 %v1165, %v1165
      %v2134 = vmul.f32 %v1166, %v1166
      %v2135 = vmul.f32 %v1167, %v1167
      %v2136 = vmul.f32 %v1168, %v1168
      %v2137 = vmul.f32 %v1169, %v1169
      %v2138 = vmul.f32 %v1170, %v1170
      %v2139 = vmul.f32 %v1171, %v1171
      %v2140 = vmul.f32 %v1172, %v1172
      %v2141 = vmul.f32 %v1173, %v1173
      %v2142 = vmul.f32 %v1174, %v1174
      %v2143 = vmul.f32 %v1175, %v1175
      %v2144 = vmul.f32 %v1176, %v1176
      %v2145 = vmul.f32 %v1177, %v1177
      %v2146 = vmul.f32 %v1178, %v1178
      %v2147 = vmul.f32 %v1179, %v1179
      %v2148 = vmul.f32 %v1180, %v1180
      %v2149 = vmul.f32 %v1181, %v1181
      %v2150 = vmul.f32 %v1182, %v1182
      %v2151 = vmul.f32 %v1183, %v1183
      %v2152 = vmul.f32 %v1184, %v1184
      %v2153 = vmul.f32 %v1185, %v1185
      %v2154 = vmul.f32 %v1186, %v1186
      %v2155 = vmul.f32 %v1187, %v1187
      %v2156 = vmul.f32 %v1188, %v1188
      %v2157 = vmul.f32 %v1189, %v1189
      %v2158 = vmul.f32 %v1190, %v1190
      %v2159 = vmul.f32 %v1191, %v1191
      %v2160 = vmul.f32 %v1192, %v1192
      %v2161 = vmul.f32 %v1193, %v1193
      %v2162 = vmul.f32 %v1194, %v1194
      %v2163 = vmul.f32 %v1195, %v1195
      %v2164 = vmul.f32 %v1196, %v1196
      %v2165 = vmul.f32 %v1197, %v1197
      %v2166 = vmul.f32 %v1198, %v1198
      %v2167 = vmul.f32 %v1199, %v1199
      %v2168 = vmul.f32 %v1200, %v1200
      %v2169 = vmul.f32 %v1201, %v1201
      %v2170 = vmul.f32 %v1202, %v1202
      %v2171 = vmul.f32 %v1203, %v1203
      %v2172 = vmul.f32 %v1204, %v1204
      %v2173 = vmul.f32 %v1205, %v1205
      %v2174 = vmul.f32 %v1206, %v1206
      %v2175 = vmul.f32 %v1207, %v1207
      %v2176 = vmul.f32 %v1208, %v1208
      %v2177 = vmul.f32 %v1209, %v1209
      %v2178 = vmul.f32 %v1210, %v1210
      %v2179 = vmul.f32 %v1211, %v1211
      %v2180 = vmul.f32 %v1212, %v1212
      %v2181 = vmul.f32 %v1213, %v1213
      %v2182 = vmul.f32 %v1214, %v1214
      %v2183 = vmul.f32 %v1215, %v1215
      %v2184 = vmul.f32 %v1216, %v1216
      %v2185 = vmul.f32 %v1217, %v1217
      %v2186 = vmul.f32 %v1218, %v1218
      %v2187 = vmul.f32 %v1219, %v1219
      %v2188 = vmul.f32 %v1220, %v1220
      %v2189 = vmul.f32 %v1221, %v1221
      %v2190 = vmul.f32 %v1222, %v1222
      %v2191 = vmul.f32 %v1223, %v1223
      %v2192 = vmul.f32 %v1224, %v1224
      %v2193 = vmul.f32 %v1225, %v1225
      %v2194 = vmul.f32 %v1226, %v1226
      %v2195 = vmul.f32 %v1227, %v1227
      %v2196 = vmul.f32 %v1228, %v1228
      %v2197 = vmul.f32 %v1229, %v1229
      %v2198 = vmul.f32 %v1230, %v1230
      %v2199 = vmul.f32 %v1231, %v1231
      %v2200 = vmul.f32 %v1232, %v1232
      %v2201 = vmul.f32 %v1233, %v1233
      %v2202 = vmul.f32 %v1234, %v1234
      %v2203 = vmul.f32 %v1235, %v1235
      %v2204 = vmul.f32 %v1236, %v1236
      %v2205 = vmul.f32 %v1237, %v1237
      %v2206 = vmul.f32 %v1238, %v1238
      %v2207 = vmul.f32 %v1239, %v1239
      %v2208 = vmul.f32 %v1240, %v1240
      %v2209 = vmul.f32 %v1241, %v1241
      %v2210 = vadd.f32 %v1698, %v1954
      %v2211 = vadd.f32 %v1699, %v1955
      %v2212 = vadd.f32 %v1700, %v1956
      %v2213 = vadd.f32 %v1701, %v1957
      %v2214 = vadd.f32 %v1702, %v1958
      %v2215 = vadd.f32 %v1703, %v1959
      %v2216 = vadd.f32 %v1704, %v1960
      %v2217 = vadd.f32 %v1705, %v1961
      %v2218 = vadd.f32 %v1706, %v1962
      %v2219 = vadd.f32 %v1707, %v1963
      %v2220 = vadd.f32 %v1708, %v1964
      %v2221 = vadd.f32 %v1709, %v1965
      %v2222 = vadd.f32 %v1710, %v1966
      %v2223 = vadd.f32 %v1711, %v1967
      %v2224 = vadd.f32 %v1712, %v1968
      %v2225 = vadd.f32 %v1713, %v1969
      %v2226 = vadd.f32 %v1714, %v1970
      %v2227 = vadd.f32 %v1715, %v1971
      %v2228 = vadd.f32 %v1716, %v1972
      %v2229 = vadd.f32 %v1717, %v1973
      %v2230 = vadd.f32 %v1718, %v1974
      %v2231 = vadd.f32 %v1719, %v1975
      %v2232 = vadd.f32 %v1720, %v1976
      %v2233 = vadd.f32 %v1721, %v1977
      %v2234 = vadd.f32 %v1722, %v1978
      %v2235 = vadd.f32 %v1723, %v1979
      %v2236 = vadd.f32 %v1724, %v1980
      %v2237 = vadd.f32 %v1725, %v1981
      %v2238 = vadd.f32 %v1726, %v1982
      %v2239 = vadd.f32 %v1727, %v1983
      %v2240 = vadd.f32 %v1728, %v1984
      %v2241 = vadd.f32 %v1729, %v1985
      %v2242 = vadd.f32 %v1730, %v1986
      %v2243 = vadd.f32 %v1731, %v1987
      %v2244 = vadd.f32 %v1732, %v1988
      %v2245 = vadd.f32 %v1733, %v1989
      %v2246 = vadd.f32 %v1734, %v1990
      %v2247 = vadd.f32 %v1735, %v1991
      %v2248 = vadd.f32 %v1736, %v1992
      %v2249 = vadd.f32 %v1737, %v1993
      %v2250 = vadd.f32 %v1738, %v1994
      %v2251 = vadd.f32 %v1739, %v1995
      %v2252 = vadd.f32 %v1740, %v1996
      %v2253 = vadd.f32 %v1741, %v1997
      %v2254 = vadd.f32 %v1742, %v1998
      %v2255 = vadd.f32 %v1743, %v1999
      %v2256 = vadd.f32 %v1744, %v2000
      %v2257 = vadd.f32 %v1745, %v2001
      %v2258 = vadd.f32 %v1746, %v2002
      %v2259 = vadd.f32 %v1747, %v2003
      %v2260 = vadd.f32 %v1748, %v2004
      %v2261 = vadd.f32 %v1749, %v2005
      %v2262 = vadd.f32 %v1750, %v2006
      %v2263 = vadd.f32 %v1751, %v2007
      %v2264 = vadd.f32 %v1752, %v2008
      %v2265 = vadd.f32 %v1753, %v2009
      %v2266 = vadd.f32 %v1754, %v2010
      %v2267 = vadd.f32 %v1755, %v2011
      %v2268 = vadd.f32 %v1756, %v2012
      %v2269 = vadd.f32 %v1757, %v2013
      %v2270 = vadd.f32 %v1758, %v2014
      %v2271 = vadd.f32 %v1759, %v2015
      %v2272 = vadd.f32 %v1760, %v2016
      %v2273 = vadd.f32 %v1761, %v2017
      %v2274 = vadd.f32 %v1762, %v2018
      %v2275 = vadd.f32 %v1763, %v2019
      %v2276 = vadd.f32 %v1764, %v2020
      %v2277 = vadd.f32 %v1765, %v2021
      %v2278 = vadd.f32 %v1766, %v2022
      %v2279 = vadd.f32 %v1767, %v2023
      %v2280 = vadd.f32 %v1768, %v2024
      %v2281 = vadd.f32 %v1769, %v2025
      %v2282 = vadd.f32 %v1770, %v2026
      %v2283 = vadd.f32 %v1771, %v2027
      %v2284 = vadd.f32 %v1772, %v2028
      %v2285 = vadd.f32 %v1773, %v2029
      %v2286 = vadd.f32 %v1774, %v2030
      %v2287 = vadd.f32 %v1775, %v2031
      %v2288 = vadd.f32 %v1776, %v2032
      %v2289 = vadd.f32 %v1777, %v2033
      %v2290 = vadd.f32 %v1778, %v2034
      %v2291 = vadd.f32 %v1779, %v2035
      %v2292 = vadd.f32 %v1780, %v2036
      %v2293 = vadd.f32 %v1781, %v2037
      %v2294 = vadd.f32 %v1782, %v2038
      %v2295 = vadd.f32 %v1783, %v2039
      %v2296 = vadd.f32 %v1784, %v2040
      %v2297 = vadd.f32 %v1785, %v2041
      %v2298 = vadd.f32 %v1786, %v2042
      %v2299 = vadd.f32 %v1787, %v2043
      %v2300 = vadd.f32 %v1788, %v2044
      %v2301 = vadd.f32 %v1789, %v2045
      %v2302 = vadd.f32 %v1790, %v2046
      %v2303 = vadd.f32 %v1791, %v2047
      %v2304 = vadd.f32 %v1792, %v2048
      %v2305 = vadd.f32 %v1793, %v2049
      %v2306 = vadd.f32 %v1794, %v2050
      %v2307 = vadd.f32 %v1795, %v2051
      %v2308 = vadd.f32 %v1796, %v2052
      %v2309 = vadd.f32 %v1797, %v2053
      %v2310 = vadd.f32 %v1798, %v2054
      %v2311 = vadd.f32 %v1799, %v2055
      %v2312 = vadd.f32 %v1800, %v2056
      %v2313 = vadd.f32 %v1801, %v2057
      %v2314 = vadd.f32 %v1802, %v2058
      %v2315 = vadd.f32 %v1803, %v2059
      %v2316 = vadd.f32 %v1804, %v2060
      %v2317 = vadd.f32 %v1805, %v2061
      %v2318 = vadd.f32 %v1806, %v2062
      %v2319 = vadd.f32 %v1807, %v2063
      %v2320 = vadd.f32 %v1808, %v2064
      %v2321 = vadd.f32 %v1809, %v2065
      %v2322 = vadd.f32 %v1810, %v2066
      %v2323 = vadd.f32 %v1811, %v2067
      %v2324 = vadd.f32 %v1812, %v2068
      %v2325 = vadd.f32 %v1813, %v2069
      %v2326 = vadd.f32 %v1814, %v2070
      %v2327 = vadd.f32 %v1815, %v2071
      %v2328 = vadd.f32 %v1816, %v2072
      %v2329 = vadd.f32 %v1817, %v2073
      %v2330 = vadd.f32 %v1818, %v2074
      %v2331 = vadd.f32 %v1819, %v2075
      %v2332 = vadd.f32 %v1820, %v2076
      %v2333 = vadd.f32 %v1821, %v2077
      %v2334 = vadd.f32 %v1822, %v2078
      %v2335 = vadd.f32 %v1823, %v2079
      %v2336 = vadd.f32 %v1824, %v2080
      %v2337 = vadd.f32 %v1825, %v2081
      %v2338 = vadd.f32 %v1826, %v2082
      %v2339 = vadd.f32 %v1827, %v2083
      %v2340 = vadd.f32 %v1828, %v2084
      %v2341 = vadd.f32 %v1829, %v2085
      %v2342 = vadd.f32 %v1830, %v2086
      %v2343 = vadd.f32 %v1831, %v2087
      %v2344 = vadd.f32 %v1832, %v2088
      %v2345 = vadd.f32 %v1833, %v2089
      %v2346 = vadd.f32 %v1834, %v2090
      %v2347 = vadd.f32 %v1835, %v2091
      %v2348 = vadd.f32 %v1836, %v2092
      %v2349 = vadd.f32 %v1837, %v2093
      %v2350 = vadd.f32 %v1838, %v2094
      %v2351 = vadd.f32 %v1839, %v2095
      %v2352 = vadd.f32 %v1840, %v2096
      %v2353 = vadd.f32 %v1841, %v2097
      %v2354 = vadd.f32 %v1842, %v2098
      %v2355 = vadd.f32 %v1843, %v2099
      %v2356 = vadd.f32 %v1844, %v2100
      %v2357 = vadd.f32 %v1845, %v2101
      %v2358 = vadd.f32 %v1846, %v2102
      %v2359 = vadd.f32 %v1847, %v2103
      %v2360 = vadd.f32 %v1848, %v2104
      %v2361 = vadd.f32 %v1849, %v2105
      %v2362 = vadd.f32 %v1850, %v2106
      %v2363 = vadd.f32 %v1851, %v2107
      %v2364 = vadd.f32 %v1852, %v2108
      %v2365 = vadd.f32 %v1853, %v2109
      %v2366 = vadd.f32 %v1854, %v2110
      %v2367 = vadd.f32 %v1855, %v2111
      %v2368 = vadd.f32 %v1856, %v2112
      %v2369 = vadd.f32 %v1857, %v2113
      %v2370 = vadd.f32 %v1858, %v2114
      %v2371 = vadd.f32 %v1859, %v2115
      %v2372 = vadd.f32 %v1860, %v2116
      %v2373 = vadd.f32 %v1861, %v2117
      %v2374 = vadd.f32 %v1862, %v2118
      %v2375 = vadd.f32 %v1863, %v2119
      %v2376 = vadd.f32 %v1864, %v2120
      %v2377 = vadd.f32 %v1865, %v2121
      %v2378 = vadd.f32 %v1866, %v2122
      %v2379 = vadd.f32 %v1867, %v2123
      %v2380 = vadd.f32 %v1868, %v2124
      %v2381 = vadd.f32 %v1869, %v2125
      %v2382 = vadd.f32 %v1870, %v2126
      %v2383 = vadd.f32 %v1871, %v2127
      %v2384 = vadd.f32 %v1872, %v2128
      %v2385 = vadd.f32 %v1873, %v2129
      %v2386 = vadd.f32 %v1874, %v2130
      %v2387 = vadd.f32 %v1875, %v2131
      %v2388 = vadd.f32 %v1876, %v2132
      %v2389 = vadd.f32 %v1877, %v2133
      %v2390 = vadd.f32 %v1878, %v2134
      %v2391 = vadd.f32 %v1879, %v2135
      %v2392 = vadd.f32 %v1880, %v2136
      %v2393 = vadd.f32 %v1881, %v2137
      %v2394 = vadd.f32 %v1882, %v2138
      %v2395 = vadd.f32 %v1883, %v2139
      %v2396 = vadd.f32 %v1884, %v2140
      %v2397 = vadd.f32 %v1885, %v2141
      %v2398 = vadd.f32 %v1886, %v2142
      %v2399 = vadd.f32 %v1887, %v2143
      %v2400 = vadd.f32 %v1888, %v2144
      %v2401 = vadd.f32 %v1889, %v2145
      %v2402 = vadd.f32 %v1890, %v2146
      %v2403 = vadd.f32 %v1891, %v2147
      %v2404 = vadd.f32 %v1892, %v2148
      %v2405 = vadd.f32 %v1893, %v2149
      %v2406 = vadd.f32 %v1894, %v2150
      %v2407 = vadd.f32 %v1895, %v2151
      %v2408 = vadd.f32 %v1896, %v2152
      %v2409 = vadd.f32 %v1897, %v2153
      %v2410 = vadd.f32 %v1898, %v2154
      %v2411 = vadd.f32 %v1899, %v2155
      %v2412 = vadd.f32 %v1900, %v2156
      %v2413 = vadd.f32 %v1901, %v2157
      %v2414 = vadd.f32 %v1902, %v2158
      %v2415 = vadd.f32 %v1903, %v2159
      %v2416 = vadd.f32 %v1904, %v2160
      %v2417 = vadd.f32 %v1905, %v2161
      %v2418 = vadd.f32 %v1906, %v2162
      %v2419 = vadd.f32 %v1907, %v2163
      %v2420 = vadd.f32 %v1908, %v2164
      %v2421 = vadd.f32 %v1909, %v2165
      %v2422 = vadd.f32 %v1910, %v2166
      %v2423 = vadd.f32 %v1911, %v2167
      %v2424 = vadd.f32 %v1912, %v2168
      %v2425 = vadd.f32 %v1913, %v2169
      %v2426 = vadd.f32 %v1914, %v2170
      %v2427 = vadd.f32 %v1915, %v2171
      %v2428 = vadd.f32 %v1916, %v2172
      %v2429 = vadd.f32 %v1917, %v2173
      %v2430 = vadd.f32 %v1918, %v2174
      %v2431 = vadd.f32 %v1919, %v2175
      %v2432 = vadd.f32 %v1920, %v2176
      %v2433 = vadd.f32 %v1921, %v2177
      %v2434 = vadd.f32 %v1922, %v2178
      %v2435 = vadd.f32 %v1923, %v2179
      %v2436 = vadd.f32 %v1924, %v2180
      %v2437 = vadd.f32 %v1925, %v2181
      %v2438 = vadd.f32 %v1926, %v2182
      %v2439 = vadd.f32 %v1927, %v2183
      %v2440 = vadd.f32 %v1928, %v2184
      %v2441 = vadd.f32 %v1929, %v2185
      %v2442 = vadd.f32 %v1930, %v2186
      %v2443 = vadd.f32 %v1931, %v2187
      %v2444 = vadd.f32 %v1932, %v2188
      %v2445 = vadd.f32 %v1933, %v2189
      %v2446 = vadd.f32 %v1934, %v2190
      %v2447 = vadd.f32 %v1935, %v2191
      %v2448 = vadd.f32 %v1936, %v2192
      %v2449 = vadd.f32 %v1937, %v2193
      %v2450 = vadd.f32 %v1938, %v2194
      %v2451 = vadd.f32 %v1939, %v2195
      %v2452 = vadd.f32 %v1940, %v2196
      %v2453 = vadd.f32 %v1941, %v2197
      %v2454 = vadd.f32 %v1942, %v2198
      %v2455 = vadd.f32 %v1943, %v2199
      %v2456 = vadd.f32 %v1944, %v2200
      %v2457 = vadd.f32 %v1945, %v2201
      %v2458 = vadd.f32 %v1946, %v2202
      %v2459 = vadd.f32 %v1947, %v2203
      %v2460 = vadd.f32 %v1948, %v2204
      %v2461 = vadd.f32 %v1949, %v2205
      %v2462 = vadd.f32 %v1950, %v2206
      %v2463 = vadd.f32 %v1951, %v2207
      %v2464 = vadd.f32 %v1952, %v2208
      %v2465 = vadd.f32 %v1953, %v2209
      %v2466 = vmul.f32 %v1442, %v1442
      %v2467 = vmul.f32 %v1443, %v1443
      %v2468 = vmul.f32 %v1444, %v1444
      %v2469 = vmul.f32 %v1445, %v1445
      %v2470 = vmul.f32 %v1446, %v1446
      %v2471 = vmul.f32 %v1447, %v1447
      %v2472 = vmul.f32 %v1448, %v1448
      %v2473 = vmul.f32 %v1449, %v1449
      %v2474 = vmul.f32 %v1450, %v1450
      %v2475 = vmul.f32 %v1451, %v1451
      %v2476 = vmul.f32 %v1452, %v1452
      %v2477 = vmul.f32 %v1453, %v1453
      %v2478 = vmul.f32 %v1454, %v1454
      %v2479 = vmul.f32 %v1455, %v1455
      %v2480 = vmul.f32 %v1456, %v1456
      %v2481 = vmul.f32 %v1457, %v1457
      %v2482 = vmul.f32 %v1458, %v1458
      %v2483 = vmul.f32 %v1459, %v1459
      %v2484 = vmul.f32 %v1460, %v1460
      %v2485 = vmul.f32 %v1461, %v1461
      %v2486 = vmul.f32 %v1462, %v1462
      %v2487 = vmul.f32 %v1463, %v1463
      %v2488 = vmul.f32 %v1464, %v1464
      %v2489 = vmul.f32 %v1465, %v1465
      %v2490 = vmul.f32 %v1466, %v1466
      %v2491 = vmul.f32 %v1467, %v1467
      %v2492 = vmul.f32 %v1468, %v1468
      %v2493 = vmul.f32 %v1469, %v1469
      %v2494 = vmul.f32 %v1470, %v1470
      %v2495 = vmul.f32 %v1471, %v1471
      %v2496 = vmul.f32 %v1472, %v1472
      %v2497 = vmul.f32 %v1473, %v1473
      %v2498 = vmul.f32 %v1474, %v1474
      %v2499 = vmul.f32 %v1475, %v1475
      %v2500 = vmul.f32 %v1476, %v1476
      %v2501 = vmul.f32 %v1477, %v1477
      %v2502 = vmul.f32 %v1478, %v1478
      %v2503 = vmul.f32 %v1479, %v1479
      %v2504 = vmul.f32 %v1480, %v1480
      %v2505 = vmul.f32 %v1481, %v1481
      %v2506 = vmul.f32 %v1482, %v1482
      %v2507 = vmul.f32 %v1483, %v1483
      %v2508 = vmul.f32 %v1484, %v1484
      %v2509 = vmul.f32 %v1485, %v1485
      %v2510 = vmul.f32 %v1486, %v1486
      %v2511 = vmul.f32 %v1487, %v1487
      %v2512 = vmul.f32 %v1488, %v1488
      %v2513 = vmul.f32 %v1489, %v1489
      %v2514 = vmul.f32 %v1490, %v1490
      %v2515 = vmul.f32 %v1491, %v1491
      %v2516 = vmul.f32 %v1492, %v1492
      %v2517 = vmul.f32 %v1493, %v1493
      %v2518 = vmul.f32 %v1494, %v1494
      %v2519 = vmul.f32 %v1495, %v1495
      %v2520 = vmul.f32 %v1496, %v1496
      %v2521 = vmul.f32 %v1497, %v1497
      %v2522 = vmul.f32 %v1498, %v1498
      %v2523 = vmul.f32 %v1499, %v1499
      %v2524 = vmul.f32 %v1500, %v1500
      %v2525 = vmul.f32 %v1501, %v1501
      %v2526 = vmul.f32 %v1502, %v1502
      %v2527 = vmul.f32 %v1503, %v1503
      %v2528 = vmul.f32 %v1504, %v1504
      %v2529 = vmul.f32 %v1505, %v1505
      %v2530 = vmul.f32 %v1506, %v1506
      %v2531 = vmul.f32 %v1507, %v1507
      %v2532 = vmul.f32 %v1508, %v1508
      %v2533 = vmul.f32 %v1509, %v1509
      %v2534 = vmul.f32 %v1510, %v1510
      %v2535 = vmul.f32 %v1511, %v1511
      %v2536 = vmul.f32 %v1512, %v1512
      %v2537 = vmul.f32 %v1513, %v1513
      %v2538 = vmul.f32 %v1514, %v1514
      %v2539 = vmul.f32 %v1515, %v1515
      %v2540 = vmul.f32 %v1516, %v1516
      %v2541 = vmul.f32 %v1517, %v1517
      %v2542 = vmul.f32 %v1518, %v1518
      %v2543 = vmul.f32 %v1519, %v1519
      %v2544 = vmul.f32 %v1520, %v1520
      %v2545 = vmul.f32 %v1521, %v1521
      %v2546 = vmul.f32 %v1522, %v1522
      %v2547 = vmul.f32 %v1523, %v1523
      %v2548 = vmul.f32 %v1524, %v1524
      %v2549 = vmul.f32 %v1525, %v1525
      %v2550 = vmul.f32 %v1526, %v1526
      %v2551 = vmul.f32 %v1527, %v1527
      %v2552 = vmul.f32 %v1528, %v1528
      %v2553 = vmul.f32 %v1529, %v1529
      %v2554 = vmul.f32 %v1530, %v1530
      %v2555 = vmul.f32 %v1531, %v1531
      %v2556 = vmul.f32 %v1532, %v1532
      %v2557 = vmul.f32 %v1533, %v1533
      %v2558 = vmul.f32 %v1534, %v1534
      %v2559 = vmul.f32 %v1535, %v1535
      %v2560 = vmul.f32 %v1536, %v1536
      %v2561 = vmul.f32 %v1537, %v1537
      %v2562 = vmul.f32 %v1538, %v1538
      %v2563 = vmul.f32 %v1539, %v1539
      %v2564 = vmul.f32 %v1540, %v1540
      %v2565 = vmul.f32 %v1541, %v1541
      %v2566 = vmul.f32 %v1542, %v1542
      %v2567 = vmul.f32 %v1543, %v1543
      %v2568 = vmul.f32 %v1544, %v1544
      %v2569 = vmul.f32 %v1545, %v1545
      %v2570 = vmul.f32 %v1546, %v1546
      %v2571 = vmul.f32 %v1547, %v1547
      %v2572 = vmul.f32 %v1548, %v1548
      %v2573 = vmul.f32 %v1549, %v1549
      %v2574 = vmul.f32 %v1550, %v1550
      %v2575 = vmul.f32 %v1551, %v1551
      %v2576 = vmul.f32 %v1552, %v1552
      %v2577 = vmul.f32 %v1553, %v1553
      %v2578 = vmul.f32 %v1554, %v1554
      %v2579 = vmul.f32 %v1555, %v1555
      %v2580 = vmul.f32 %v1556, %v1556
      %v2581 = vmul.f32 %v1557, %v1557
      %v2582 = vmul.f32 %v1558, %v1558
      %v2583 = vmul.f32 %v1559, %v1559
      %v2584 = vmul.f32 %v1560, %v1560
      %v2585 = vmul.f32 %v1561, %v1561
      %v2586 = vmul.f32 %v1562, %v1562
      %v2587 = vmul.f32 %v1563, %v1563
      %v2588 = vmul.f32 %v1564, %v1564
      %v2589 = vmul.f32 %v1565, %v1565
      %v2590 = vmul.f32 %v1566, %v1566
      %v2591 = vmul.f32 %v1567, %v1567
      %v2592 = vmul.f32 %v1568, %v1568
      %v2593 = vmul.f32 %v1569, %v1569
      %v2594 = vmul.f32 %v1570, %v1570
      %v2595 = vmul.f32 %v1571, %v1571
      %v2596 = vmul.f32 %v1572, %v1572
      %v2597 = vmul.f32 %v1573, %v1573
      %v2598 = vmul.f32 %v1574, %v1574
      %v2599 = vmul.f32 %v1575, %v1575
      %v2600 = vmul.f32 %v1576, %v1576
      %v2601 = vmul.f32 %v1577, %v1577
      %v2602 = vmul.f32 %v1578, %v1578
      %v2603 = vmul.f32 %v1579, %v1579
      %v2604 = vmul.f32 %v1580, %v1580
      %v2605 = vmul.f32 %v1581, %v1581
      %v2606 = vmul.f32 %v1582, %v1582
      %v2607 = vmul.f32 %v1583, %v1583
      %v2608 = vmul.f32 %v1584, %v1584
      %v2609 = vmul.f32 %v1585, %v1585
      %v2610 = vmul.f32 %v1586, %v1586
      %v2611 = vmul.f32 %v1587, %v1587
      %v2612 = vmul.f32 %v1588, %v1588
      %v2613 = vmul.f32 %v1589, %v1589
      %v2614 = vmul.f32 %v1590, %v1590
      %v2615 = vmul.f32 %v1591, %v1591
      %v2616 = vmul.f32 %v1592, %v1592
      %v2617 = vmul.f32 %v1593, %v1593
      %v2618 = vmul.f32 %v1594, %v1594
      %v2619 = vmul.f32 %v1595, %v1595
      %v2620 = vmul.f32 %v1596, %v1596
      %v2621 = vmul.f32 %v1597, %v1597
      %v2622 = vmul.f32 %v1598, %v1598
      %v2623 = vmul.f32 %v1599, %v1599
      %v2624 = vmul.f32 %v1600, %v1600
      %v2625 = vmul.f32 %v1601, %v1601
      %v2626 = vmul.f32 %v1602, %v1602
      %v2627 = vmul.f32 %v1603, %v1603
      %v2628 = vmul.f32 %v1604, %v1604
      %v2629 = vmul.f32 %v1605, %v1605
      %v2630 = vmul.f32 %v1606, %v1606
      %v2631 = vmul.f32 %v1607, %v1607
      %v2632 = vmul.f32 %v1608, %v1608
      %v2633 = vmul.f32 %v1609, %v1609
      %v2634 = vmul.f32 %v1610, %v1610
      %v2635 = vmul.f32 %v1611, %v1611
      %v2636 = vmul.f32 %v1612, %v1612
      %v2637 = vmul.f32 %v1613, %v1613
      %v2638 = vmul.f32 %v1614, %v1614
      %v2639 = vmul.f32 %v1615, %v1615
      %v2640 = vmul.f32 %v1616, %v1616
      %v2641 = vmul.f32 %v1617, %v1617
      %v2642 = vmul.f32 %v1618, %v1618
      %v2643 = vmul.f32 %v1619, %v1619
      %v2644 = vmul.f32 %v1620, %v1620
      %v2645 = vmul.f32 %v1621, %v1621
      %v2646 = vmul.f32 %v1622, %v1622
      %v2647 = vmul.f32 %v1623, %v1623
      %v2648 = vmul.f32 %v1624, %v1624
      %v2649 = vmul.f32 %v1625, %v1625
      %v2650 = vmul.f32 %v1626, %v1626
      %v2651 = vmul.f32 %v1627, %v1627
      %v2652 = vmul.f32 %v1628, %v1628
      %v2653 = vmul.f32 %v1629, %v1629
      %v2654 = vmul.f32 %v1630, %v1630
      %v2655 = vmul.f32 %v1631, %v1631
      %v2656 = vmul.f32 %v1632, %v1632
      %v2657 = vmul.f32 %v1633, %v1633
      %v2658 = vmul.f32 %v1634, %v1634
      %v2659 = vmul.f32 %v1635, %v1635
      %v2660 = vmul.f32 %v1636, %v1636
      %v2661 = vmul.f32 %v1637, %v1637
      %v2662 = vmul.f32 %v1638, %v1638
      %v2663 = vmul.f32 %v1639, %v1639
      %v2664 = vmul.f32 %v1640, %v1640
      %v2665 = vmul.f32 %v1641, %v1641
      %v2666 = vmul.f32 %v1642, %v1642
      %v2667 = vmul.f32 %v1643, %v1643
      %v2668 = vmul.f32 %v1644, %v1644
      %v2669 = vmul.f32 %v1645, %v1645
      %v2670 = vmul.f32 %v1646, %v1646
      %v2671 = vmul.f32 %v1647, %v1647
      %v2672 = vmul.f32 %v1648, %v1648
      %v2673 = vmul.f32 %v1649, %v1649
      %v2674 = vmul.f32 %v1650, %v1650
      %v2675 = vmul.f32 %v1651, %v1651
      %v2676 = vmul.f32 %v1652, %v1652
      %v2677 = vmul.f32 %v1653, %v1653
      %v2678 = vmul.f32 %v1654, %v1654
      %v2679 = vmul.f32 %v1655, %v1655
      %v2680 = vmul.f32 %v1656, %v1656
      %v2681 = vmul.f32 %v1657, %v1657
      %v2682 = vmul.f32 %v1658, %v1658
      %v2683 = vmul.f32 %v1659, %v1659
      %v2684 = vmul.f32 %v1660, %v1660
      %v2685 = vmul.f32 %v1661, %v1661
      %v2686 = vmul.f32 %v1662, %v1662
      %v2687 = vmul.f32 %v1663, %v1663
      %v2688 = vmul.f32 %v1664, %v1664
      %v2689 = vmul.f32 %v1665, %v1665
      %v2690 = vmul.f32 %v1666, %v1666
      %v2691 = vmul.f32 %v1667, %v1667
      %v2692 = vmul.f32 %v1668, %v1668
      %v2693 = vmul.f32 %v1669, %v1669
      %v2694 = vmul.f32 %v1670, %v1670
      %v2695 = vmul.f32 %v1671, %v1671
      %v2696 = vmul.f32 %v1672, %v1672
      %v2697 = vmul.f32 %v1673, %v1673
      %v2698 = vmul.f32 %v1674, %v1674
      %v2699 = vmul.f32 %v1675, %v1675
      %v2700 = vmul.f32 %v1676, %v1676
      %v2701 = vmul.f32 %v1677, %v1677
      %v2702 = vmul.f32 %v1678, %v1678
      %v2703 = vmul.f32 %v1679, %v1679
      %v2704 = vmul.f32 %v1680, %v1680
      %v2705 = vmul.f32 %v1681, %v1681
      %v2706 = vmul.f32 %v1682, %v1682
      %v2707 = vmul.f32 %v1683, %v1683
      %v2708 = vmul.f32 %v1684, %v1684
      %v2709 = vmul.f32 %v1685, %v1685
      %v2710 = vmul.f32 %v1686, %v1686
      %v2711 = vmul.f32 %v1687, %v1687
      %v2712 = vmul.f32 %v1688, %v1688
      %v2713 = vmul.f32 %v1689, %v1689
      %v2714 = vmul.f32 %v1690, %v1690
      %v2715 = vmul.f32 %v1691, %v1691
      %v2716 = vmul.f32 %v1692, %v1692
      %v2717 = vmul.f32 %v1693, %v1693
      %v2718 = vmul.f32 %v1694, %v1694
      %v2719 = vmul.f32 %v1695, %v1695
      %v2720 = vmul.f32 %v1696, %v1696
      %v2721 = vmul.f32 %v1697, %v1697
      %v2722 = vadd.f32 %v2210, %v2466
      %v2723 = vadd.f32 %v2211, %v2467
      %v2724 = vadd.f32 %v2212, %v2468
      %v2725 = vadd.f32 %v2213, %v2469
      %v2726 = vadd.f32 %v2214, %v2470
      %v2727 = vadd.f32 %v2215, %v2471
      %v2728 = vadd.f32 %v2216, %v2472
      %v2729 = vadd.f32 %v2217, %v2473
      %v2730 = vadd.f32 %v2218, %v2474
      %v2731 = vadd.f32 %v2219, %v2475
      %v2732 = vadd.f32 %v2220, %v2476
      %v2733 = vadd.f32 %v2221, %v2477
      %v2734 = vadd.f32 %v2222, %v2478
      %v2735 = vadd.f32 %v2223, %v2479
      %v2736 = vadd.f32 %v2224, %v2480
      %v2737 = vadd.f32 %v2225, %v2481
      %v2738 = vadd.f32 %v2226, %v2482
      %v2739 = vadd.f32 %v2227, %v2483
      %v2740 = vadd.f32 %v2228, %v2484
      %v2741 = vadd.f32 %v2229, %v2485
      %v2742 = vadd.f32 %v2230, %v2486
      %v2743 = vadd.f32 %v2231, %v2487
      %v2744 = vadd.f32 %v2232, %v2488
      %v2745 = vadd.f32 %v2233, %v2489
      %v2746 = vadd.f32 %v2234, %v2490
      %v2747 = vadd.f32 %v2235, %v2491
      %v2748 = vadd.f32 %v2236, %v2492
      %v2749 = vadd.f32 %v2237, %v2493
      %v2750 = vadd.f32 %v2238, %v2494
      %v2751 = vadd.f32 %v2239, %v2495
      %v2752 = vadd.f32 %v2240, %v2496
      %v2753 = vadd.f32 %v2241, %v2497
      %v2754 = vadd.f32 %v2242, %v2498
      %v2755 = vadd.f32 %v2243, %v2499
      %v2756 = vadd.f32 %v2244, %v2500
      %v2757 = vadd.f32 %v2245, %v2501
      %v2758 = vadd.f32 %v2246, %v2502
      %v2759 = vadd.f32 %v2247, %v2503
      %v2760 = vadd.f32 %v2248, %v2504
      %v2761 = vadd.f32 %v2249, %v2505
      %v2762 = vadd.f32 %v2250, %v2506
      %v2763 = vadd.f32 %v2251, %v2507
      %v2764 = vadd.f32 %v2252, %v2508
      %v2765 = vadd.f32 %v2253, %v2509
      %v2766 = vadd.f32 %v2254, %v2510
      %v2767 = vadd.f32 %v2255, %v2511
      %v2768 = vadd.f32 %v2256, %v2512
      %v2769 = vadd.f32 %v2257, %v2513
      %v2770 = vadd.f32 %v2258, %v2514
      %v2771 = vadd.f32 %v2259, %v2515
      %v2772 = vadd.f32 %v2260, %v2516
      %v2773 = vadd.f32 %v2261, %v2517
      %v2774 = vadd.f32 %v2262, %v2518
      %v2775 = vadd.f32 %v2263, %v2519
      %v2776 = vadd.f32 %v2264, %v2520
      %v2777 = vadd.f32 %v2265, %v2521
      %v2778 = vadd.f32 %v2266, %v2522
      %v2779 = vadd.f32 %v2267, %v2523
      %v2780 = vadd.f32 %v2268, %v2524
      %v2781 = vadd.f32 %v2269, %v2525
      %v2782 = vadd.f32 %v2270, %v2526
      %v2783 = vadd.f32 %v2271, %v2527
      %v2784 = vadd.f32 %v2272, %v2528
      %v2785 = vadd.f32 %v2273, %v2529
      %v2786 = vadd.f32 %v2274, %v2530
      %v2787 = vadd.f32 %v2275, %v2531
      %v2788 = vadd.f32 %v2276, %v2532
      %v2789 = vadd.f32 %v2277, %v2533
      %v2790 = vadd.f32 %v2278, %v2534
      %v2791 = vadd.f32 %v2279, %v2535
      %v2792 = vadd.f32 %v2280, %v2536
      %v2793 = vadd.f32 %v2281, %v2537
      %v2794 = vadd.f32 %v2282, %v2538
      %v2795 = vadd.f32 %v2283, %v2539
      %v2796 = vadd.f32 %v2284, %v2540
      %v2797 = vadd.f32 %v2285, %v2541
      %v2798 = vadd.f32 %v2286, %v2542
      %v2799 = vadd.f32 %v2287, %v2543
      %v2800 = vadd.f32 %v2288, %v2544
      %v2801 = vadd.f32 %v2289, %v2545
      %v2802 = vadd.f32 %v2290, %v2546
      %v2803 = vadd.f32 %v2291, %v2547
      %v2804 = vadd.f32 %v2292, %v2548
      %v2805 = vadd.f32 %v2293, %v2549
      %v2806 = vadd.f32 %v2294, %v2550
      %v2807 = vadd.f32 %v2295, %v2551
      %v2808 = vadd.f32 %v2296, %v2552
      %v2809 = vadd.f32 %v2297, %v2553
      %v2810 = vadd.f32 %v2298, %v2554
      %v2811 = vadd.f32 %v2299, %v2555
      %v2812 = vadd.f32 %v2300, %v2556
      %v2813 = vadd.f32 %v2301, %v2557
      %v2814 = vadd.f32 %v2302, %v2558
      %v2815 = vadd.f32 %v2303, %v2559
      %v2816 = vadd.f32 %v2304, %v2560
      %v2817 = vadd.f32 %v2305, %v2561
      %v2818 = vadd.f32 %v2306, %v2562
      %v2819 = vadd.f32 %v2307, %v2563
      %v2820 = vadd.f32 %v2308, %v2564
      %v2821 = vadd.f32 %v2309, %v2565
      %v2822 = vadd.f32 %v2310, %v2566
      %v2823 = vadd.f32 %v2311, %v2567
      %v2824 = vadd.f32 %v2312, %v2568
      %v2825 = vadd.f32 %v2313, %v2569
      %v2826 = vadd.f32 %v2314, %v2570
      %v2827 = vadd.f32 %v2315, %v2571
      %v2828 = vadd.f32 %v2316, %v2572
      %v2829 = vadd.f32 %v2317, %v2573
      %v2830 = vadd.f32 %v2318, %v2574
      %v2831 = vadd.f32 %v2319, %v2575
      %v2832 = vadd.f32 %v2320, %v2576
      %v2833 = vadd.f32 %v2321, %v2577
      %v2834 = vadd.f32 %v2322, %v2578
      %v2835 = vadd.f32 %v2323, %v2579
      %v2836 = vadd.f32 %v2324, %v2580
      %v2837 = vadd.f32 %v2325, %v2581
      %v2838 = vadd.f32 %v2326, %v2582
      %v2839 = vadd.f32 %v2327, %v2583
      %v2840 = vadd.f32 %v2328, %v2584
      %v2841 = vadd.f32 %v2329, %v2585
      %v2842 = vadd.f32 %v2330, %v2586
      %v2843 = vadd.f32 %v2331, %v2587
      %v2844 = vadd.f32 %v2332, %v2588
      %v2845 = vadd.f32 %v2333, %v2589
      %v2846 = vadd.f32 %v2334, %v2590
      %v2847 = vadd.f32 %v2335, %v2591
      %v2848 = vadd.f32 %v2336, %v2592
      %v2849 = vadd.f32 %v2337, %v2593
      %v2850 = vadd.f32 %v2338, %v2594
      %v2851 = vadd.f32 %v2339, %v2595
      %v2852 = vadd.f32 %v2340, %v2596
      %v2853 = vadd.f32 %v2341, %v2597
      %v2854 = vadd.f32 %v2342, %v2598
      %v2855 = vadd.f32 %v2343, %v2599
      %v2856 = vadd.f32 %v2344, %v2600
      %v2857 = vadd.f32 %v2345, %v2601
      %v2858 = vadd.f32 %v2346, %v2602
      %v2859 = vadd.f32 %v2347, %v2603
      %v2860 = vadd.f32 %v2348, %v2604
      %v2861 = vadd.f32 %v2349, %v2605
      %v2862 = vadd.f32 %v2350, %v2606
      %v2863 = vadd.f32 %v2351, %v2607
      %v2864 = vadd.f32 %v2352, %v2608
      %v2865 = vadd.f32 %v2353, %v2609
      %v2866 = vadd.f32 %v2354, %v2610
      %v2867 = vadd.f32 %v2355, %v2611
      %v2868 = vadd.f32 %v2356, %v2612
      %v2869 = vadd.f32 %v2357, %v2613
      %v2870 = vadd.f32 %v2358, %v2614
      %v2871 = vadd.f32 %v2359, %v2615
      %v2872 = vadd.f32 %v2360, %v2616
      %v2873 = vadd.f32 %v2361, %v2617
      %v2874 = vadd.f32 %v2362, %v2618
      %v2875 = vadd.f32 %v2363, %v2619
      %v2876 = vadd.f32 %v2364, %v2620
      %v2877 = vadd.f32 %v2365, %v2621
      %v2878 = vadd.f32 %v2366, %v2622
      %v2879 = vadd.f32 %v2367, %v2623
      %v2880 = vadd.f32 %v2368, %v2624
      %v2881 = vadd.f32 %v2369, %v2625
      %v2882 = vadd.f32 %v2370, %v2626
      %v2883 = vadd.f32 %v2371, %v2627
      %v2884 = vadd.f32 %v2372, %v2628
      %v2885 = vadd.f32 %v2373, %v2629
      %v2886 = vadd.f32 %v2374, %v2630
      %v2887 = vadd.f32 %v2375, %v2631
      %v2888 = vadd.f32 %v2376, %v2632
      %v2889 = vadd.f32 %v2377, %v2633
      %v2890 = vadd.f32 %v2378, %v2634
      %v2891 = vadd.f32 %v2379, %v2635
      %v2892 = vadd.f32 %v2380, %v2636
      %v2893 = vadd.f32 %v2381, %v2637
      %v2894 = vadd.f32 %v2382, %v2638
      %v2895 = vadd.f32 %v2383, %v2639
      %v2896 = vadd.f32 %v2384, %v2640
      %v2897 = vadd.f32 %v2385, %v2641
      %v2898 = vadd.f32 %v2386, %v2642
      %v2899 = vadd.f32 %v2387, %v2643
      %v2900 = vadd.f32 %v2388, %v2644
      %v2901 = vadd.f32 %v2389, %v2645
      %v2902 = vadd.f32 %v2390, %v2646
      %v2903 = vadd.f32 %v2391, %v2647
      %v2904 = vadd.f32 %v2392, %v2648
      %v2905 = vadd.f32 %v2393, %v2649
      %v2906 = vadd.f32 %v2394, %v2650
      %v2907 = vadd.f32 %v2395, %v2651
      %v2908 = vadd.f32 %v2396, %v2652
      %v2909 = vadd.f32 %v2397, %v2653
      %v2910 = vadd.f32 %v2398, %v2654
      %v2911 = vadd.f32 %v2399, %v2655
      %v2912 = vadd.f32 %v2400, %v2656
      %v2913 = vadd.f32 %v2401, %v2657
      %v2914 = vadd.f32 %v2402, %v2658
      %v2915 = vadd.f32 %v2403, %v2659
      %v2916 = vadd.f32 %v2404, %v2660
      %v2917 = vadd.f32 %v2405, %v2661
      %v2918 = vadd.f32 %v2406, %v2662
      %v2919 = vadd.f32 %v2407, %v2663
      %v2920 = vadd.f32 %v2408, %v2664
      %v2921 = vadd.f32 %v2409, %v2665
      %v2922 = vadd.f32 %v2410, %v2666
      %v2923 = vadd.f32 %v2411, %v2667
      %v2924 = vadd.f32 %v2412, %v2668
      %v2925 = vadd.f32 %v2413, %v2669
      %v2926 = vadd.f32 %v2414, %v2670
      %v2927 = vadd.f32 %v2415, %v2671
      %v2928 = vadd.f32 %v2416, %v2672
      %v2929 = vadd.f32 %v2417, %v2673
      %v2930 = vadd.f32 %v2418, %v2674
      %v2931 = vadd.f32 %v2419, %v2675
      %v2932 = vadd.f32 %v2420, %v2676
      %v2933 = vadd.f32 %v2421, %v2677
      %v2934 = vadd.f32 %v2422, %v2678
      %v2935 = vadd.f32 %v2423, %v2679
      %v2936 = vadd.f32 %v2424, %v2680
      %v2937 = vadd.f32 %v2425, %v2681
      %v2938 = vadd.f32 %v2426, %v2682
      %v2939 = vadd.f32 %v2427, %v2683
      %v2940 = vadd.f32 %v2428, %v2684
      %v2941 = vadd.f32 %v2429, %v2685
      %v2942 = vadd.f32 %v2430, %v2686
      %v2943 = vadd.f32 %v2431, %v2687
      %v2944 = vadd.f32 %v2432, %v2688
      %v2945 = vadd.f32 %v2433, %v2689
      %v2946 = vadd.f32 %v2434, %v2690
      %v2947 = vadd.f32 %v2435, %v2691
      %v2948 = vadd.f32 %v2436, %v2692
      %v2949 = vadd.f32 %v2437, %v2693
      %v2950 = vadd.f32 %v2438, %v2694
      %v2951 = vadd.f32 %v2439, %v2695
      %v2952 = vadd.f32 %v2440, %v2696
      %v2953 = vadd.f32 %v2441, %v2697
      %v2954 = vadd.f32 %v2442, %v2698
      %v2955 = vadd.f32 %v2443, %v2699
      %v2956 = vadd.f32 %v2444, %v2700
      %v2957 = vadd.f32 %v2445, %v2701
      %v2958 = vadd.f32 %v2446, %v2702
      %v2959 = vadd.f32 %v2447, %v2703
      %v2960 = vadd.f32 %v2448, %v2704
      %v2961 = vadd.f32 %v2449, %v2705
      %v2962 = vadd.f32 %v2450, %v2706
      %v2963 = vadd.f32 %v2451, %v2707
      %v2964 = vadd.f32 %v2452, %v2708
      %v2965 = vadd.f32 %v2453, %v2709
      %v2966 = vadd.f32 %v2454, %v2710
      %v2967 = vadd.f32 %v2455, %v2711
      %v2968 = vadd.f32 %v2456, %v2712
      %v2969 = vadd.f32 %v2457, %v2713
      %v2970 = vadd.f32 %v2458, %v2714
      %v2971 = vadd.f32 %v2459, %v2715
      %v2972 = vadd.f32 %v2460, %v2716
      %v2973 = vadd.f32 %v2461, %v2717
      %v2974 = vadd.f32 %v2462, %v2718
      %v2975 = vadd.f32 %v2463, %v2719
      %v2976 = vadd.f32 %v2464, %v2720
      %v2977 = vadd.f32 %v2465, %v2721
      %v2978 = vsub.f32 1.0, %v290
      %v2979 = vsub.f32 1.0, %v291
      %v2980 = vsub.f32 1.0, %v292
      %v2981 = vsub.f32 1.0, %v293
      %v2982 = vmul.f32 %v2978, 1e+30
      %v2983 = vmul.f32 %v2979, 1e+30
      %v2984 = vmul.f32 %v2980, 1e+30
      %v2985 = vmul.f32 %v2981, 1e+30
      %v2990 = vlaneseq
      %v2991 = vshrl.u32 %v2990, 7
      %v2992 = vsub.s32 3, %v2991
      %v2993 = vrot.slane %v2982, %v2992
      %v2994 = vlaneseq
      %v2995 = vshrl.u32 %v2994, 7
      %v2996 = vsub.s32 7, %v2995
      %v2997 = vrot.slane %v2982, %v2996
      %v2998 = vlaneseq
      %v2999 = vshrl.u32 %v2998, 7
      %v3000 = vsub.s32 3, %v2999
      %v3001 = vrot.slane %v2983, %v3000
      %v3002 = vlaneseq
      %v3003 = vshrl.u32 %v3002, 7
      %v3004 = vsub.s32 7, %v3003
      %v3005 = vrot.slane %v2983, %v3004
      %v3006 = vlaneseq
      %v3007 = vshrl.u32 %v3006, 7
      %v3008 = vsub.s32 3, %v3007
      %v3009 = vrot.slane %v2984, %v3008
      %v3010 = vlaneseq
      %v3011 = vshrl.u32 %v3010, 7
      %v3012 = vsub.s32 7, %v3011
      %v3013 = vrot.slane %v2984, %v3012
      %v3014 = vlaneseq
      %v3015 = vshrl.u32 %v3014, 7
      %v3016 = vsub.s32 3, %v3015
      %v3017 = vrot.slane %v2985, %v3016
      %v3018 = vlaneseq
      %v3019 = vshrl.u32 %v3018, 7
      %v3020 = vsub.s32 7, %v3019
      %v3021 = vrot.slane %v2985, %v3020
      %v3030 = vlaneseq
      %v3031 = vshrl.u32 %v3030, 7
      %v3032 = vsub.s32 3, %v3031
      %v3033 = vrot.slane %v2993, %v3032
      %v3034 = vlaneseq
      %v3035 = vshrl.u32 %v3034, 7
      %v3036 = vsub.s32 3, %v3035
      %v3037 = vrot.slane %v2997, %v3036
      %v3038 = vlaneseq
      %v3039 = vshrl.u32 %v3038, 7
      %v3040 = vsub.s32 3, %v3039
      %v3041 = vrot.slane %v3001, %v3040
      %v3042 = vlaneseq
      %v3043 = vshrl.u32 %v3042, 7
      %v3044 = vsub.s32 3, %v3043
      %v3045 = vrot.slane %v3005, %v3044
      %v3046 = vlaneseq
      %v3047 = vshrl.u32 %v3046, 7
      %v3048 = vsub.s32 3, %v3047
      %v3049 = vrot.slane %v3009, %v3048
      %v3050 = vlaneseq
      %v3051 = vshrl.u32 %v3050, 7
      %v3052 = vsub.s32 3, %v3051
      %v3053 = vrot.slane %v3013, %v3052
      %v3054 = vlaneseq
      %v3055 = vshrl.u32 %v3054, 7
      %v3056 = vsub.s32 3, %v3055
      %v3057 = vrot.slane %v3017, %v3056
      %v3058 = vlaneseq
      %v3059 = vshrl.u32 %v3058, 7
      %v3060 = vsub.s32 3, %v3059
      %v3061 = vrot.slane %v3021, %v3060
      %v3062 = vadd.f32 %v2722, %v3033
      %v3063 = vadd.f32 %v2723, %v3037
      %v3064 = vadd.f32 %v2724, %v3041
      %v3065 = vadd.f32 %v2725, %v3045
      %v3066 = vadd.f32 %v2726, %v3049
      %v3067 = vadd.f32 %v2727, %v3053
      %v3068 = vadd.f32 %v2728, %v3057
      %v3069 = vadd.f32 %v2729, %v3061
      %v3070 = vadd.f32 %v2730, %v3033
      %v3071 = vadd.f32 %v2731, %v3037
      %v3072 = vadd.f32 %v2732, %v3041
      %v3073 = vadd.f32 %v2733, %v3045
      %v3074 = vadd.f32 %v2734, %v3049
      %v3075 = vadd.f32 %v2735, %v3053
      %v3076 = vadd.f32 %v2736, %v3057
      %v3077 = vadd.f32 %v2737, %v3061
      %v3078 = vadd.f32 %v2738, %v3033
      %v3079 = vadd.f32 %v2739, %v3037
      %v3080 = vadd.f32 %v2740, %v3041
      %v3081 = vadd.f32 %v2741, %v3045
      %v3082 = vadd.f32 %v2742, %v3049
      %v3083 = vadd.f32 %v2743, %v3053
      %v3084 = vadd.f32 %v2744, %v3057
      %v3085 = vadd.f32 %v2745, %v3061
      %v3086 = vadd.f32 %v2746, %v3033
      %v3087 = vadd.f32 %v2747, %v3037
      %v3088 = vadd.f32 %v2748, %v3041
      %v3089 = vadd.f32 %v2749, %v3045
      %v3090 = vadd.f32 %v2750, %v3049
      %v3091 = vadd.f32 %v2751, %v3053
      %v3092 = vadd.f32 %v2752, %v3057
      %v3093 = vadd.f32 %v2753, %v3061
      %v3094 = vadd.f32 %v2754, %v3033
      %v3095 = vadd.f32 %v2755, %v3037
      %v3096 = vadd.f32 %v2756, %v3041
      %v3097 = vadd.f32 %v2757, %v3045
      %v3098 = vadd.f32 %v2758, %v3049
      %v3099 = vadd.f32 %v2759, %v3053
      %v3100 = vadd.f32 %v2760, %v3057
      %v3101 = vadd.f32 %v2761, %v3061
      %v3102 = vadd.f32 %v2762, %v3033
      %v3103 = vadd.f32 %v2763, %v3037
      %v3104 = vadd.f32 %v2764, %v3041
      %v3105 = vadd.f32 %v2765, %v3045
      %v3106 = vadd.f32 %v2766, %v3049
      %v3107 = vadd.f32 %v2767, %v3053
      %v3108 = vadd.f32 %v2768, %v3057
      %v3109 = vadd.f32 %v2769, %v3061
      %v3110 = vadd.f32 %v2770, %v3033
      %v3111 = vadd.f32 %v2771, %v3037
      %v3112 = vadd.f32 %v2772, %v3041
      %v3113 = vadd.f32 %v2773, %v3045
      %v3114 = vadd.f32 %v2774, %v3049
      %v3115 = vadd.f32 %v2775, %v3053
      %v3116 = vadd.f32 %v2776, %v3057
      %v3117 = vadd.f32 %v2777, %v3061
      %v3118 = vadd.f32 %v2778, %v3033
      %v3119 = vadd.f32 %v2779, %v3037
      %v3120 = vadd.f32 %v2780, %v3041
      %v3121 = vadd.f32 %v2781, %v3045
      %v3122 = vadd.f32 %v2782, %v3049
      %v3123 = vadd.f32 %v2783, %v3053
      %v3124 = vadd.f32 %v2784, %v3057
      %v3125 = vadd.f32 %v2785, %v3061
      %v3126 = vadd.f32 %v2786, %v3033
      %v3127 = vadd.f32 %v2787, %v3037
      %v3128 = vadd.f32 %v2788, %v3041
      %v3129 = vadd.f32 %v2789, %v3045
      %v3130 = vadd.f32 %v2790, %v3049
      %v3131 = vadd.f32 %v2791, %v3053
      %v3132 = vadd.f32 %v2792, %v3057
      %v3133 = vadd.f32 %v2793, %v3061
      %v3134 = vadd.f32 %v2794, %v3033
      %v3135 = vadd.f32 %v2795, %v3037
      %v3136 = vadd.f32 %v2796, %v3041
      %v3137 = vadd.f32 %v2797, %v3045
      %v3138 = vadd.f32 %v2798, %v3049
      %v3139 = vadd.f32 %v2799, %v3053
      %v3140 = vadd.f32 %v2800, %v3057
      %v3141 = vadd.f32 %v2801, %v3061
      %v3142 = vadd.f32 %v2802, %v3033
      %v3143 = vadd.f32 %v2803, %v3037
      %v3144 = vadd.f32 %v2804, %v3041
      %v3145 = vadd.f32 %v2805, %v3045
      %v3146 = vadd.f32 %v2806, %v3049
      %v3147 = vadd.f32 %v2807, %v3053
      %v3148 = vadd.f32 %v2808, %v3057
      %v3149 = vadd.f32 %v2809, %v3061
      %v3150 = vadd.f32 %v2810, %v3033
      %v3151 = vadd.f32 %v2811, %v3037
      %v3152 = vadd.f32 %v2812, %v3041
      %v3153 = vadd.f32 %v2813, %v3045
      %v3154 = vadd.f32 %v2814, %v3049
      %v3155 = vadd.f32 %v2815, %v3053
      %v3156 = vadd.f32 %v2816, %v3057
      %v3157 = vadd.f32 %v2817, %v3061
      %v3158 = vadd.f32 %v2818, %v3033
      %v3159 = vadd.f32 %v2819, %v3037
      %v3160 = vadd.f32 %v2820, %v3041
      %v3161 = vadd.f32 %v2821, %v3045
      %v3162 = vadd.f32 %v2822, %v3049
      %v3163 = vadd.f32 %v2823, %v3053
      %v3164 = vadd.f32 %v2824, %v3057
      %v3165 = vadd.f32 %v2825, %v3061
      %v3166 = vadd.f32 %v2826, %v3033
      %v3167 = vadd.f32 %v2827, %v3037
      %v3168 = vadd.f32 %v2828, %v3041
      %v3169 = vadd.f32 %v2829, %v3045
      %v3170 = vadd.f32 %v2830, %v3049
      %v3171 = vadd.f32 %v2831, %v3053
      %v3172 = vadd.f32 %v2832, %v3057
      %v3173 = vadd.f32 %v2833, %v3061
      %v3174 = vadd.f32 %v2834, %v3033
      %v3175 = vadd.f32 %v2835, %v3037
      %v3176 = vadd.f32 %v2836, %v3041
      %v3177 = vadd.f32 %v2837, %v3045
      %v3178 = vadd.f32 %v2838, %v3049
      %v3179 = vadd.f32 %v2839, %v3053
      %v3180 = vadd.f32 %v2840, %v3057
      %v3181 = vadd.f32 %v2841, %v3061
      %v3182 = vadd.f32 %v2842, %v3033
      %v3183 = vadd.f32 %v2843, %v3037
      %v3184 = vadd.f32 %v2844, %v3041
      %v3185 = vadd.f32 %v2845, %v3045
      %v3186 = vadd.f32 %v2846, %v3049
      %v3187 = vadd.f32 %v2847, %v3053
      %v3188 = vadd.f32 %v2848, %v3057
      %v3189 = vadd.f32 %v2849, %v3061
      %v3190 = vadd.f32 %v2850, %v3033
      %v3191 = vadd.f32 %v2851, %v3037
      %v3192 = vadd.f32 %v2852, %v3041
      %v3193 = vadd.f32 %v2853, %v3045
      %v3194 = vadd.f32 %v2854, %v3049
      %v3195 = vadd.f32 %v2855, %v3053
      %v3196 = vadd.f32 %v2856, %v3057
      %v3197 = vadd.f32 %v2857, %v3061
      %v3198 = vadd.f32 %v2858, %v3033
      %v3199 = vadd.f32 %v2859, %v3037
      %v3200 = vadd.f32 %v2860, %v3041
      %v3201 = vadd.f32 %v2861, %v3045
      %v3202 = vadd.f32 %v2862, %v3049
      %v3203 = vadd.f32 %v2863, %v3053
      %v3204 = vadd.f32 %v2864, %v3057
      %v3205 = vadd.f32 %v2865, %v3061
      %v3206 = vadd.f32 %v2866, %v3033
      %v3207 = vadd.f32 %v2867, %v3037
      %v3208 = vadd.f32 %v2868, %v3041
      %v3209 = vadd.f32 %v2869, %v3045
      %v3210 = vadd.f32 %v2870, %v3049
      %v3211 = vadd.f32 %v2871, %v3053
      %v3212 = vadd.f32 %v2872, %v3057
      %v3213 = vadd.f32 %v2873, %v3061
      %v3214 = vadd.f32 %v2874, %v3033
      %v3215 = vadd.f32 %v2875, %v3037
      %v3216 = vadd.f32 %v2876, %v3041
      %v3217 = vadd.f32 %v2877, %v3045
      %v3218 = vadd.f32 %v2878, %v3049
      %v3219 = vadd.f32 %v2879, %v3053
      %v3220 = vadd.f32 %v2880, %v3057
      %v3221 = vadd.f32 %v2881, %v3061
      %v3222 = vadd.f32 %v2882, %v3033
      %v3223 = vadd.f32 %v2883, %v3037
      %v3224 = vadd.f32 %v2884, %v3041
      %v3225 = vadd.f32 %v2885, %v3045
      %v3226 = vadd.f32 %v2886, %v3049
      %v3227 = vadd.f32 %v2887, %v3053
      %v3228 = vadd.f32 %v2888, %v3057
      %v3229 = vadd.f32 %v2889, %v3061
      %v3230 = vadd.f32 %v2890, %v3033
      %v3231 = vadd.f32 %v2891, %v3037
      %v3232 = vadd.f32 %v2892, %v3041
      %v3233 = vadd.f32 %v2893, %v3045
      %v3234 = vadd.f32 %v2894, %v3049
      %v3235 = vadd.f32 %v2895, %v3053
      %v3236 = vadd.f32 %v2896, %v3057
      %v3237 = vadd.f32 %v2897, %v3061
      %v3238 = vadd.f32 %v2898, %v3033
      %v3239 = vadd.f32 %v2899, %v3037
      %v3240 = vadd.f32 %v2900, %v3041
      %v3241 = vadd.f32 %v2901, %v3045
      %v3242 = vadd.f32 %v2902, %v3049
      %v3243 = vadd.f32 %v2903, %v3053
      %v3244 = vadd.f32 %v2904, %v3057
      %v3245 = vadd.f32 %v2905, %v3061
      %v3246 = vadd.f32 %v2906, %v3033
      %v3247 = vadd.f32 %v2907, %v3037
      %v3248 = vadd.f32 %v2908, %v3041
      %v3249 = vadd.f32 %v2909, %v3045
      %v3250 = vadd.f32 %v2910, %v3049
      %v3251 = vadd.f32 %v2911, %v3053
      %v3252 = vadd.f32 %v2912, %v3057
      %v3253 = vadd.f32 %v2913, %v3061
      %v3254 = vadd.f32 %v2914, %v3033
      %v3255 = vadd.f32 %v2915, %v3037
      %v3256 = vadd.f32 %v2916, %v3041
      %v3257 = vadd.f32 %v2917, %v3045
      %v3258 = vadd.f32 %v2918, %v3049
      %v3259 = vadd.f32 %v2919, %v3053
      %v3260 = vadd.f32 %v2920, %v3057
      %v3261 = vadd.f32 %v2921, %v3061
      %v3262 = vadd.f32 %v2922, %v3033
      %v3263 = vadd.f32 %v2923, %v3037
      %v3264 = vadd.f32 %v2924, %v3041
      %v3265 = vadd.f32 %v2925, %v3045
      %v3266 = vadd.f32 %v2926, %v3049
      %v3267 = vadd.f32 %v2927, %v3053
      %v3268 = vadd.f32 %v2928, %v3057
      %v3269 = vadd.f32 %v2929, %v3061
      %v3270 = vadd.f32 %v2930, %v3033
      %v3271 = vadd.f32 %v2931, %v3037
      %v3272 = vadd.f32 %v2932, %v3041
      %v3273 = vadd.f32 %v2933, %v3045
      %v3274 = vadd.f32 %v2934, %v3049
      %v3275 = vadd.f32 %v2935, %v3053
      %v3276 = vadd.f32 %v2936, %v3057
      %v3277 = vadd.f32 %v2937, %v3061
      %v3278 = vadd.f32 %v2938, %v3033
      %v3279 = vadd.f32 %v2939, %v3037
      %v3280 = vadd.f32 %v2940, %v3041
      %v3281 = vadd.f32 %v2941, %v3045
      %v3282 = vadd.f32 %v2942, %v3049
      %v3283 = vadd.f32 %v2943, %v3053
      %v3284 = vadd.f32 %v2944, %v3057
      %v3285 = vadd.f32 %v2945, %v3061
      %v3286 = vadd.f32 %v2946, %v3033
      %v3287 = vadd.f32 %v2947, %v3037
      %v3288 = vadd.f32 %v2948, %v3041
      %v3289 = vadd.f32 %v2949, %v3045
      %v3290 = vadd.f32 %v2950, %v3049
      %v3291 = vadd.f32 %v2951, %v3053
      %v3292 = vadd.f32 %v2952, %v3057
      %v3293 = vadd.f32 %v2953, %v3061
      %v3294 = vadd.f32 %v2954, %v3033
      %v3295 = vadd.f32 %v2955, %v3037
      %v3296 = vadd.f32 %v2956, %v3041
      %v3297 = vadd.f32 %v2957, %v3045
      %v3298 = vadd.f32 %v2958, %v3049
      %v3299 = vadd.f32 %v2959, %v3053
      %v3300 = vadd.f32 %v2960, %v3057
      %v3301 = vadd.f32 %v2961, %v3061
      %v3302 = vadd.f32 %v2962, %v3033
      %v3303 = vadd.f32 %v2963, %v3037
      %v3304 = vadd.f32 %v2964, %v3041
      %v3305 = vadd.f32 %v2965, %v3045
      %v3306 = vadd.f32 %v2966, %v3049
      %v3307 = vadd.f32 %v2967, %v3053
      %v3308 = vadd.f32 %v2968, %v3057
      %v3309 = vadd.f32 %v2969, %v3061
      %v3310 = vadd.f32 %v2970, %v3033
      %v3311 = vadd.f32 %v2971, %v3037
      %v3312 = vadd.f32 %v2972, %v3041
      %v3313 = vadd.f32 %v2973, %v3045
      %v3314 = vadd.f32 %v2974, %v3049
      %v3315 = vadd.f32 %v2975, %v3053
      %v3316 = vadd.f32 %v2976, %v3057
      %v3317 = vadd.f32 %v2977, %v3061
      %v3318 = vmin.f32 %v3062, %v3063
      %v3319 = vmin.f32 %v3318, %v3064
      %v3320 = vmin.f32 %v3319, %v3065
      %v3321 = vmin.f32 %v3320, %v3066
      %v3322 = vmin.f32 %v3321, %v3067
      %v3323 = vmin.f32 %v3322, %v3068
      %v3324 = vmin.f32 %v3323, %v3069
      %3325 = vmin.xlane.f32.xlu0 %v3324
      %v3326 = vpop.xlane.xlu0 %3325
      %v3327 = vmin.f32 %v3070, %v3071
      %v3328 = vmin.f32 %v3327, %v3072
      %v3329 = vmin.f32 %v3328, %v3073
      %v3330 = vmin.f32 %v3329, %v3074
      %v3331 = vmin.f32 %v3330, %v3075
      %v3332 = vmin.f32 %v3331, %v3076
      %v3333 = vmin.f32 %v3332, %v3077
      %3334 = vmin.xlane.f32.xlu0 %v3333
      %v3335 = vpop.xlane.xlu0 %3334
      %v3336 = vmin.f32 %v3078, %v3079
      %v3337 = vmin.f32 %v3336, %v3080
      %v3338 = vmin.f32 %v3337, %v3081
      %v3339 = vmin.f32 %v3338, %v3082
      %v3340 = vmin.f32 %v3339, %v3083
      %v3341 = vmin.f32 %v3340, %v3084
      %v3342 = vmin.f32 %v3341, %v3085
      %3343 = vmin.xlane.f32.xlu0 %v3342
      %v3344 = vpop.xlane.xlu0 %3343
      %v3345 = vmin.f32 %v3086, %v3087
      %v3346 = vmin.f32 %v3345, %v3088
      %v3347 = vmin.f32 %v3346, %v3089
      %v3348 = vmin.f32 %v3347, %v3090
      %v3349 = vmin.f32 %v3348, %v3091
      %v3350 = vmin.f32 %v3349, %v3092
      %v3351 = vmin.f32 %v3350, %v3093
      %3352 = vmin.xlane.f32.xlu0 %v3351
      %v3353 = vpop.xlane.xlu0 %3352
      %v3354 = vmin.f32 %v3094, %v3095
      %v3355 = vmin.f32 %v3354, %v3096
      %v3356 = vmin.f32 %v3355, %v3097
      %v3357 = vmin.f32 %v3356, %v3098
      %v3358 = vmin.f32 %v3357, %v3099
      %v3359 = vmin.f32 %v3358, %v3100
      %v3360 = vmin.f32 %v3359, %v3101
      %3361 = vmin.xlane.f32.xlu0 %v3360
      %v3362 = vpop.xlane.xlu0 %3361
      %v3363 = vmin.f32 %v3102, %v3103
      %v3364 = vmin.f32 %v3363, %v3104
      %v3365 = vmin.f32 %v3364, %v3105
      %v3366 = vmin.f32 %v3365, %v3106
      %v3367 = vmin.f32 %v3366, %v3107
      %v3368 = vmin.f32 %v3367, %v3108
      %v3369 = vmin.f32 %v3368, %v3109
      %3370 = vmin.xlane.f32.xlu0 %v3369
      %v3371 = vpop.xlane.xlu0 %3370
      %v3372 = vmin.f32 %v3110, %v3111
      %v3373 = vmin.f32 %v3372, %v3112
      %v3374 = vmin.f32 %v3373, %v3113
      %v3375 = vmin.f32 %v3374, %v3114
      %v3376 = vmin.f32 %v3375, %v3115
      %v3377 = vmin.f32 %v3376, %v3116
      %v3378 = vmin.f32 %v3377, %v3117
      %3379 = vmin.xlane.f32.xlu0 %v3378
      %v3380 = vpop.xlane.xlu0 %3379
      %v3381 = vmin.f32 %v3118, %v3119
      %v3382 = vmin.f32 %v3381, %v3120
      %v3383 = vmin.f32 %v3382, %v3121
      %v3384 = vmin.f32 %v3383, %v3122
      %v3385 = vmin.f32 %v3384, %v3123
      %v3386 = vmin.f32 %v3385, %v3124
      %v3387 = vmin.f32 %v3386, %v3125
      %3388 = vmin.xlane.f32.xlu0 %v3387
      %v3389 = vpop.xlane.xlu0 %3388
      %v3390 = vmin.f32 %v3126, %v3127
      %v3391 = vmin.f32 %v3390, %v3128
      %v3392 = vmin.f32 %v3391, %v3129
      %v3393 = vmin.f32 %v3392, %v3130
      %v3394 = vmin.f32 %v3393, %v3131
      %v3395 = vmin.f32 %v3394, %v3132
      %v3396 = vmin.f32 %v3395, %v3133
      %3397 = vmin.xlane.f32.xlu0 %v3396
      %v3398 = vpop.xlane.xlu0 %3397
      %v3399 = vmin.f32 %v3134, %v3135
      %v3400 = vmin.f32 %v3399, %v3136
      %v3401 = vmin.f32 %v3400, %v3137
      %v3402 = vmin.f32 %v3401, %v3138
      %v3403 = vmin.f32 %v3402, %v3139
      %v3404 = vmin.f32 %v3403, %v3140
      %v3405 = vmin.f32 %v3404, %v3141
      %3406 = vmin.xlane.f32.xlu0 %v3405
      %v3407 = vpop.xlane.xlu0 %3406
      %v3408 = vmin.f32 %v3142, %v3143
      %v3409 = vmin.f32 %v3408, %v3144
      %v3410 = vmin.f32 %v3409, %v3145
      %v3411 = vmin.f32 %v3410, %v3146
      %v3412 = vmin.f32 %v3411, %v3147
      %v3413 = vmin.f32 %v3412, %v3148
      %v3414 = vmin.f32 %v3413, %v3149
      %3415 = vmin.xlane.f32.xlu0 %v3414
      %v3416 = vpop.xlane.xlu0 %3415
      %v3417 = vmin.f32 %v3150, %v3151
      %v3418 = vmin.f32 %v3417, %v3152
      %v3419 = vmin.f32 %v3418, %v3153
      %v3420 = vmin.f32 %v3419, %v3154
      %v3421 = vmin.f32 %v3420, %v3155
      %v3422 = vmin.f32 %v3421, %v3156
      %v3423 = vmin.f32 %v3422, %v3157
      %3424 = vmin.xlane.f32.xlu0 %v3423
      %v3425 = vpop.xlane.xlu0 %3424
      %v3426 = vmin.f32 %v3158, %v3159
      %v3427 = vmin.f32 %v3426, %v3160
      %v3428 = vmin.f32 %v3427, %v3161
      %v3429 = vmin.f32 %v3428, %v3162
      %v3430 = vmin.f32 %v3429, %v3163
      %v3431 = vmin.f32 %v3430, %v3164
      %v3432 = vmin.f32 %v3431, %v3165
      %3433 = vmin.xlane.f32.xlu0 %v3432
      %v3434 = vpop.xlane.xlu0 %3433
      %v3435 = vmin.f32 %v3166, %v3167
      %v3436 = vmin.f32 %v3435, %v3168
      %v3437 = vmin.f32 %v3436, %v3169
      %v3438 = vmin.f32 %v3437, %v3170
      %v3439 = vmin.f32 %v3438, %v3171
      %v3440 = vmin.f32 %v3439, %v3172
      %v3441 = vmin.f32 %v3440, %v3173
      %3442 = vmin.xlane.f32.xlu0 %v3441
      %v3443 = vpop.xlane.xlu0 %3442
      %v3444 = vmin.f32 %v3174, %v3175
      %v3445 = vmin.f32 %v3444, %v3176
      %v3446 = vmin.f32 %v3445, %v3177
      %v3447 = vmin.f32 %v3446, %v3178
      %v3448 = vmin.f32 %v3447, %v3179
      %v3449 = vmin.f32 %v3448, %v3180
      %v3450 = vmin.f32 %v3449, %v3181
      %3451 = vmin.xlane.f32.xlu0 %v3450
      %v3452 = vpop.xlane.xlu0 %3451
      %v3453 = vmin.f32 %v3182, %v3183
      %v3454 = vmin.f32 %v3453, %v3184
      %v3455 = vmin.f32 %v3454, %v3185
      %v3456 = vmin.f32 %v3455, %v3186
      %v3457 = vmin.f32 %v3456, %v3187
      %v3458 = vmin.f32 %v3457, %v3188
      %v3459 = vmin.f32 %v3458, %v3189
      %3460 = vmin.xlane.f32.xlu0 %v3459
      %v3461 = vpop.xlane.xlu0 %3460
      %v3462 = vmin.f32 %v3190, %v3191
      %v3463 = vmin.f32 %v3462, %v3192
      %v3464 = vmin.f32 %v3463, %v3193
      %v3465 = vmin.f32 %v3464, %v3194
      %v3466 = vmin.f32 %v3465, %v3195
      %v3467 = vmin.f32 %v3466, %v3196
      %v3468 = vmin.f32 %v3467, %v3197
      %3469 = vmin.xlane.f32.xlu0 %v3468
      %v3470 = vpop.xlane.xlu0 %3469
      %v3471 = vmin.f32 %v3198, %v3199
      %v3472 = vmin.f32 %v3471, %v3200
      %v3473 = vmin.f32 %v3472, %v3201
      %v3474 = vmin.f32 %v3473, %v3202
      %v3475 = vmin.f32 %v3474, %v3203
      %v3476 = vmin.f32 %v3475, %v3204
      %v3477 = vmin.f32 %v3476, %v3205
      %3478 = vmin.xlane.f32.xlu0 %v3477
      %v3479 = vpop.xlane.xlu0 %3478
      %v3480 = vmin.f32 %v3206, %v3207
      %v3481 = vmin.f32 %v3480, %v3208
      %v3482 = vmin.f32 %v3481, %v3209
      %v3483 = vmin.f32 %v3482, %v3210
      %v3484 = vmin.f32 %v3483, %v3211
      %v3485 = vmin.f32 %v3484, %v3212
      %v3486 = vmin.f32 %v3485, %v3213
      %3487 = vmin.xlane.f32.xlu0 %v3486
      %v3488 = vpop.xlane.xlu0 %3487
      %v3489 = vmin.f32 %v3214, %v3215
      %v3490 = vmin.f32 %v3489, %v3216
      %v3491 = vmin.f32 %v3490, %v3217
      %v3492 = vmin.f32 %v3491, %v3218
      %v3493 = vmin.f32 %v3492, %v3219
      %v3494 = vmin.f32 %v3493, %v3220
      %v3495 = vmin.f32 %v3494, %v3221
      %3496 = vmin.xlane.f32.xlu0 %v3495
      %v3497 = vpop.xlane.xlu0 %3496
      %v3498 = vmin.f32 %v3222, %v3223
      %v3499 = vmin.f32 %v3498, %v3224
      %v3500 = vmin.f32 %v3499, %v3225
      %v3501 = vmin.f32 %v3500, %v3226
      %v3502 = vmin.f32 %v3501, %v3227
      %v3503 = vmin.f32 %v3502, %v3228
      %v3504 = vmin.f32 %v3503, %v3229
      %3505 = vmin.xlane.f32.xlu0 %v3504
      %v3506 = vpop.xlane.xlu0 %3505
      %v3507 = vmin.f32 %v3230, %v3231
      %v3508 = vmin.f32 %v3507, %v3232
      %v3509 = vmin.f32 %v3508, %v3233
      %v3510 = vmin.f32 %v3509, %v3234
      %v3511 = vmin.f32 %v3510, %v3235
      %v3512 = vmin.f32 %v3511, %v3236
      %v3513 = vmin.f32 %v3512, %v3237
      %3514 = vmin.xlane.f32.xlu0 %v3513
      %v3515 = vpop.xlane.xlu0 %3514
      %v3516 = vmin.f32 %v3238, %v3239
      %v3517 = vmin.f32 %v3516, %v3240
      %v3518 = vmin.f32 %v3517, %v3241
      %v3519 = vmin.f32 %v3518, %v3242
      %v3520 = vmin.f32 %v3519, %v3243
      %v3521 = vmin.f32 %v3520, %v3244
      %v3522 = vmin.f32 %v3521, %v3245
      %3523 = vmin.xlane.f32.xlu0 %v3522
      %v3524 = vpop.xlane.xlu0 %3523
      %v3525 = vmin.f32 %v3246, %v3247
      %v3526 = vmin.f32 %v3525, %v3248
      %v3527 = vmin.f32 %v3526, %v3249
      %v3528 = vmin.f32 %v3527, %v3250
      %v3529 = vmin.f32 %v3528, %v3251
      %v3530 = vmin.f32 %v3529, %v3252
      %v3531 = vmin.f32 %v3530, %v3253
      %3532 = vmin.xlane.f32.xlu0 %v3531
      %v3533 = vpop.xlane.xlu0 %3532
      %v3534 = vmin.f32 %v3254, %v3255
      %v3535 = vmin.f32 %v3534, %v3256
      %v3536 = vmin.f32 %v3535, %v3257
      %v3537 = vmin.f32 %v3536, %v3258
      %v3538 = vmin.f32 %v3537, %v3259
      %v3539 = vmin.f32 %v3538, %v3260
      %v3540 = vmin.f32 %v3539, %v3261
      %3541 = vmin.xlane.f32.xlu0 %v3540
      %v3542 = vpop.xlane.xlu0 %3541
      %v3543 = vmin.f32 %v3262, %v3263
      %v3544 = vmin.f32 %v3543, %v3264
      %v3545 = vmin.f32 %v3544, %v3265
      %v3546 = vmin.f32 %v3545, %v3266
      %v3547 = vmin.f32 %v3546, %v3267
      %v3548 = vmin.f32 %v3547, %v3268
      %v3549 = vmin.f32 %v3548, %v3269
      %3550 = vmin.xlane.f32.xlu0 %v3549
      %v3551 = vpop.xlane.xlu0 %3550
      %v3552 = vmin.f32 %v3270, %v3271
      %v3553 = vmin.f32 %v3552, %v3272
      %v3554 = vmin.f32 %v3553, %v3273
      %v3555 = vmin.f32 %v3554, %v3274
      %v3556 = vmin.f32 %v3555, %v3275
      %v3557 = vmin.f32 %v3556, %v3276
      %v3558 = vmin.f32 %v3557, %v3277
      %3559 = vmin.xlane.f32.xlu0 %v3558
      %v3560 = vpop.xlane.xlu0 %3559
      %v3561 = vmin.f32 %v3278, %v3279
      %v3562 = vmin.f32 %v3561, %v3280
      %v3563 = vmin.f32 %v3562, %v3281
      %v3564 = vmin.f32 %v3563, %v3282
      %v3565 = vmin.f32 %v3564, %v3283
      %v3566 = vmin.f32 %v3565, %v3284
      %v3567 = vmin.f32 %v3566, %v3285
      %3568 = vmin.xlane.f32.xlu0 %v3567
      %v3569 = vpop.xlane.xlu0 %3568
      %v3570 = vmin.f32 %v3286, %v3287
      %v3571 = vmin.f32 %v3570, %v3288
      %v3572 = vmin.f32 %v3571, %v3289
      %v3573 = vmin.f32 %v3572, %v3290
      %v3574 = vmin.f32 %v3573, %v3291
      %v3575 = vmin.f32 %v3574, %v3292
      %v3576 = vmin.f32 %v3575, %v3293
      %3577 = vmin.xlane.f32.xlu0 %v3576
      %v3578 = vpop.xlane.xlu0 %3577
      %v3579 = vmin.f32 %v3294, %v3295
      %v3580 = vmin.f32 %v3579, %v3296
      %v3581 = vmin.f32 %v3580, %v3297
      %v3582 = vmin.f32 %v3581, %v3298
      %v3583 = vmin.f32 %v3582, %v3299
      %v3584 = vmin.f32 %v3583, %v3300
      %v3585 = vmin.f32 %v3584, %v3301
      %3586 = vmin.xlane.f32.xlu0 %v3585
      %v3587 = vpop.xlane.xlu0 %3586
      %v3588 = vmin.f32 %v3302, %v3303
      %v3589 = vmin.f32 %v3588, %v3304
      %v3590 = vmin.f32 %v3589, %v3305
      %v3591 = vmin.f32 %v3590, %v3306
      %v3592 = vmin.f32 %v3591, %v3307
      %v3593 = vmin.f32 %v3592, %v3308
      %v3594 = vmin.f32 %v3593, %v3309
      %3595 = vmin.xlane.f32.xlu0 %v3594
      %v3596 = vpop.xlane.xlu0 %3595
      %v3597 = vmin.f32 %v3310, %v3311
      %v3598 = vmin.f32 %v3597, %v3312
      %v3599 = vmin.f32 %v3598, %v3313
      %v3600 = vmin.f32 %v3599, %v3314
      %v3601 = vmin.f32 %v3600, %v3315
      %v3602 = vmin.f32 %v3601, %v3316
      %v3603 = vmin.f32 %v3602, %v3317
      %3604 = vmin.xlane.f32.xlu0 %v3603
      %v3605 = vpop.xlane.xlu0 %3604
      %v3606 = vld [vmem:[#allocation2] sm:$0xff]
      %v3607 = vld [vmem:[#allocation2 + $0x8] sm:$0xff]
      %v3608 = vld [vmem:[#allocation2 + $0x10] sm:$0xff]
      %v3609 = vld [vmem:[#allocation2 + $0x18] sm:$0xff]
      %v3610 = vld [vmem:[#allocation2 + $0x20] sm:$0xff]
      %v3611 = vld [vmem:[#allocation2 + $0x28] sm:$0xff]
      %v3612 = vld [vmem:[#allocation2 + $0x30] sm:$0xff]
      %v3613 = vld [vmem:[#allocation2 + $0x38] sm:$0xff]
      %v3614 = vld [vmem:[#allocation2 + $0x40] sm:$0xff]
      %v3615 = vld [vmem:[#allocation2 + $0x48] sm:$0xff]
      %v3616 = vld [vmem:[#allocation2 + $0x50] sm:$0xff]
      %v3617 = vld [vmem:[#allocation2 + $0x58] sm:$0xff]
      %v3618 = vld [vmem:[#allocation2 + $0x60] sm:$0xff]
      %v3619 = vld [vmem:[#allocation2 + $0x68] sm:$0xff]
      %v3620 = vld [vmem:[#allocation2 + $0x70] sm:$0xff]
      %v3621 = vld [vmem:[#allocation2 + $0x78] sm:$0xff]
      %v3622 = vld [vmem:[#allocation2 + $0x80] sm:$0xff]
      %v3623 = vld [vmem:[#allocation2 + $0x88] sm:$0xff]
      %v3624 = vld [vmem:[#allocation2 + $0x90] sm:$0xff]
      %v3625 = vld [vmem:[#allocation2 + $0x98] sm:$0xff]
      %v3626 = vld [vmem:[#allocation2 + $0xa0] sm:$0xff]
      %v3627 = vld [vmem:[#allocation2 + $0xa8] sm:$0xff]
      %v3628 = vld [vmem:[#allocation2 + $0xb0] sm:$0xff]
      %v3629 = vld [vmem:[#allocation2 + $0xb8] sm:$0xff]
      %v3630 = vld [vmem:[#allocation2 + $0xc0] sm:$0xff]
      %v3631 = vld [vmem:[#allocation2 + $0xc8] sm:$0xff]
      %v3632 = vld [vmem:[#allocation2 + $0xd0] sm:$0xff]
      %v3633 = vld [vmem:[#allocation2 + $0xd8] sm:$0xff]
      %v3634 = vld [vmem:[#allocation2 + $0xe0] sm:$0xff]
      %v3635 = vld [vmem:[#allocation2 + $0xe8] sm:$0xff]
      %v3636 = vld [vmem:[#allocation2 + $0xf0] sm:$0xff]
      %v3637 = vld [vmem:[#allocation2 + $0xf8] sm:$0xff]
      %v3638 = vmul.f32 %v3326, %v258
      %v3639 = vmul.f32 %v3335, %v259
      %v3640 = vmul.f32 %v3344, %v260
      %v3641 = vmul.f32 %v3353, %v261
      %v3642 = vmul.f32 %v3362, %v262
      %v3643 = vmul.f32 %v3371, %v263
      %v3644 = vmul.f32 %v3380, %v264
      %v3645 = vmul.f32 %v3389, %v265
      %v3646 = vmul.f32 %v3398, %v266
      %v3647 = vmul.f32 %v3407, %v267
      %v3648 = vmul.f32 %v3416, %v268
      %v3649 = vmul.f32 %v3425, %v269
      %v3650 = vmul.f32 %v3434, %v270
      %v3651 = vmul.f32 %v3443, %v271
      %v3652 = vmul.f32 %v3452, %v272
      %v3653 = vmul.f32 %v3461, %v273
      %v3654 = vmul.f32 %v3470, %v274
      %v3655 = vmul.f32 %v3479, %v275
      %v3656 = vmul.f32 %v3488, %v276
      %v3657 = vmul.f32 %v3497, %v277
      %v3658 = vmul.f32 %v3506, %v278
      %v3659 = vmul.f32 %v3515, %v279
      %v3660 = vmul.f32 %v3524, %v280
      %v3661 = vmul.f32 %v3533, %v281
      %v3662 = vmul.f32 %v3542, %v282
      %v3663 = vmul.f32 %v3551, %v283
      %v3664 = vmul.f32 %v3560, %v284
      %v3665 = vmul.f32 %v3569, %v285
      %v3666 = vmul.f32 %v3578, %v286
      %v3667 = vmul.f32 %v3587, %v287
      %v3668 = vmul.f32 %v3596, %v288
      %v3669 = vmul.f32 %v3605, %v289
      %3702 = vrot.lane.b32.xlu0 %v3638, 125
      %v3703 = vpop.permute.xlu0 %3702
      %3704 = vrot.lane.b32.xlu0 %v3639, 125
      %v3705 = vpop.permute.xlu0 %3704
      %3706 = vrot.lane.b32.xlu0 %v3640, 125
      %v3707 = vpop.permute.xlu0 %3706
      %3708 = vrot.lane.b32.xlu0 %v3641, 125
      %v3709 = vpop.permute.xlu0 %3708
      %3710 = vrot.lane.b32.xlu0 %v3642, 125
      %v3711 = vpop.permute.xlu0 %3710
      %3712 = vrot.lane.b32.xlu0 %v3643, 125
      %v3713 = vpop.permute.xlu0 %3712
      %3714 = vrot.lane.b32.xlu0 %v3644, 125
      %v3715 = vpop.permute.xlu0 %3714
      %3716 = vrot.lane.b32.xlu0 %v3645, 125
      %v3717 = vpop.permute.xlu0 %3716
      %3718 = vrot.lane.b32.xlu0 %v3646, 125
      %v3719 = vpop.permute.xlu0 %3718
      %3720 = vrot.lane.b32.xlu0 %v3647, 125
      %v3721 = vpop.permute.xlu0 %3720
      %3722 = vrot.lane.b32.xlu0 %v3648, 125
      %v3723 = vpop.permute.xlu0 %3722
      %3724 = vrot.lane.b32.xlu0 %v3649, 125
      %v3725 = vpop.permute.xlu0 %3724
      %3726 = vrot.lane.b32.xlu0 %v3650, 125
      %v3727 = vpop.permute.xlu0 %3726
      %3728 = vrot.lane.b32.xlu0 %v3651, 125
      %v3729 = vpop.permute.xlu0 %3728
      %3730 = vrot.lane.b32.xlu0 %v3652, 125
      %v3731 = vpop.permute.xlu0 %3730
      %3732 = vrot.lane.b32.xlu0 %v3653, 125
      %v3733 = vpop.permute.xlu0 %3732
      %3734 = vrot.lane.b32.xlu0 %v3654, 125
      %v3735 = vpop.permute.xlu0 %3734
      %3736 = vrot.lane.b32.xlu0 %v3655, 125
      %v3737 = vpop.permute.xlu0 %3736
      %3738 = vrot.lane.b32.xlu0 %v3656, 125
      %v3739 = vpop.permute.xlu0 %3738
      %3740 = vrot.lane.b32.xlu0 %v3657, 125
      %v3741 = vpop.permute.xlu0 %3740
      %3742 = vrot.lane.b32.xlu0 %v3658, 125
      %v3743 = vpop.permute.xlu0 %3742
      %3744 = vrot.lane.b32.xlu0 %v3659, 125
      %v3745 = vpop.permute.xlu0 %3744
      %3746 = vrot.lane.b32.xlu0 %v3660, 125
      %v3747 = vpop.permute.xlu0 %3746
      %3748 = vrot.lane.b32.xlu0 %v3661, 125
      %v3749 = vpop.permute.xlu0 %3748
      %3750 = vrot.lane.b32.xlu0 %v3662, 125
      %v3751 = vpop.permute.xlu0 %3750
      %3752 = vrot.lane.b32.xlu0 %v3663, 125
      %v3753 = vpop.permute.xlu0 %3752
      %3754 = vrot.lane.b32.xlu0 %v3664, 125
      %v3755 = vpop.permute.xlu0 %3754
      %3756 = vrot.lane.b32.xlu0 %v3665, 125
      %v3757 = vpop.permute.xlu0 %3756
      %3758 = vrot.lane.b32.xlu0 %v3666, 125
      %v3759 = vpop.permute.xlu0 %3758
      %3760 = vrot.lane.b32.xlu0 %v3667, 125
      %v3761 = vpop.permute.xlu0 %3760
      %3762 = vrot.lane.b32.xlu0 %v3668, 125
      %v3763 = vpop.permute.xlu0 %3762
      %3764 = vrot.lane.b32.xlu0 %v3669, 125
      %v3765 = vpop.permute.xlu0 %3764
      %v3798 = vadd.f32 %v3606, %v3703
      %v3799 = vadd.f32 %v3607, %v3705
      %v3800 = vadd.f32 %v3608, %v3707
      %v3801 = vadd.f32 %v3609, %v3709
      %v3802 = vadd.f32 %v3610, %v3711
      %v3803 = vadd.f32 %v3611, %v3713
      %v3804 = vadd.f32 %v3612, %v3715
      %v3805 = vadd.f32 %v3613, %v3717
      %v3806 = vadd.f32 %v3614, %v3719
      %v3807 = vadd.f32 %v3615, %v3721
      %v3808 = vadd.f32 %v3616, %v3723
      %v3809 = vadd.f32 %v3617, %v3725
      %v3810 = vadd.f32 %v3618, %v3727
      %v3811 = vadd.f32 %v3619, %v3729
      %v3812 = vadd.f32 %v3620, %v3731
      %v3813 = vadd.f32 %v3621, %v3733
      %v3814 = vadd.f32 %v3622, %v3735
      %v3815 = vadd.f32 %v3623, %v3737
      %v3816 = vadd.f32 %v3624, %v3739
      %v3817 = vadd.f32 %v3625, %v3741
      %v3818 = vadd.f32 %v3626, %v3743
      %v3819 = vadd.f32 %v3627, %v3745
      %v3820 = vadd.f32 %v3628, %v3747
      %v3821 = vadd.f32 %v3629, %v3749
      %v3822 = vadd.f32 %v3630, %v3751
      %v3823 = vadd.f32 %v3631, %v3753
      %v3824 = vadd.f32 %v3632, %v3755
      %v3825 = vadd.f32 %v3633, %v3757
      %v3826 = vadd.f32 %v3634, %v3759
      %v3827 = vadd.f32 %v3635, %v3761
      %v3828 = vadd.f32 %v3636, %v3763
      %v3829 = vadd.f32 %v3637, %v3765
      %vm3830 = vcmask 7168
      %3831 = vst.msk [vmem:[#allocation2] sm:$0xff] %vm3830, %v3798
      %3832 = vst.msk [vmem:[#allocation2 + $0x8] sm:$0xff] %vm3830, %v3799
      %3833 = vst.msk [vmem:[#allocation2 + $0x10] sm:$0xff] %vm3830, %v3800
      %3834 = vst.msk [vmem:[#allocation2 + $0x18] sm:$0xff] %vm3830, %v3801
      %3835 = vst.msk [vmem:[#allocation2 + $0x20] sm:$0xff] %vm3830, %v3802
      %3836 = vst.msk [vmem:[#allocation2 + $0x28] sm:$0xff] %vm3830, %v3803
      %3837 = vst.msk [vmem:[#allocation2 + $0x30] sm:$0xff] %vm3830, %v3804
      %3838 = vst.msk [vmem:[#allocation2 + $0x38] sm:$0xff] %vm3830, %v3805
      %3839 = vst.msk [vmem:[#allocation2 + $0x40] sm:$0xff] %vm3830, %v3806
      %3840 = vst.msk [vmem:[#allocation2 + $0x48] sm:$0xff] %vm3830, %v3807
      %3841 = vst.msk [vmem:[#allocation2 + $0x50] sm:$0xff] %vm3830, %v3808
      %3842 = vst.msk [vmem:[#allocation2 + $0x58] sm:$0xff] %vm3830, %v3809
      %3843 = vst.msk [vmem:[#allocation2 + $0x60] sm:$0xff] %vm3830, %v3810
      %3844 = vst.msk [vmem:[#allocation2 + $0x68] sm:$0xff] %vm3830, %v3811
      %3845 = vst.msk [vmem:[#allocation2 + $0x70] sm:$0xff] %vm3830, %v3812
      %3846 = vst.msk [vmem:[#allocation2 + $0x78] sm:$0xff] %vm3830, %v3813
      %3847 = vst.msk [vmem:[#allocation2 + $0x80] sm:$0xff] %vm3830, %v3814
      %3848 = vst.msk [vmem:[#allocation2 + $0x88] sm:$0xff] %vm3830, %v3815
      %3849 = vst.msk [vmem:[#allocation2 + $0x90] sm:$0xff] %vm3830, %v3816
      %3850 = vst.msk [vmem:[#allocation2 + $0x98] sm:$0xff] %vm3830, %v3817
      %3851 = vst.msk [vmem:[#allocation2 + $0xa0] sm:$0xff] %vm3830, %v3818
      %3852 = vst.msk [vmem:[#allocation2 + $0xa8] sm:$0xff] %vm3830, %v3819
      %3853 = vst.msk [vmem:[#allocation2 + $0xb0] sm:$0xff] %vm3830, %v3820
      %3854 = vst.msk [vmem:[#allocation2 + $0xb8] sm:$0xff] %vm3830, %v3821
      %3855 = vst.msk [vmem:[#allocation2 + $0xc0] sm:$0xff] %vm3830, %v3822
      %3856 = vst.msk [vmem:[#allocation2 + $0xc8] sm:$0xff] %vm3830, %v3823
      %3857 = vst.msk [vmem:[#allocation2 + $0xd0] sm:$0xff] %vm3830, %v3824
      %3858 = vst.msk [vmem:[#allocation2 + $0xd8] sm:$0xff] %vm3830, %v3825
      %3859 = vst.msk [vmem:[#allocation2 + $0xe0] sm:$0xff] %vm3830, %v3826
      %3860 = vst.msk [vmem:[#allocation2 + $0xe8] sm:$0xff] %vm3830, %v3827
      %3861 = vst.msk [vmem:[#allocation2 + $0xf0] sm:$0xff] %vm3830, %v3828
      %3862 = vst.msk [vmem:[#allocation2 + $0xf8] sm:$0xff] %vm3830, %v3829
      %v3863 = vld [vmem:[#allocation3] sm:$0xff]
      %v3864 = vld [vmem:[#allocation3 + $0x8] sm:$0xff]
      %v3865 = vld [vmem:[#allocation3 + $0x10] sm:$0xff]
      %v3866 = vld [vmem:[#allocation3 + $0x18] sm:$0xff]
      %v3867 = vld [vmem:[#allocation3 + $0x20] sm:$0xff]
      %v3868 = vld [vmem:[#allocation3 + $0x28] sm:$0xff]
      %v3869 = vld [vmem:[#allocation3 + $0x30] sm:$0xff]
      %v3870 = vld [vmem:[#allocation3 + $0x38] sm:$0xff]
      %v3871 = vld [vmem:[#allocation3 + $0x40] sm:$0xff]
      %v3872 = vld [vmem:[#allocation3 + $0x48] sm:$0xff]
      %v3873 = vld [vmem:[#allocation3 + $0x50] sm:$0xff]
      %v3874 = vld [vmem:[#allocation3 + $0x58] sm:$0xff]
      %v3875 = vld [vmem:[#allocation3 + $0x60] sm:$0xff]
      %v3876 = vld [vmem:[#allocation3 + $0x68] sm:$0xff]
      %v3877 = vld [vmem:[#allocation3 + $0x70] sm:$0xff]
      %v3878 = vld [vmem:[#allocation3 + $0x78] sm:$0xff]
      %v3879 = vld [vmem:[#allocation3 + $0x80] sm:$0xff]
      %v3880 = vld [vmem:[#allocation3 + $0x88] sm:$0xff]
      %v3881 = vld [vmem:[#allocation3 + $0x90] sm:$0xff]
      %v3882 = vld [vmem:[#allocation3 + $0x98] sm:$0xff]
      %v3883 = vld [vmem:[#allocation3 + $0xa0] sm:$0xff]
      %v3884 = vld [vmem:[#allocation3 + $0xa8] sm:$0xff]
      %v3885 = vld [vmem:[#allocation3 + $0xb0] sm:$0xff]
      %v3886 = vld [vmem:[#allocation3 + $0xb8] sm:$0xff]
      %v3887 = vld [vmem:[#allocation3 + $0xc0] sm:$0xff]
      %v3888 = vld [vmem:[#allocation3 + $0xc8] sm:$0xff]
      %v3889 = vld [vmem:[#allocation3 + $0xd0] sm:$0xff]
      %v3890 = vld [vmem:[#allocation3 + $0xd8] sm:$0xff]
      %v3891 = vld [vmem:[#allocation3 + $0xe0] sm:$0xff]
      %v3892 = vld [vmem:[#allocation3 + $0xe8] sm:$0xff]
      %v3893 = vld [vmem:[#allocation3 + $0xf0] sm:$0xff]
      %v3894 = vld [vmem:[#allocation3 + $0xf8] sm:$0xff]
      %3895 = vrot.lane.b32.xlu0 %v258, 125
      %v3896 = vpop.permute.xlu0 %3895
      %3897 = vrot.lane.b32.xlu0 %v259, 125
      %v3898 = vpop.permute.xlu0 %3897
      %3899 = vrot.lane.b32.xlu0 %v260, 125
      %v3900 = vpop.permute.xlu0 %3899
      %3901 = vrot.lane.b32.xlu0 %v261, 125
      %v3902 = vpop.permute.xlu0 %3901
      %3903 = vrot.lane.b32.xlu0 %v262, 125
      %v3904 = vpop.permute.xlu0 %3903
      %3905 = vrot.lane.b32.xlu0 %v263, 125
      %v3906 = vpop.permute.xlu0 %3905
      %3907 = vrot.lane.b32.xlu0 %v264, 125
      %v3908 = vpop.permute.xlu0 %3907
      %3909 = vrot.lane.b32.xlu0 %v265, 125
      %v3910 = vpop.permute.xlu0 %3909
      %3911 = vrot.lane.b32.xlu0 %v266, 125
      %v3912 = vpop.permute.xlu0 %3911
      %3913 = vrot.lane.b32.xlu0 %v267, 125
      %v3914 = vpop.permute.xlu0 %3913
      %3915 = vrot.lane.b32.xlu0 %v268, 125
      %v3916 = vpop.permute.xlu0 %3915
      %3917 = vrot.lane.b32.xlu0 %v269, 125
      %v3918 = vpop.permute.xlu0 %3917
      %3919 = vrot.lane.b32.xlu0 %v270, 125
      %v3920 = vpop.permute.xlu0 %3919
      %3921 = vrot.lane.b32.xlu0 %v271, 125
      %v3922 = vpop.permute.xlu0 %3921
      %3923 = vrot.lane.b32.xlu0 %v272, 125
      %v3924 = vpop.permute.xlu0 %3923
      %3925 = vrot.lane.b32.xlu0 %v273, 125
      %v3926 = vpop.permute.xlu0 %3925
      %3927 = vrot.lane.b32.xlu0 %v274, 125
      %v3928 = vpop.permute.xlu0 %3927
      %3929 = vrot.lane.b32.xlu0 %v275, 125
      %v3930 = vpop.permute.xlu0 %3929
      %3931 = vrot.lane.b32.xlu0 %v276, 125
      %v3932 = vpop.permute.xlu0 %3931
      %3933 = vrot.lane.b32.xlu0 %v277, 125
      %v3934 = vpop.permute.xlu0 %3933
      %3935 = vrot.lane.b32.xlu0 %v278, 125
      %v3936 = vpop.permute.xlu0 %3935
      %3937 = vrot.lane.b32.xlu0 %v279, 125
      %v3938 = vpop.permute.xlu0 %3937
      %3939 = vrot.lane.b32.xlu0 %v280, 125
      %v3940 = vpop.permute.xlu0 %3939
      %3941 = vrot.lane.b32.xlu0 %v281, 125
      %v3942 = vpop.permute.xlu0 %3941
      %3943 = vrot.lane.b32.xlu0 %v282, 125
      %v3944 = vpop.permute.xlu0 %3943
      %3945 = vrot.lane.b32.xlu0 %v283, 125
      %v3946 = vpop.permute.xlu0 %3945
      %3947 = vrot.lane.b32.xlu0 %v284, 125
      %v3948 = vpop.permute.xlu0 %3947
      %3949 = vrot.lane.b32.xlu0 %v285, 125
      %v3950 = vpop.permute.xlu0 %3949
      %3951 = vrot.lane.b32.xlu0 %v286, 125
      %v3952 = vpop.permute.xlu0 %3951
      %3953 = vrot.lane.b32.xlu0 %v287, 125
      %v3954 = vpop.permute.xlu0 %3953
      %3955 = vrot.lane.b32.xlu0 %v288, 125
      %v3956 = vpop.permute.xlu0 %3955
      %3957 = vrot.lane.b32.xlu0 %v289, 125
      %v3958 = vpop.permute.xlu0 %3957
      %v3991 = vadd.f32 %v3863, %v3896
      %v3992 = vadd.f32 %v3864, %v3898
      %v3993 = vadd.f32 %v3865, %v3900
      %v3994 = vadd.f32 %v3866, %v3902
      %v3995 = vadd.f32 %v3867, %v3904
      %v3996 = vadd.f32 %v3868, %v3906
      %v3997 = vadd.f32 %v3869, %v3908
      %v3998 = vadd.f32 %v3870, %v3910
      %v3999 = vadd.f32 %v3871, %v3912
      %v4000 = vadd.f32 %v3872, %v3914
      %v4001 = vadd.f32 %v3873, %v3916
      %v4002 = vadd.f32 %v3874, %v3918
      %v4003 = vadd.f32 %v3875, %v3920
      %v4004 = vadd.f32 %v3876, %v3922
      %v4005 = vadd.f32 %v3877, %v3924
      %v4006 = vadd.f32 %v3878, %v3926
      %v4007 = vadd.f32 %v3879, %v3928
      %v4008 = vadd.f32 %v3880, %v3930
      %v4009 = vadd.f32 %v3881, %v3932
      %v4010 = vadd.f32 %v3882, %v3934
      %v4011 = vadd.f32 %v3883, %v3936
      %v4012 = vadd.f32 %v3884, %v3938
      %v4013 = vadd.f32 %v3885, %v3940
      %v4014 = vadd.f32 %v3886, %v3942
      %v4015 = vadd.f32 %v3887, %v3944
      %v4016 = vadd.f32 %v3888, %v3946
      %v4017 = vadd.f32 %v3889, %v3948
      %v4018 = vadd.f32 %v3890, %v3950
      %v4019 = vadd.f32 %v3891, %v3952
      %v4020 = vadd.f32 %v3892, %v3954
      %v4021 = vadd.f32 %v3893, %v3956
      %v4022 = vadd.f32 %v3894, %v3958
      %4023 = vst.msk [vmem:[#allocation3] sm:$0xff] %vm3830, %v3991
      %4024 = vst.msk [vmem:[#allocation3 + $0x8] sm:$0xff] %vm3830, %v3992
      %4025 = vst.msk [vmem:[#allocation3 + $0x10] sm:$0xff] %vm3830, %v3993
      %4026 = vst.msk [vmem:[#allocation3 + $0x18] sm:$0xff] %vm3830, %v3994
      %4027 = vst.msk [vmem:[#allocation3 + $0x20] sm:$0xff] %vm3830, %v3995
      %4028 = vst.msk [vmem:[#allocation3 + $0x28] sm:$0xff] %vm3830, %v3996
      %4029 = vst.msk [vmem:[#allocation3 + $0x30] sm:$0xff] %vm3830, %v3997
      %4030 = vst.msk [vmem:[#allocation3 + $0x38] sm:$0xff] %vm3830, %v3998
      %4031 = vst.msk [vmem:[#allocation3 + $0x40] sm:$0xff] %vm3830, %v3999
      %4032 = vst.msk [vmem:[#allocation3 + $0x48] sm:$0xff] %vm3830, %v4000
      %4033 = vst.msk [vmem:[#allocation3 + $0x50] sm:$0xff] %vm3830, %v4001
      %4034 = vst.msk [vmem:[#allocation3 + $0x58] sm:$0xff] %vm3830, %v4002
      %4035 = vst.msk [vmem:[#allocation3 + $0x60] sm:$0xff] %vm3830, %v4003
      %4036 = vst.msk [vmem:[#allocation3 + $0x68] sm:$0xff] %vm3830, %v4004
      %4037 = vst.msk [vmem:[#allocation3 + $0x70] sm:$0xff] %vm3830, %v4005
      %4038 = vst.msk [vmem:[#allocation3 + $0x78] sm:$0xff] %vm3830, %v4006
      %4039 = vst.msk [vmem:[#allocation3 + $0x80] sm:$0xff] %vm3830, %v4007
      %4040 = vst.msk [vmem:[#allocation3 + $0x88] sm:$0xff] %vm3830, %v4008
      %4041 = vst.msk [vmem:[#allocation3 + $0x90] sm:$0xff] %vm3830, %v4009
      %4042 = vst.msk [vmem:[#allocation3 + $0x98] sm:$0xff] %vm3830, %v4010
      %4043 = vst.msk [vmem:[#allocation3 + $0xa0] sm:$0xff] %vm3830, %v4011
      %4044 = vst.msk [vmem:[#allocation3 + $0xa8] sm:$0xff] %vm3830, %v4012
      %4045 = vst.msk [vmem:[#allocation3 + $0xb0] sm:$0xff] %vm3830, %v4013
      %4046 = vst.msk [vmem:[#allocation3 + $0xb8] sm:$0xff] %vm3830, %v4014
      %4047 = vst.msk [vmem:[#allocation3 + $0xc0] sm:$0xff] %vm3830, %v4015
      %4048 = vst.msk [vmem:[#allocation3 + $0xc8] sm:$0xff] %vm3830, %v4016
      %4049 = vst.msk [vmem:[#allocation3 + $0xd0] sm:$0xff] %vm3830, %v4017
      %4050 = vst.msk [vmem:[#allocation3 + $0xd8] sm:$0xff] %vm3830, %v4018
      %4051 = vst.msk [vmem:[#allocation3 + $0xe0] sm:$0xff] %vm3830, %v4019
      %4052 = vst.msk [vmem:[#allocation3 + $0xe8] sm:$0xff] %vm3830, %v4020
      %4053 = vst.msk [vmem:[#allocation3 + $0xf0] sm:$0xff] %vm3830, %v4021
      %4054 = vst.msk [vmem:[#allocation3 + $0xf8] sm:$0xff] %vm3830, %v4022
      %v4055 = vsub.f32 1.0, %v258
      %v4056 = vsub.f32 1.0, %v259
      %v4057 = vsub.f32 1.0, %v260
      %v4058 = vsub.f32 1.0, %v261
      %v4059 = vsub.f32 1.0, %v262
      %v4060 = vsub.f32 1.0, %v263
      %v4061 = vsub.f32 1.0, %v264
      %v4062 = vsub.f32 1.0, %v265
      %v4063 = vsub.f32 1.0, %v266
      %v4064 = vsub.f32 1.0, %v267
      %v4065 = vsub.f32 1.0, %v268
      %v4066 = vsub.f32 1.0, %v269
      %v4067 = vsub.f32 1.0, %v270
      %v4068 = vsub.f32 1.0, %v271
      %v4069 = vsub.f32 1.0, %v272
      %v4070 = vsub.f32 1.0, %v273
      %v4071 = vsub.f32 1.0, %v274
      %v4072 = vsub.f32 1.0, %v275
      %v4073 = vsub.f32 1.0, %v276
      %v4074 = vsub.f32 1.0, %v277
      %v4075 = vsub.f32 1.0, %v278
      %v4076 = vsub.f32 1.0, %v279
      %v4077 = vsub.f32 1.0, %v280
      %v4078 = vsub.f32 1.0, %v281
      %v4079 = vsub.f32 1.0, %v282
      %v4080 = vsub.f32 1.0, %v283
      %v4081 = vsub.f32 1.0, %v284
      %v4082 = vsub.f32 1.0, %v285
      %v4083 = vsub.f32 1.0, %v286
      %v4084 = vsub.f32 1.0, %v287
      %v4085 = vsub.f32 1.0, %v288
      %v4086 = vsub.f32 1.0, %v289
      %v4087 = vmul.f32 %v4055, 1e+30
      %v4088 = vmul.f32 %v4056, 1e+30
      %v4089 = vmul.f32 %v4057, 1e+30
      %v4090 = vmul.f32 %v4058, 1e+30
      %v4091 = vmul.f32 %v4059, 1e+30
      %v4092 = vmul.f32 %v4060, 1e+30
      %v4093 = vmul.f32 %v4061, 1e+30
      %v4094 = vmul.f32 %v4062, 1e+30
      %v4095 = vmul.f32 %v4063, 1e+30
      %v4096 = vmul.f32 %v4064, 1e+30
      %v4097 = vmul.f32 %v4065, 1e+30
      %v4098 = vmul.f32 %v4066, 1e+30
      %v4099 = vmul.f32 %v4067, 1e+30
      %v4100 = vmul.f32 %v4068, 1e+30
      %v4101 = vmul.f32 %v4069, 1e+30
      %v4102 = vmul.f32 %v4070, 1e+30
      %v4103 = vmul.f32 %v4071, 1e+30
      %v4104 = vmul.f32 %v4072, 1e+30
      %v4105 = vmul.f32 %v4073, 1e+30
      %v4106 = vmul.f32 %v4074, 1e+30
      %v4107 = vmul.f32 %v4075, 1e+30
      %v4108 = vmul.f32 %v4076, 1e+30
      %v4109 = vmul.f32 %v4077, 1e+30
      %v4110 = vmul.f32 %v4078, 1e+30
      %v4111 = vmul.f32 %v4079, 1e+30
      %v4112 = vmul.f32 %v4080, 1e+30
      %v4113 = vmul.f32 %v4081, 1e+30
      %v4114 = vmul.f32 %v4082, 1e+30
      %v4115 = vmul.f32 %v4083, 1e+30
      %v4116 = vmul.f32 %v4084, 1e+30
      %v4117 = vmul.f32 %v4085, 1e+30
      %v4118 = vmul.f32 %v4086, 1e+30
      %4120 = vset.pattern.permute.xlu0 3
      %4121 = vperm.xlu0 %4120, %v4087
      %v4122 = vpop.permute.xlu0 %4121
      %4125 = vset.pattern.permute.xlu0 3
      %4126 = vperm.xlu0 %4125, %v4088
      %v4127 = vpop.permute.xlu0 %4126
      %4130 = vset.pattern.permute.xlu0 3
      %4131 = vperm.xlu0 %4130, %v4089
      %v4132 = vpop.permute.xlu0 %4131
      %4135 = vset.pattern.permute.xlu0 3
      %4136 = vperm.xlu0 %4135, %v4090
      %v4137 = vpop.permute.xlu0 %4136
      %4140 = vset.pattern.permute.xlu0 3
      %4141 = vperm.xlu0 %4140, %v4091
      %v4142 = vpop.permute.xlu0 %4141
      %4145 = vset.pattern.permute.xlu0 3
      %4146 = vperm.xlu0 %4145, %v4092
      %v4147 = vpop.permute.xlu0 %4146
      %4150 = vset.pattern.permute.xlu0 3
      %4151 = vperm.xlu0 %4150, %v4093
      %v4152 = vpop.permute.xlu0 %4151
      %4155 = vset.pattern.permute.xlu0 3
      %4156 = vperm.xlu0 %4155, %v4094
      %v4157 = vpop.permute.xlu0 %4156
      %4160 = vset.pattern.permute.xlu0 3
      %4161 = vperm.xlu0 %4160, %v4095
      %v4162 = vpop.permute.xlu0 %4161
      %4165 = vset.pattern.permute.xlu0 3
      %4166 = vperm.xlu0 %4165, %v4096
      %v4167 = vpop.permute.xlu0 %4166
      %4170 = vset.pattern.permute.xlu0 3
      %4171 = vperm.xlu0 %4170, %v4097
      %v4172 = vpop.permute.xlu0 %4171
      %4175 = vset.pattern.permute.xlu0 3
      %4176 = vperm.xlu0 %4175, %v4098
      %v4177 = vpop.permute.xlu0 %4176
      %4180 = vset.pattern.permute.xlu0 3
      %4181 = vperm.xlu0 %4180, %v4099
      %v4182 = vpop.permute.xlu0 %4181
      %4185 = vset.pattern.permute.xlu0 3
      %4186 = vperm.xlu0 %4185, %v4100
      %v4187 = vpop.permute.xlu0 %4186
      %4190 = vset.pattern.permute.xlu0 3
      %4191 = vperm.xlu0 %4190, %v4101
      %v4192 = vpop.permute.xlu0 %4191
      %4195 = vset.pattern.permute.xlu0 3
      %4196 = vperm.xlu0 %4195, %v4102
      %v4197 = vpop.permute.xlu0 %4196
      %4200 = vset.pattern.permute.xlu0 3
      %4201 = vperm.xlu0 %4200, %v4103
      %v4202 = vpop.permute.xlu0 %4201
      %4205 = vset.pattern.permute.xlu0 3
      %4206 = vperm.xlu0 %4205, %v4104
      %v4207 = vpop.permute.xlu0 %4206
      %4210 = vset.pattern.permute.xlu0 3
      %4211 = vperm.xlu0 %4210, %v4105
      %v4212 = vpop.permute.xlu0 %4211
      %4215 = vset.pattern.permute.xlu0 3
      %4216 = vperm.xlu0 %4215, %v4106
      %v4217 = vpop.permute.xlu0 %4216
      %4220 = vset.pattern.permute.xlu0 3
      %4221 = vperm.xlu0 %4220, %v4107
      %v4222 = vpop.permute.xlu0 %4221
      %4225 = vset.pattern.permute.xlu0 3
      %4226 = vperm.xlu0 %4225, %v4108
      %v4227 = vpop.permute.xlu0 %4226
      %4230 = vset.pattern.permute.xlu0 3
      %4231 = vperm.xlu0 %4230, %v4109
      %v4232 = vpop.permute.xlu0 %4231
      %4235 = vset.pattern.permute.xlu0 3
      %4236 = vperm.xlu0 %4235, %v4110
      %v4237 = vpop.permute.xlu0 %4236
      %4240 = vset.pattern.permute.xlu0 3
      %4241 = vperm.xlu0 %4240, %v4111
      %v4242 = vpop.permute.xlu0 %4241
      %4245 = vset.pattern.permute.xlu0 3
      %4246 = vperm.xlu0 %4245, %v4112
      %v4247 = vpop.permute.xlu0 %4246
      %4250 = vset.pattern.permute.xlu0 3
      %4251 = vperm.xlu0 %4250, %v4113
      %v4252 = vpop.permute.xlu0 %4251
      %4255 = vset.pattern.permute.xlu0 3
      %4256 = vperm.xlu0 %4255, %v4114
      %v4257 = vpop.permute.xlu0 %4256
      %4260 = vset.pattern.permute.xlu0 3
      %4261 = vperm.xlu0 %4260, %v4115
      %v4262 = vpop.permute.xlu0 %4261
      %4265 = vset.pattern.permute.xlu0 3
      %4266 = vperm.xlu0 %4265, %v4116
      %v4267 = vpop.permute.xlu0 %4266
      %4270 = vset.pattern.permute.xlu0 3
      %4271 = vperm.xlu0 %4270, %v4117
      %v4272 = vpop.permute.xlu0 %4271
      %4275 = vset.pattern.permute.xlu0 3
      %4276 = vperm.xlu0 %4275, %v4118
      %v4277 = vpop.permute.xlu0 %4276
      %v4279 = vadd.f32 %v2722, %v4122
      %v4280 = vadd.f32 %v2723, %v4122
      %v4281 = vadd.f32 %v2724, %v4122
      %v4282 = vadd.f32 %v2725, %v4122
      %v4283 = vadd.f32 %v2726, %v4122
      %v4284 = vadd.f32 %v2727, %v4122
      %v4285 = vadd.f32 %v2728, %v4122
      %v4286 = vadd.f32 %v2729, %v4122
      %v4287 = vadd.f32 %v2730, %v4127
      %v4288 = vadd.f32 %v2731, %v4127
      %v4289 = vadd.f32 %v2732, %v4127
      %v4290 = vadd.f32 %v2733, %v4127
      %v4291 = vadd.f32 %v2734, %v4127
      %v4292 = vadd.f32 %v2735, %v4127
      %v4293 = vadd.f32 %v2736, %v4127
      %v4294 = vadd.f32 %v2737, %v4127
      %v4295 = vadd.f32 %v2738, %v4132
      %v4296 = vadd.f32 %v2739, %v4132
      %v4297 = vadd.f32 %v2740, %v4132
      %v4298 = vadd.f32 %v2741, %v4132
      %v4299 = vadd.f32 %v2742, %v4132
      %v4300 = vadd.f32 %v2743, %v4132
      %v4301 = vadd.f32 %v2744, %v4132
      %v4302 = vadd.f32 %v2745, %v4132
      %v4303 = vadd.f32 %v2746, %v4137
      %v4304 = vadd.f32 %v2747, %v4137
      %v4305 = vadd.f32 %v2748, %v4137
      %v4306 = vadd.f32 %v2749, %v4137
      %v4307 = vadd.f32 %v2750, %v4137
      %v4308 = vadd.f32 %v2751, %v4137
      %v4309 = vadd.f32 %v2752, %v4137
      %v4310 = vadd.f32 %v2753, %v4137
      %v4311 = vadd.f32 %v2754, %v4142
      %v4312 = vadd.f32 %v2755, %v4142
      %v4313 = vadd.f32 %v2756, %v4142
      %v4314 = vadd.f32 %v2757, %v4142
      %v4315 = vadd.f32 %v2758, %v4142
      %v4316 = vadd.f32 %v2759, %v4142
      %v4317 = vadd.f32 %v2760, %v4142
      %v4318 = vadd.f32 %v2761, %v4142
      %v4319 = vadd.f32 %v2762, %v4147
      %v4320 = vadd.f32 %v2763, %v4147
      %v4321 = vadd.f32 %v2764, %v4147
      %v4322 = vadd.f32 %v2765, %v4147
      %v4323 = vadd.f32 %v2766, %v4147
      %v4324 = vadd.f32 %v2767, %v4147
      %v4325 = vadd.f32 %v2768, %v4147
      %v4326 = vadd.f32 %v2769, %v4147
      %v4327 = vadd.f32 %v2770, %v4152
      %v4328 = vadd.f32 %v2771, %v4152
      %v4329 = vadd.f32 %v2772, %v4152
      %v4330 = vadd.f32 %v2773, %v4152
      %v4331 = vadd.f32 %v2774, %v4152
      %v4332 = vadd.f32 %v2775, %v4152
      %v4333 = vadd.f32 %v2776, %v4152
      %v4334 = vadd.f32 %v2777, %v4152
      %v4335 = vadd.f32 %v2778, %v4157
      %v4336 = vadd.f32 %v2779, %v4157
      %v4337 = vadd.f32 %v2780, %v4157
      %v4338 = vadd.f32 %v2781, %v4157
      %v4339 = vadd.f32 %v2782, %v4157
      %v4340 = vadd.f32 %v2783, %v4157
      %v4341 = vadd.f32 %v2784, %v4157
      %v4342 = vadd.f32 %v2785, %v4157
      %v4343 = vadd.f32 %v2786, %v4162
      %v4344 = vadd.f32 %v2787, %v4162
      %v4345 = vadd.f32 %v2788, %v4162
      %v4346 = vadd.f32 %v2789, %v4162
      %v4347 = vadd.f32 %v2790, %v4162
      %v4348 = vadd.f32 %v2791, %v4162
      %v4349 = vadd.f32 %v2792, %v4162
      %v4350 = vadd.f32 %v2793, %v4162
      %v4351 = vadd.f32 %v2794, %v4167
      %v4352 = vadd.f32 %v2795, %v4167
      %v4353 = vadd.f32 %v2796, %v4167
      %v4354 = vadd.f32 %v2797, %v4167
      %v4355 = vadd.f32 %v2798, %v4167
      %v4356 = vadd.f32 %v2799, %v4167
      %v4357 = vadd.f32 %v2800, %v4167
      %v4358 = vadd.f32 %v2801, %v4167
      %v4359 = vadd.f32 %v2802, %v4172
      %v4360 = vadd.f32 %v2803, %v4172
      %v4361 = vadd.f32 %v2804, %v4172
      %v4362 = vadd.f32 %v2805, %v4172
      %v4363 = vadd.f32 %v2806, %v4172
      %v4364 = vadd.f32 %v2807, %v4172
      %v4365 = vadd.f32 %v2808, %v4172
      %v4366 = vadd.f32 %v2809, %v4172
      %v4367 = vadd.f32 %v2810, %v4177
      %v4368 = vadd.f32 %v2811, %v4177
      %v4369 = vadd.f32 %v2812, %v4177
      %v4370 = vadd.f32 %v2813, %v4177
      %v4371 = vadd.f32 %v2814, %v4177
      %v4372 = vadd.f32 %v2815, %v4177
      %v4373 = vadd.f32 %v2816, %v4177
      %v4374 = vadd.f32 %v2817, %v4177
      %v4375 = vadd.f32 %v2818, %v4182
      %v4376 = vadd.f32 %v2819, %v4182
      %v4377 = vadd.f32 %v2820, %v4182
      %v4378 = vadd.f32 %v2821, %v4182
      %v4379 = vadd.f32 %v2822, %v4182
      %v4380 = vadd.f32 %v2823, %v4182
      %v4381 = vadd.f32 %v2824, %v4182
      %v4382 = vadd.f32 %v2825, %v4182
      %v4383 = vadd.f32 %v2826, %v4187
      %v4384 = vadd.f32 %v2827, %v4187
      %v4385 = vadd.f32 %v2828, %v4187
      %v4386 = vadd.f32 %v2829, %v4187
      %v4387 = vadd.f32 %v2830, %v4187
      %v4388 = vadd.f32 %v2831, %v4187
      %v4389 = vadd.f32 %v2832, %v4187
      %v4390 = vadd.f32 %v2833, %v4187
      %v4391 = vadd.f32 %v2834, %v4192
      %v4392 = vadd.f32 %v2835, %v4192
      %v4393 = vadd.f32 %v2836, %v4192
      %v4394 = vadd.f32 %v2837, %v4192
      %v4395 = vadd.f32 %v2838, %v4192
      %v4396 = vadd.f32 %v2839, %v4192
      %v4397 = vadd.f32 %v2840, %v4192
      %v4398 = vadd.f32 %v2841, %v4192
      %v4399 = vadd.f32 %v2842, %v4197
      %v4400 = vadd.f32 %v2843, %v4197
      %v4401 = vadd.f32 %v2844, %v4197
      %v4402 = vadd.f32 %v2845, %v4197
      %v4403 = vadd.f32 %v2846, %v4197
      %v4404 = vadd.f32 %v2847, %v4197
      %v4405 = vadd.f32 %v2848, %v4197
      %v4406 = vadd.f32 %v2849, %v4197
      %v4407 = vadd.f32 %v2850, %v4202
      %v4408 = vadd.f32 %v2851, %v4202
      %v4409 = vadd.f32 %v2852, %v4202
      %v4410 = vadd.f32 %v2853, %v4202
      %v4411 = vadd.f32 %v2854, %v4202
      %v4412 = vadd.f32 %v2855, %v4202
      %v4413 = vadd.f32 %v2856, %v4202
      %v4414 = vadd.f32 %v2857, %v4202
      %v4415 = vadd.f32 %v2858, %v4207
      %v4416 = vadd.f32 %v2859, %v4207
      %v4417 = vadd.f32 %v2860, %v4207
      %v4418 = vadd.f32 %v2861, %v4207
      %v4419 = vadd.f32 %v2862, %v4207
      %v4420 = vadd.f32 %v2863, %v4207
      %v4421 = vadd.f32 %v2864, %v4207
      %v4422 = vadd.f32 %v2865, %v4207
      %v4423 = vadd.f32 %v2866, %v4212
      %v4424 = vadd.f32 %v2867, %v4212
      %v4425 = vadd.f32 %v2868, %v4212
      %v4426 = vadd.f32 %v2869, %v4212
      %v4427 = vadd.f32 %v2870, %v4212
      %v4428 = vadd.f32 %v2871, %v4212
      %v4429 = vadd.f32 %v2872, %v4212
      %v4430 = vadd.f32 %v2873, %v4212
      %v4431 = vadd.f32 %v2874, %v4217
      %v4432 = vadd.f32 %v2875, %v4217
      %v4433 = vadd.f32 %v2876, %v4217
      %v4434 = vadd.f32 %v2877, %v4217
      %v4435 = vadd.f32 %v2878, %v4217
      %v4436 = vadd.f32 %v2879, %v4217
      %v4437 = vadd.f32 %v2880, %v4217
      %v4438 = vadd.f32 %v2881, %v4217
      %v4439 = vadd.f32 %v2882, %v4222
      %v4440 = vadd.f32 %v2883, %v4222
      %v4441 = vadd.f32 %v2884, %v4222
      %v4442 = vadd.f32 %v2885, %v4222
      %v4443 = vadd.f32 %v2886, %v4222
      %v4444 = vadd.f32 %v2887, %v4222
      %v4445 = vadd.f32 %v2888, %v4222
      %v4446 = vadd.f32 %v2889, %v4222
      %v4447 = vadd.f32 %v2890, %v4227
      %v4448 = vadd.f32 %v2891, %v4227
      %v4449 = vadd.f32 %v2892, %v4227
      %v4450 = vadd.f32 %v2893, %v4227
      %v4451 = vadd.f32 %v2894, %v4227
      %v4452 = vadd.f32 %v2895, %v4227
      %v4453 = vadd.f32 %v2896, %v4227
      %v4454 = vadd.f32 %v2897, %v4227
      %v4455 = vadd.f32 %v2898, %v4232
      %v4456 = vadd.f32 %v2899, %v4232
      %v4457 = vadd.f32 %v2900, %v4232
      %v4458 = vadd.f32 %v2901, %v4232
      %v4459 = vadd.f32 %v2902, %v4232
      %v4460 = vadd.f32 %v2903, %v4232
      %v4461 = vadd.f32 %v2904, %v4232
      %v4462 = vadd.f32 %v2905, %v4232
      %v4463 = vadd.f32 %v2906, %v4237
      %v4464 = vadd.f32 %v2907, %v4237
      %v4465 = vadd.f32 %v2908, %v4237
      %v4466 = vadd.f32 %v2909, %v4237
      %v4467 = vadd.f32 %v2910, %v4237
      %v4468 = vadd.f32 %v2911, %v4237
      %v4469 = vadd.f32 %v2912, %v4237
      %v4470 = vadd.f32 %v2913, %v4237
      %v4471 = vadd.f32 %v2914, %v4242
      %v4472 = vadd.f32 %v2915, %v4242
      %v4473 = vadd.f32 %v2916, %v4242
      %v4474 = vadd.f32 %v2917, %v4242
      %v4475 = vadd.f32 %v2918, %v4242
      %v4476 = vadd.f32 %v2919, %v4242
      %v4477 = vadd.f32 %v2920, %v4242
      %v4478 = vadd.f32 %v2921, %v4242
      %v4479 = vadd.f32 %v2922, %v4247
      %v4480 = vadd.f32 %v2923, %v4247
      %v4481 = vadd.f32 %v2924, %v4247
      %v4482 = vadd.f32 %v2925, %v4247
      %v4483 = vadd.f32 %v2926, %v4247
      %v4484 = vadd.f32 %v2927, %v4247
      %v4485 = vadd.f32 %v2928, %v4247
      %v4486 = vadd.f32 %v2929, %v4247
      %v4487 = vadd.f32 %v2930, %v4252
      %v4488 = vadd.f32 %v2931, %v4252
      %v4489 = vadd.f32 %v2932, %v4252
      %v4490 = vadd.f32 %v2933, %v4252
      %v4491 = vadd.f32 %v2934, %v4252
      %v4492 = vadd.f32 %v2935, %v4252
      %v4493 = vadd.f32 %v2936, %v4252
      %v4494 = vadd.f32 %v2937, %v4252
      %v4495 = vadd.f32 %v2938, %v4257
      %v4496 = vadd.f32 %v2939, %v4257
      %v4497 = vadd.f32 %v2940, %v4257
      %v4498 = vadd.f32 %v2941, %v4257
      %v4499 = vadd.f32 %v2942, %v4257
      %v4500 = vadd.f32 %v2943, %v4257
      %v4501 = vadd.f32 %v2944, %v4257
      %v4502 = vadd.f32 %v2945, %v4257
      %v4503 = vadd.f32 %v2946, %v4262
      %v4504 = vadd.f32 %v2947, %v4262
      %v4505 = vadd.f32 %v2948, %v4262
      %v4506 = vadd.f32 %v2949, %v4262
      %v4507 = vadd.f32 %v2950, %v4262
      %v4508 = vadd.f32 %v2951, %v4262
      %v4509 = vadd.f32 %v2952, %v4262
      %v4510 = vadd.f32 %v2953, %v4262
      %v4511 = vadd.f32 %v2954, %v4267
      %v4512 = vadd.f32 %v2955, %v4267
      %v4513 = vadd.f32 %v2956, %v4267
      %v4514 = vadd.f32 %v2957, %v4267
      %v4515 = vadd.f32 %v2958, %v4267
      %v4516 = vadd.f32 %v2959, %v4267
      %v4517 = vadd.f32 %v2960, %v4267
      %v4518 = vadd.f32 %v2961, %v4267
      %v4519 = vadd.f32 %v2962, %v4272
      %v4520 = vadd.f32 %v2963, %v4272
      %v4521 = vadd.f32 %v2964, %v4272
      %v4522 = vadd.f32 %v2965, %v4272
      %v4523 = vadd.f32 %v2966, %v4272
      %v4524 = vadd.f32 %v2967, %v4272
      %v4525 = vadd.f32 %v2968, %v4272
      %v4526 = vadd.f32 %v2969, %v4272
      %v4527 = vadd.f32 %v2970, %v4277
      %v4528 = vadd.f32 %v2971, %v4277
      %v4529 = vadd.f32 %v2972, %v4277
      %v4530 = vadd.f32 %v2973, %v4277
      %v4531 = vadd.f32 %v2974, %v4277
      %v4532 = vadd.f32 %v2975, %v4277
      %v4533 = vadd.f32 %v2976, %v4277
      %v4534 = vadd.f32 %v2977, %v4277
      %v4535 = vld [vmem:[#allocation4] sm:$0xff]
      %v4536 = vmin.f32 %v4279, %v4287
      %v4537 = vmin.f32 %v4536, %v4295
      %v4538 = vmin.f32 %v4537, %v4303
      %v4539 = vmin.f32 %v4538, %v4311
      %v4540 = vmin.f32 %v4539, %v4319
      %v4541 = vmin.f32 %v4540, %v4327
      %v4542 = vmin.f32 %v4541, %v4335
      %v4543 = vmin.f32 %v4542, %v4343
      %v4544 = vmin.f32 %v4543, %v4351
      %v4545 = vmin.f32 %v4544, %v4359
      %v4546 = vmin.f32 %v4545, %v4367
      %v4547 = vmin.f32 %v4546, %v4375
      %v4548 = vmin.f32 %v4547, %v4383
      %v4549 = vmin.f32 %v4548, %v4391
      %v4550 = vmin.f32 %v4549, %v4399
      %v4551 = vmin.f32 %v4550, %v4407
      %v4552 = vmin.f32 %v4551, %v4415
      %v4553 = vmin.f32 %v4552, %v4423
      %v4554 = vmin.f32 %v4553, %v4431
      %v4555 = vmin.f32 %v4554, %v4439
      %v4556 = vmin.f32 %v4555, %v4447
      %v4557 = vmin.f32 %v4556, %v4455
      %v4558 = vmin.f32 %v4557, %v4463
      %v4559 = vmin.f32 %v4558, %v4471
      %v4560 = vmin.f32 %v4559, %v4479
      %v4561 = vmin.f32 %v4560, %v4487
      %v4562 = vmin.f32 %v4561, %v4495
      %v4563 = vmin.f32 %v4562, %v4503
      %v4564 = vmin.f32 %v4563, %v4511
      %v4565 = vmin.f32 %v4564, %v4519
      %v4566 = vmin.f32 %v4565, %v4527
      %v4567 = vrot.slane %v4566, 4
      %v4568 = vmin.f32 %v4566, %v4567
      %v4569 = vrot.slane %v4568, 2
      %v4570 = vmin.f32 %v4568, %v4569
      %v4571 = vrot.slane %v4570, 1
      %v4572 = vmin.f32 %v4570, %v4571
      %v4573 = vmin.f32 %v4280, %v4288
      %v4574 = vmin.f32 %v4573, %v4296
      %v4575 = vmin.f32 %v4574, %v4304
      %v4576 = vmin.f32 %v4575, %v4312
      %v4577 = vmin.f32 %v4576, %v4320
      %v4578 = vmin.f32 %v4577, %v4328
      %v4579 = vmin.f32 %v4578, %v4336
      %v4580 = vmin.f32 %v4579, %v4344
      %v4581 = vmin.f32 %v4580, %v4352
      %v4582 = vmin.f32 %v4581, %v4360
      %v4583 = vmin.f32 %v4582, %v4368
      %v4584 = vmin.f32 %v4583, %v4376
      %v4585 = vmin.f32 %v4584, %v4384
      %v4586 = vmin.f32 %v4585, %v4392
      %v4587 = vmin.f32 %v4586, %v4400
      %v4588 = vmin.f32 %v4587, %v4408
      %v4589 = vmin.f32 %v4588, %v4416
      %v4590 = vmin.f32 %v4589, %v4424
      %v4591 = vmin.f32 %v4590, %v4432
      %v4592 = vmin.f32 %v4591, %v4440
      %v4593 = vmin.f32 %v4592, %v4448
      %v4594 = vmin.f32 %v4593, %v4456
      %v4595 = vmin.f32 %v4594, %v4464
      %v4596 = vmin.f32 %v4595, %v4472
      %v4597 = vmin.f32 %v4596, %v4480
      %v4598 = vmin.f32 %v4597, %v4488
      %v4599 = vmin.f32 %v4598, %v4496
      %v4600 = vmin.f32 %v4599, %v4504
      %v4601 = vmin.f32 %v4600, %v4512
      %v4602 = vmin.f32 %v4601, %v4520
      %v4603 = vmin.f32 %v4602, %v4528
      %v4604 = vrot.slane %v4603, 4
      %v4605 = vmin.f32 %v4603, %v4604
      %v4606 = vrot.slane %v4605, 2
      %v4607 = vmin.f32 %v4605, %v4606
      %v4608 = vrot.slane %v4607, 1
      %v4609 = vmin.f32 %v4607, %v4608
      %v4610 = vmin.f32 %v4281, %v4289
      %v4611 = vmin.f32 %v4610, %v4297
      %v4612 = vmin.f32 %v4611, %v4305
      %v4613 = vmin.f32 %v4612, %v4313
      %v4614 = vmin.f32 %v4613, %v4321
      %v4615 = vmin.f32 %v4614, %v4329
      %v4616 = vmin.f32 %v4615, %v4337
      %v4617 = vmin.f32 %v4616, %v4345
      %v4618 = vmin.f32 %v4617, %v4353
      %v4619 = vmin.f32 %v4618, %v4361
      %v4620 = vmin.f32 %v4619, %v4369
      %v4621 = vmin.f32 %v4620, %v4377
      %v4622 = vmin.f32 %v4621, %v4385
      %v4623 = vmin.f32 %v4622, %v4393
      %v4624 = vmin.f32 %v4623, %v4401
      %v4625 = vmin.f32 %v4624, %v4409
      %v4626 = vmin.f32 %v4625, %v4417
      %v4627 = vmin.f32 %v4626, %v4425
      %v4628 = vmin.f32 %v4627, %v4433
      %v4629 = vmin.f32 %v4628, %v4441
      %v4630 = vmin.f32 %v4629, %v4449
      %v4631 = vmin.f32 %v4630, %v4457
      %v4632 = vmin.f32 %v4631, %v4465
      %v4633 = vmin.f32 %v4632, %v4473
      %v4634 = vmin.f32 %v4633, %v4481
      %v4635 = vmin.f32 %v4634, %v4489
      %v4636 = vmin.f32 %v4635, %v4497
      %v4637 = vmin.f32 %v4636, %v4505
      %v4638 = vmin.f32 %v4637, %v4513
      %v4639 = vmin.f32 %v4638, %v4521
      %v4640 = vmin.f32 %v4639, %v4529
      %v4641 = vrot.slane %v4640, 4
      %v4642 = vmin.f32 %v4640, %v4641
      %v4643 = vrot.slane %v4642, 2
      %v4644 = vmin.f32 %v4642, %v4643
      %v4645 = vrot.slane %v4644, 1
      %v4646 = vmin.f32 %v4644, %v4645
      %v4647 = vmin.f32 %v4282, %v4290
      %v4648 = vmin.f32 %v4647, %v4298
      %v4649 = vmin.f32 %v4648, %v4306
      %v4650 = vmin.f32 %v4649, %v4314
      %v4651 = vmin.f32 %v4650, %v4322
      %v4652 = vmin.f32 %v4651, %v4330
      %v4653 = vmin.f32 %v4652, %v4338
      %v4654 = vmin.f32 %v4653, %v4346
      %v4655 = vmin.f32 %v4654, %v4354
      %v4656 = vmin.f32 %v4655, %v4362
      %v4657 = vmin.f32 %v4656, %v4370
      %v4658 = vmin.f32 %v4657, %v4378
      %v4659 = vmin.f32 %v4658, %v4386
      %v4660 = vmin.f32 %v4659, %v4394
      %v4661 = vmin.f32 %v4660, %v4402
      %v4662 = vmin.f32 %v4661, %v4410
      %v4663 = vmin.f32 %v4662, %v4418
      %v4664 = vmin.f32 %v4663, %v4426
      %v4665 = vmin.f32 %v4664, %v4434
      %v4666 = vmin.f32 %v4665, %v4442
      %v4667 = vmin.f32 %v4666, %v4450
      %v4668 = vmin.f32 %v4667, %v4458
      %v4669 = vmin.f32 %v4668, %v4466
      %v4670 = vmin.f32 %v4669, %v4474
      %v4671 = vmin.f32 %v4670, %v4482
      %v4672 = vmin.f32 %v4671, %v4490
      %v4673 = vmin.f32 %v4672, %v4498
      %v4674 = vmin.f32 %v4673, %v4506
      %v4675 = vmin.f32 %v4674, %v4514
      %v4676 = vmin.f32 %v4675, %v4522
      %v4677 = vmin.f32 %v4676, %v4530
      %v4678 = vrot.slane %v4677, 4
      %v4679 = vmin.f32 %v4677, %v4678
      %v4680 = vrot.slane %v4679, 2
      %v4681 = vmin.f32 %v4679, %v4680
      %v4682 = vrot.slane %v4681, 1
      %v4683 = vmin.f32 %v4681, %v4682
      %v4684 = vmin.f32 %v4283, %v4291
      %v4685 = vmin.f32 %v4684, %v4299
      %v4686 = vmin.f32 %v4685, %v4307
      %v4687 = vmin.f32 %v4686, %v4315
      %v4688 = vmin.f32 %v4687, %v4323
      %v4689 = vmin.f32 %v4688, %v4331
      %v4690 = vmin.f32 %v4689, %v4339
      %v4691 = vmin.f32 %v4690, %v4347
      %v4692 = vmin.f32 %v4691, %v4355
      %v4693 = vmin.f32 %v4692, %v4363
      %v4694 = vmin.f32 %v4693, %v4371
      %v4695 = vmin.f32 %v4694, %v4379
      %v4696 = vmin.f32 %v4695, %v4387
      %v4697 = vmin.f32 %v4696, %v4395
      %v4698 = vmin.f32 %v4697, %v4403
      %v4699 = vmin.f32 %v4698, %v4411
      %v4700 = vmin.f32 %v4699, %v4419
      %v4701 = vmin.f32 %v4700, %v4427
      %v4702 = vmin.f32 %v4701, %v4435
      %v4703 = vmin.f32 %v4702, %v4443
      %v4704 = vmin.f32 %v4703, %v4451
      %v4705 = vmin.f32 %v4704, %v4459
      %v4706 = vmin.f32 %v4705, %v4467
      %v4707 = vmin.f32 %v4706, %v4475
      %v4708 = vmin.f32 %v4707, %v4483
      %v4709 = vmin.f32 %v4708, %v4491
      %v4710 = vmin.f32 %v4709, %v4499
      %v4711 = vmin.f32 %v4710, %v4507
      %v4712 = vmin.f32 %v4711, %v4515
      %v4713 = vmin.f32 %v4712, %v4523
      %v4714 = vmin.f32 %v4713, %v4531
      %v4715 = vrot.slane %v4714, 4
      %v4716 = vmin.f32 %v4714, %v4715
      %v4717 = vrot.slane %v4716, 2
      %v4718 = vmin.f32 %v4716, %v4717
      %v4719 = vrot.slane %v4718, 1
      %v4720 = vmin.f32 %v4718, %v4719
      %v4721 = vmin.f32 %v4284, %v4292
      %v4722 = vmin.f32 %v4721, %v4300
      %v4723 = vmin.f32 %v4722, %v4308
      %v4724 = vmin.f32 %v4723, %v4316
      %v4725 = vmin.f32 %v4724, %v4324
      %v4726 = vmin.f32 %v4725, %v4332
      %v4727 = vmin.f32 %v4726, %v4340
      %v4728 = vmin.f32 %v4727, %v4348
      %v4729 = vmin.f32 %v4728, %v4356
      %v4730 = vmin.f32 %v4729, %v4364
      %v4731 = vmin.f32 %v4730, %v4372
      %v4732 = vmin.f32 %v4731, %v4380
      %v4733 = vmin.f32 %v4732, %v4388
      %v4734 = vmin.f32 %v4733, %v4396
      %v4735 = vmin.f32 %v4734, %v4404
      %v4736 = vmin.f32 %v4735, %v4412
      %v4737 = vmin.f32 %v4736, %v4420
      %v4738 = vmin.f32 %v4737, %v4428
      %v4739 = vmin.f32 %v4738, %v4436
      %v4740 = vmin.f32 %v4739, %v4444
      %v4741 = vmin.f32 %v4740, %v4452
      %v4742 = vmin.f32 %v4741, %v4460
      %v4743 = vmin.f32 %v4742, %v4468
      %v4744 = vmin.f32 %v4743, %v4476
      %v4745 = vmin.f32 %v4744, %v4484
      %v4746 = vmin.f32 %v4745, %v4492
      %v4747 = vmin.f32 %v4746, %v4500
      %v4748 = vmin.f32 %v4747, %v4508
      %v4749 = vmin.f32 %v4748, %v4516
      %v4750 = vmin.f32 %v4749, %v4524
      %v4751 = vmin.f32 %v4750, %v4532
      %v4752 = vrot.slane %v4751, 4
      %v4753 = vmin.f32 %v4751, %v4752
      %v4754 = vrot.slane %v4753, 2
      %v4755 = vmin.f32 %v4753, %v4754
      %v4756 = vrot.slane %v4755, 1
      %v4757 = vmin.f32 %v4755, %v4756
      %v4758 = vmin.f32 %v4285, %v4293
      %v4759 = vmin.f32 %v4758, %v4301
      %v4760 = vmin.f32 %v4759, %v4309
      %v4761 = vmin.f32 %v4760, %v4317
      %v4762 = vmin.f32 %v4761, %v4325
      %v4763 = vmin.f32 %v4762, %v4333
      %v4764 = vmin.f32 %v4763, %v4341
      %v4765 = vmin.f32 %v4764, %v4349
      %v4766 = vmin.f32 %v4765, %v4357
      %v4767 = vmin.f32 %v4766, %v4365
      %v4768 = vmin.f32 %v4767, %v4373
      %v4769 = vmin.f32 %v4768, %v4381
      %v4770 = vmin.f32 %v4769, %v4389
      %v4771 = vmin.f32 %v4770, %v4397
      %v4772 = vmin.f32 %v4771, %v4405
      %v4773 = vmin.f32 %v4772, %v4413
      %v4774 = vmin.f32 %v4773, %v4421
      %v4775 = vmin.f32 %v4774, %v4429
      %v4776 = vmin.f32 %v4775, %v4437
      %v4777 = vmin.f32 %v4776, %v4445
      %v4778 = vmin.f32 %v4777, %v4453
      %v4779 = vmin.f32 %v4778, %v4461
      %v4780 = vmin.f32 %v4779, %v4469
      %v4781 = vmin.f32 %v4780, %v4477
      %v4782 = vmin.f32 %v4781, %v4485
      %v4783 = vmin.f32 %v4782, %v4493
      %v4784 = vmin.f32 %v4783, %v4501
      %v4785 = vmin.f32 %v4784, %v4509
      %v4786 = vmin.f32 %v4785, %v4517
      %v4787 = vmin.f32 %v4786, %v4525
      %v4788 = vmin.f32 %v4787, %v4533
      %v4789 = vrot.slane %v4788, 4
      %v4790 = vmin.f32 %v4788, %v4789
      %v4791 = vrot.slane %v4790, 2
      %v4792 = vmin.f32 %v4790, %v4791
      %v4793 = vrot.slane %v4792, 1
      %v4794 = vmin.f32 %v4792, %v4793
      %v4795 = vmin.f32 %v4286, %v4294
      %v4796 = vmin.f32 %v4795, %v4302
      %v4797 = vmin.f32 %v4796, %v4310
      %v4798 = vmin.f32 %v4797, %v4318
      %v4799 = vmin.f32 %v4798, %v4326
      %v4800 = vmin.f32 %v4799, %v4334
      %v4801 = vmin.f32 %v4800, %v4342
      %v4802 = vmin.f32 %v4801, %v4350
      %v4803 = vmin.f32 %v4802, %v4358
      %v4804 = vmin.f32 %v4803, %v4366
      %v4805 = vmin.f32 %v4804, %v4374
      %v4806 = vmin.f32 %v4805, %v4382
      %v4807 = vmin.f32 %v4806, %v4390
      %v4808 = vmin.f32 %v4807, %v4398
      %v4809 = vmin.f32 %v4808, %v4406
      %v4810 = vmin.f32 %v4809, %v4414
      %v4811 = vmin.f32 %v4810, %v4422
      %v4812 = vmin.f32 %v4811, %v4430
      %v4813 = vmin.f32 %v4812, %v4438
      %v4814 = vmin.f32 %v4813, %v4446
      %v4815 = vmin.f32 %v4814, %v4454
      %v4816 = vmin.f32 %v4815, %v4462
      %v4817 = vmin.f32 %v4816, %v4470
      %v4818 = vmin.f32 %v4817, %v4478
      %v4819 = vmin.f32 %v4818, %v4486
      %v4820 = vmin.f32 %v4819, %v4494
      %v4821 = vmin.f32 %v4820, %v4502
      %v4822 = vmin.f32 %v4821, %v4510
      %v4823 = vmin.f32 %v4822, %v4518
      %v4824 = vmin.f32 %v4823, %v4526
      %v4825 = vmin.f32 %v4824, %v4534
      %v4826 = vrot.slane %v4825, 4
      %v4827 = vmin.f32 %v4825, %v4826
      %v4828 = vrot.slane %v4827, 2
      %v4829 = vmin.f32 %v4827, %v4828
      %v4830 = vrot.slane %v4829, 1
      %v4831 = vmin.f32 %v4829, %v4830
      %v4840 = vcombine.low %v4572, %v4609
      %v4841 = vcombine.low %v4646, %v4683
      %v4842 = vcombine.low %v4720, %v4757
      %v4843 = vcombine.low %v4794, %v4831
      %v4845 = vunpack.c.l.s4 1966171168
      %v4846 = vunpack.c.0.s8 %v4845
      %v4847 = vlaneseq
      %v4848 = vshrl.u32 %v4847, 7
      %v4849 = vsub.s32 %v4846, %v4848
      %v4850 = vrot.slane %v4840, %v4849
      %v4852 = vunpack.c.l.s4 1966171168
      %v4853 = vunpack.c.0.s8 %v4852
      %v4854 = vlaneseq
      %v4855 = vshrl.u32 %v4854, 7
      %v4856 = vsub.s32 %v4853, %v4855
      %v4857 = vrot.slane %v4841, %v4856
      %v4859 = vunpack.c.l.s4 1966171168
      %v4860 = vunpack.c.0.s8 %v4859
      %v4861 = vlaneseq
      %v4862 = vshrl.u32 %v4861, 7
      %v4863 = vsub.s32 %v4860, %v4862
      %v4864 = vrot.slane %v4842, %v4863
      %v4866 = vunpack.c.l.s4 1966171168
      %v4867 = vunpack.c.0.s8 %v4866
      %v4868 = vlaneseq
      %v4869 = vshrl.u32 %v4868, 7
      %v4870 = vsub.s32 %v4867, %v4869
      %v4871 = vrot.slane %v4843, %v4870
      %v4872 = vcombine.low %v4850, %v4857
      %v4873 = vcombine.low %v4864, %v4871
      %v4875 = vunpack.c.l.s4 1966171168
      %v4876 = vunpack.c.0.s8 %v4875
      %v4877 = vlaneseq
      %v4878 = vshrl.u32 %v4877, 7
      %v4879 = vsub.s32 %v4876, %v4878
      %v4880 = vrot.slane %v4872, %v4879
      %v4882 = vunpack.c.l.s4 1966171168
      %v4883 = vunpack.c.0.s8 %v4882
      %v4884 = vlaneseq
      %v4885 = vshrl.u32 %v4884, 7
      %v4886 = vsub.s32 %v4883, %v4885
      %v4887 = vrot.slane %v4873, %v4886
      %v4888 = vcombine.low %v4880, %v4887
      %v4890 = vmin.f32 %v4535, %v4888
      %4891 = vst [vmem:[#allocation4] sm:$0xff] %v4890
      %p4892 = scmp.eq.s32.totalorder %s18, 3
      // Predicated region
      $region33: #{_chamfer_core.1} parent=27 // pred_check
        %p4893 = pneg %p4892
      $region34: #{_chamfer_core.1} parent=27 // pred_check_branch
        %4895 = sbr.rel (%p4893) target = $region36
      $region35: #{_chamfer_core.1} parent=27 // pred_region
        %v4896 = vld [vmem:[#allocation2] sm:$0xff]
        %v4897 = vld [vmem:[#allocation2 + $0x8] sm:$0xff]
        %v4898 = vld [vmem:[#allocation2 + $0x10] sm:$0xff]
        %v4899 = vld [vmem:[#allocation2 + $0x18] sm:$0xff]
        %v4900 = vld [vmem:[#allocation2 + $0x20] sm:$0xff]
        %v4901 = vld [vmem:[#allocation2 + $0x28] sm:$0xff]
        %v4902 = vld [vmem:[#allocation2 + $0x30] sm:$0xff]
        %v4903 = vld [vmem:[#allocation2 + $0x38] sm:$0xff]
        %v4904 = vld [vmem:[#allocation2 + $0x40] sm:$0xff]
        %v4905 = vld [vmem:[#allocation2 + $0x48] sm:$0xff]
        %v4906 = vld [vmem:[#allocation2 + $0x50] sm:$0xff]
        %v4907 = vld [vmem:[#allocation2 + $0x58] sm:$0xff]
        %v4908 = vld [vmem:[#allocation2 + $0x60] sm:$0xff]
        %v4909 = vld [vmem:[#allocation2 + $0x68] sm:$0xff]
        %v4910 = vld [vmem:[#allocation2 + $0x70] sm:$0xff]
        %v4911 = vld [vmem:[#allocation2 + $0x78] sm:$0xff]
        %v4912 = vld [vmem:[#allocation2 + $0x80] sm:$0xff]
        %v4913 = vld [vmem:[#allocation2 + $0x88] sm:$0xff]
        %v4914 = vld [vmem:[#allocation2 + $0x90] sm:$0xff]
        %v4915 = vld [vmem:[#allocation2 + $0x98] sm:$0xff]
        %v4916 = vld [vmem:[#allocation2 + $0xa0] sm:$0xff]
        %v4917 = vld [vmem:[#allocation2 + $0xa8] sm:$0xff]
        %v4918 = vld [vmem:[#allocation2 + $0xb0] sm:$0xff]
        %v4919 = vld [vmem:[#allocation2 + $0xb8] sm:$0xff]
        %v4920 = vld [vmem:[#allocation2 + $0xc0] sm:$0xff]
        %v4921 = vld [vmem:[#allocation2 + $0xc8] sm:$0xff]
        %v4922 = vld [vmem:[#allocation2 + $0xd0] sm:$0xff]
        %v4923 = vld [vmem:[#allocation2 + $0xd8] sm:$0xff]
        %v4924 = vld [vmem:[#allocation2 + $0xe0] sm:$0xff]
        %v4925 = vld [vmem:[#allocation2 + $0xe8] sm:$0xff]
        %v4926 = vld [vmem:[#allocation2 + $0xf0] sm:$0xff]
        %v4927 = vld [vmem:[#allocation2 + $0xf8] sm:$0xff]
        %v4928 = vsel %vm3830, %v4896, 0.0
        %v4929 = vsel %vm3830, %v4897, 0.0
        %v4930 = vadd.f32 %v4928, %v4929
        %v4931 = vsel %vm3830, %v4898, 0.0
        %v4932 = vadd.f32 %v4930, %v4931
        %v4933 = vsel %vm3830, %v4899, 0.0
        %v4934 = vadd.f32 %v4932, %v4933
        %v4935 = vsel %vm3830, %v4900, 0.0
        %v4936 = vadd.f32 %v4934, %v4935
        %v4937 = vsel %vm3830, %v4901, 0.0
        %v4938 = vadd.f32 %v4936, %v4937
        %v4939 = vsel %vm3830, %v4902, 0.0
        %v4940 = vadd.f32 %v4938, %v4939
        %v4941 = vsel %vm3830, %v4903, 0.0
        %v4942 = vadd.f32 %v4940, %v4941
        %v4943 = vsel %vm3830, %v4904, 0.0
        %v4944 = vadd.f32 %v4942, %v4943
        %v4945 = vsel %vm3830, %v4905, 0.0
        %v4946 = vadd.f32 %v4944, %v4945
        %v4947 = vsel %vm3830, %v4906, 0.0
        %v4948 = vadd.f32 %v4946, %v4947
        %v4949 = vsel %vm3830, %v4907, 0.0
        %v4950 = vadd.f32 %v4948, %v4949
        %v4951 = vsel %vm3830, %v4908, 0.0
        %v4952 = vadd.f32 %v4950, %v4951
        %v4953 = vsel %vm3830, %v4909, 0.0
        %v4954 = vadd.f32 %v4952, %v4953
        %v4955 = vsel %vm3830, %v4910, 0.0
        %v4956 = vadd.f32 %v4954, %v4955
        %v4957 = vsel %vm3830, %v4911, 0.0
        %v4958 = vadd.f32 %v4956, %v4957
        %v4959 = vsel %vm3830, %v4912, 0.0
        %v4960 = vadd.f32 %v4958, %v4959
        %v4961 = vsel %vm3830, %v4913, 0.0
        %v4962 = vadd.f32 %v4960, %v4961
        %v4963 = vsel %vm3830, %v4914, 0.0
        %v4964 = vadd.f32 %v4962, %v4963
        %v4965 = vsel %vm3830, %v4915, 0.0
        %v4966 = vadd.f32 %v4964, %v4965
        %v4967 = vsel %vm3830, %v4916, 0.0
        %v4968 = vadd.f32 %v4966, %v4967
        %v4969 = vsel %vm3830, %v4917, 0.0
        %v4970 = vadd.f32 %v4968, %v4969
        %v4971 = vsel %vm3830, %v4918, 0.0
        %v4972 = vadd.f32 %v4970, %v4971
        %v4973 = vsel %vm3830, %v4919, 0.0
        %v4974 = vadd.f32 %v4972, %v4973
        %v4975 = vsel %vm3830, %v4920, 0.0
        %v4976 = vadd.f32 %v4974, %v4975
        %v4977 = vsel %vm3830, %v4921, 0.0
        %v4978 = vadd.f32 %v4976, %v4977
        %v4979 = vsel %vm3830, %v4922, 0.0
        %v4980 = vadd.f32 %v4978, %v4979
        %v4981 = vsel %vm3830, %v4923, 0.0
        %v4982 = vadd.f32 %v4980, %v4981
        %v4983 = vsel %vm3830, %v4924, 0.0
        %v4984 = vadd.f32 %v4982, %v4983
        %v4985 = vsel %vm3830, %v4925, 0.0
        %v4986 = vadd.f32 %v4984, %v4985
        %v4987 = vsel %vm3830, %v4926, 0.0
        %v4988 = vadd.f32 %v4986, %v4987
        %v4989 = vsel %vm3830, %v4927, 0.0
        %v4990 = vadd.f32 %v4988, %v4989
        %4991 = vadd.xlane.f32.xlu0 %v4990
        %v4992 = vpop.xlane.xlu0 %4991
        %v4993 = vrot.slane %v4992, 4
        %v4994 = vadd.f32 %v4992, %v4993
        %v4995 = vrot.slane %v4994, 2
        %v4996 = vadd.f32 %v4994, %v4995
        %v4997 = vrot.slane %v4996, 1
        %v4998 = vadd.f32 %v4996, %v4997
        %s4999 = vtos %v4998
        %v5000 = vld [vmem:[#allocation3] sm:$0xff]
        %v5001 = vld [vmem:[#allocation3 + $0x8] sm:$0xff]
        %v5002 = vld [vmem:[#allocation3 + $0x10] sm:$0xff]
        %v5003 = vld [vmem:[#allocation3 + $0x18] sm:$0xff]
        %v5004 = vld [vmem:[#allocation3 + $0x20] sm:$0xff]
        %v5005 = vld [vmem:[#allocation3 + $0x28] sm:$0xff]
        %v5006 = vld [vmem:[#allocation3 + $0x30] sm:$0xff]
        %v5007 = vld [vmem:[#allocation3 + $0x38] sm:$0xff]
        %v5008 = vld [vmem:[#allocation3 + $0x40] sm:$0xff]
        %v5009 = vld [vmem:[#allocation3 + $0x48] sm:$0xff]
        %v5010 = vld [vmem:[#allocation3 + $0x50] sm:$0xff]
        %v5011 = vld [vmem:[#allocation3 + $0x58] sm:$0xff]
        %v5012 = vld [vmem:[#allocation3 + $0x60] sm:$0xff]
        %v5013 = vld [vmem:[#allocation3 + $0x68] sm:$0xff]
        %v5014 = vld [vmem:[#allocation3 + $0x70] sm:$0xff]
        %v5015 = vld [vmem:[#allocation3 + $0x78] sm:$0xff]
        %v5016 = vld [vmem:[#allocation3 + $0x80] sm:$0xff]
        %v5017 = vld [vmem:[#allocation3 + $0x88] sm:$0xff]
        %v5018 = vld [vmem:[#allocation3 + $0x90] sm:$0xff]
        %v5019 = vld [vmem:[#allocation3 + $0x98] sm:$0xff]
        %v5020 = vld [vmem:[#allocation3 + $0xa0] sm:$0xff]
        %v5021 = vld [vmem:[#allocation3 + $0xa8] sm:$0xff]
        %v5022 = vld [vmem:[#allocation3 + $0xb0] sm:$0xff]
        %v5023 = vld [vmem:[#allocation3 + $0xb8] sm:$0xff]
        %v5024 = vld [vmem:[#allocation3 + $0xc0] sm:$0xff]
        %v5025 = vld [vmem:[#allocation3 + $0xc8] sm:$0xff]
        %v5026 = vld [vmem:[#allocation3 + $0xd0] sm:$0xff]
        %v5027 = vld [vmem:[#allocation3 + $0xd8] sm:$0xff]
        %v5028 = vld [vmem:[#allocation3 + $0xe0] sm:$0xff]
        %v5029 = vld [vmem:[#allocation3 + $0xe8] sm:$0xff]
        %v5030 = vld [vmem:[#allocation3 + $0xf0] sm:$0xff]
        %v5031 = vld [vmem:[#allocation3 + $0xf8] sm:$0xff]
        %v5032 = vsel %vm3830, %v5000, 0.0
        %v5033 = vsel %vm3830, %v5001, 0.0
        %v5034 = vadd.f32 %v5032, %v5033
        %v5035 = vsel %vm3830, %v5002, 0.0
        %v5036 = vadd.f32 %v5034, %v5035
        %v5037 = vsel %vm3830, %v5003, 0.0
        %v5038 = vadd.f32 %v5036, %v5037
        %v5039 = vsel %vm3830, %v5004, 0.0
        %v5040 = vadd.f32 %v5038, %v5039
        %v5041 = vsel %vm3830, %v5005, 0.0
        %v5042 = vadd.f32 %v5040, %v5041
        %v5043 = vsel %vm3830, %v5006, 0.0
        %v5044 = vadd.f32 %v5042, %v5043
        %v5045 = vsel %vm3830, %v5007, 0.0
        %v5046 = vadd.f32 %v5044, %v5045
        %v5047 = vsel %vm3830, %v5008, 0.0
        %v5048 = vadd.f32 %v5046, %v5047
        %v5049 = vsel %vm3830, %v5009, 0.0
        %v5050 = vadd.f32 %v5048, %v5049
        %v5051 = vsel %vm3830, %v5010, 0.0
        %v5052 = vadd.f32 %v5050, %v5051
        %v5053 = vsel %vm3830, %v5011, 0.0
        %v5054 = vadd.f32 %v5052, %v5053
        %v5055 = vsel %vm3830, %v5012, 0.0
        %v5056 = vadd.f32 %v5054, %v5055
        %v5057 = vsel %vm3830, %v5013, 0.0
        %v5058 = vadd.f32 %v5056, %v5057
        %v5059 = vsel %vm3830, %v5014, 0.0
        %v5060 = vadd.f32 %v5058, %v5059
        %v5061 = vsel %vm3830, %v5015, 0.0
        %v5062 = vadd.f32 %v5060, %v5061
        %v5063 = vsel %vm3830, %v5016, 0.0
        %v5064 = vadd.f32 %v5062, %v5063
        %v5065 = vsel %vm3830, %v5017, 0.0
        %v5066 = vadd.f32 %v5064, %v5065
        %v5067 = vsel %vm3830, %v5018, 0.0
        %v5068 = vadd.f32 %v5066, %v5067
        %v5069 = vsel %vm3830, %v5019, 0.0
        %v5070 = vadd.f32 %v5068, %v5069
        %v5071 = vsel %vm3830, %v5020, 0.0
        %v5072 = vadd.f32 %v5070, %v5071
        %v5073 = vsel %vm3830, %v5021, 0.0
        %v5074 = vadd.f32 %v5072, %v5073
        %v5075 = vsel %vm3830, %v5022, 0.0
        %v5076 = vadd.f32 %v5074, %v5075
        %v5077 = vsel %vm3830, %v5023, 0.0
        %v5078 = vadd.f32 %v5076, %v5077
        %v5079 = vsel %vm3830, %v5024, 0.0
        %v5080 = vadd.f32 %v5078, %v5079
        %v5081 = vsel %vm3830, %v5025, 0.0
        %v5082 = vadd.f32 %v5080, %v5081
        %v5083 = vsel %vm3830, %v5026, 0.0
        %v5084 = vadd.f32 %v5082, %v5083
        %v5085 = vsel %vm3830, %v5027, 0.0
        %v5086 = vadd.f32 %v5084, %v5085
        %v5087 = vsel %vm3830, %v5028, 0.0
        %v5088 = vadd.f32 %v5086, %v5087
        %v5089 = vsel %vm3830, %v5029, 0.0
        %v5090 = vadd.f32 %v5088, %v5089
        %v5091 = vsel %vm3830, %v5030, 0.0
        %v5092 = vadd.f32 %v5090, %v5091
        %v5093 = vsel %vm3830, %v5031, 0.0
        %v5094 = vadd.f32 %v5092, %v5093
        %5095 = vadd.xlane.f32.xlu0 %v5094
        %v5096 = vpop.xlane.xlu0 %5095
        %v5097 = vrot.slane %v5096, 4
        %v5098 = vadd.f32 %v5096, %v5097
        %v5099 = vrot.slane %v5098, 2
        %v5100 = vadd.f32 %v5098, %v5099
        %v5101 = vrot.slane %v5100, 1
        %v5102 = vadd.f32 %v5100, %v5101
        %s5103 = vtos %v5102
        %v5104 = vld [vmem:[#allocation4] sm:$0xff]
        %v5106 = vunpack.c.l.s4 1966171168
        %v5107 = vunpack.c.0.s8 %v5106
        %v5108 = vlaneseq
        %v5109 = vshrl.u32 %v5108, 7
        %v5110 = vsub.s32 %v5107, %v5109
        %v5111 = vrot.slane %v290, %v5110
        %v5113 = vunpack.c.l.s4 1966171168
        %v5114 = vunpack.c.0.s8 %v5113
        %v5115 = vlaneseq
        %v5116 = vshrl.u32 %v5115, 7
        %v5117 = vsub.s32 %v5114, %v5116
        %v5118 = vrot.slane %v291, %v5117
        %v5120 = vunpack.c.l.s4 1966171168
        %v5121 = vunpack.c.0.s8 %v5120
        %v5122 = vlaneseq
        %v5123 = vshrl.u32 %v5122, 7
        %v5124 = vsub.s32 %v5121, %v5123
        %v5125 = vrot.slane %v292, %v5124
        %v5127 = vunpack.c.l.s4 1966171168
        %v5128 = vunpack.c.0.s8 %v5127
        %v5129 = vlaneseq
        %v5130 = vshrl.u32 %v5129, 7
        %v5131 = vsub.s32 %v5128, %v5130
        %v5132 = vrot.slane %v293, %v5131
        %v5133 = vcombine.high %v5111, %v5118
        %v5134 = vcombine.high %v5125, %v5132
        %v5136 = vunpack.c.l.s4 1966171168
        %v5137 = vunpack.c.0.s8 %v5136
        %v5138 = vlaneseq
        %v5139 = vshrl.u32 %v5138, 7
        %v5140 = vsub.s32 %v5137, %v5139
        %v5141 = vrot.slane %v5133, %v5140
        %v5143 = vunpack.c.l.s4 1966171168
        %v5144 = vunpack.c.0.s8 %v5143
        %v5145 = vlaneseq
        %v5146 = vshrl.u32 %v5145, 7
        %v5147 = vsub.s32 %v5144, %v5146
        %v5148 = vrot.slane %v5134, %v5147
        %v5149 = vcombine.high %v5141, %v5148
        %v5151 = vmul.f32 %v5104, %v5149
        %v5153 = vlaneseq
        %v5154 = vshrl.u32 %v5153, 7
        %v5155 = vsub.s32 0, %v5154
        %v5156 = vrot.slane %v5151, %v5155
        %v5157 = vlaneseq
        %v5158 = vshrl.u32 %v5157, 7
        %v5159 = vsub.s32 1, %v5158
        %v5160 = vrot.slane %v5151, %v5159
        %v5161 = vlaneseq
        %v5162 = vshrl.u32 %v5161, 7
        %v5163 = vsub.s32 2, %v5162
        %v5164 = vrot.slane %v5151, %v5163
        %v5165 = vlaneseq
        %v5166 = vshrl.u32 %v5165, 7
        %v5167 = vsub.s32 3, %v5166
        %v5168 = vrot.slane %v5151, %v5167
        %v5169 = vlaneseq
        %v5170 = vshrl.u32 %v5169, 7
        %v5171 = vsub.s32 4, %v5170
        %v5172 = vrot.slane %v5151, %v5171
        %v5173 = vlaneseq
        %v5174 = vshrl.u32 %v5173, 7
        %v5175 = vsub.s32 5, %v5174
        %v5176 = vrot.slane %v5151, %v5175
        %v5177 = vlaneseq
        %v5178 = vshrl.u32 %v5177, 7
        %v5179 = vsub.s32 6, %v5178
        %v5180 = vrot.slane %v5151, %v5179
        %v5181 = vlaneseq
        %v5182 = vshrl.u32 %v5181, 7
        %v5183 = vsub.s32 7, %v5182
        %v5184 = vrot.slane %v5151, %v5183
        %vm5193 = vcmask 1040384
        %v5194 = vsel %vm5193, %v5156, 0.0
        %v5195 = vsel %vm5193, %v5160, 0.0
        %v5196 = vadd.f32 %v5194, %v5195
        %v5197 = vsel %vm5193, %v5164, 0.0
        %v5198 = vadd.f32 %v5196, %v5197
        %v5199 = vsel %vm5193, %v5168, 0.0
        %v5200 = vadd.f32 %v5198, %v5199
        %v5201 = vsel %vm5193, %v5172, 0.0
        %v5202 = vadd.f32 %v5200, %v5201
        %v5203 = vsel %vm5193, %v5176, 0.0
        %v5204 = vadd.f32 %v5202, %v5203
        %v5205 = vsel %vm5193, %v5180, 0.0
        %v5206 = vadd.f32 %v5204, %v5205
        %v5207 = vsel %vm5193, %v5184, 0.0
        %v5208 = vadd.f32 %v5206, %v5207
        %5209 = vadd.xlane.f32.xlu0 %v5208
        %v5210 = vpop.xlane.xlu0 %5209
        %v5211 = vrot.slane %v5210, 4
        %v5212 = vadd.f32 %v5210, %v5211
        %v5213 = vrot.slane %v5212, 2
        %v5214 = vadd.f32 %v5212, %v5213
        %v5215 = vrot.slane %v5214, 1
        %v5216 = vadd.f32 %v5214, %v5215
        %s5217 = vtos %v5216
        %v5218 = vlaneseq
        %v5219 = vshrl.u32 %v5218, 7
        %v5220 = vsub.s32 3, %v5219
        %v5221 = vrot.slane %v290, %v5220
        %v5222 = vlaneseq
        %v5223 = vshrl.u32 %v5222, 7
        %v5224 = vsub.s32 7, %v5223
        %v5225 = vrot.slane %v290, %v5224
        %v5226 = vlaneseq
        %v5227 = vshrl.u32 %v5226, 7
        %v5228 = vsub.s32 3, %v5227
        %v5229 = vrot.slane %v291, %v5228
        %v5230 = vlaneseq
        %v5231 = vshrl.u32 %v5230, 7
        %v5232 = vsub.s32 7, %v5231
        %v5233 = vrot.slane %v291, %v5232
        %v5234 = vlaneseq
        %v5235 = vshrl.u32 %v5234, 7
        %v5236 = vsub.s32 3, %v5235
        %v5237 = vrot.slane %v292, %v5236
        %v5238 = vlaneseq
        %v5239 = vshrl.u32 %v5238, 7
        %v5240 = vsub.s32 7, %v5239
        %v5241 = vrot.slane %v292, %v5240
        %v5242 = vlaneseq
        %v5243 = vshrl.u32 %v5242, 7
        %v5244 = vsub.s32 3, %v5243
        %v5245 = vrot.slane %v293, %v5244
        %v5246 = vlaneseq
        %v5247 = vshrl.u32 %v5246, 7
        %v5248 = vsub.s32 7, %v5247
        %v5249 = vrot.slane %v293, %v5248
        %v5258 = vsel %vm5193, %v5221, 0.0
        %v5259 = vsel %vm5193, %v5225, 0.0
        %v5260 = vadd.f32 %v5258, %v5259
        %v5261 = vsel %vm5193, %v5229, 0.0
        %v5262 = vadd.f32 %v5260, %v5261
        %v5263 = vsel %vm5193, %v5233, 0.0
        %v5264 = vadd.f32 %v5262, %v5263
        %v5265 = vsel %vm5193, %v5237, 0.0
        %v5266 = vadd.f32 %v5264, %v5265
        %v5267 = vsel %vm5193, %v5241, 0.0
        %v5268 = vadd.f32 %v5266, %v5267
        %v5269 = vsel %vm5193, %v5245, 0.0
        %v5270 = vadd.f32 %v5268, %v5269
        %v5271 = vsel %vm5193, %v5249, 0.0
        %v5272 = vadd.f32 %v5270, %v5271
        %5273 = vadd.xlane.f32.xlu0 %v5272
        %v5274 = vpop.xlane.xlu0 %5273
        %v5275 = vrot.slane %v5274, 4
        %v5276 = vadd.f32 %v5274, %v5275
        %v5277 = vrot.slane %v5276, 2
        %v5278 = vadd.f32 %v5276, %v5277
        %v5279 = vrot.slane %v5278, 1
        %v5280 = vadd.f32 %v5278, %v5279
        %s5281 = vtos %v5280
        %v5282 = vstv %s5103
        %v5283 = vrcp.pop %v5282
        %s5284 = vtos %v5283
        %s5285 = smul.f32 %s4999, %s5284
        %v5286 = vstv %s5281
        %v5287 = vrcp.pop %v5286
        %s5288 = vtos %v5287
        %s5289 = smul.f32 %s5217, %s5288
        %s5290 = sadd.f32 %s5285, %s5289
        %v5291 = vstv %s5290
        %5292 = vst [vmem:[%s187] sm:$0x1] %v5291
      $region36: #{_chamfer_core.1} parent=27 // pred_fallthru
        _
      %p5293 = scmp.lt.s32.totalorder %s17, 9
      %s5294 = scalar_select %p5293, %s17, 9
      %s5295 = scalar_lea.vmem %s2, %s5294
      // Predicated region
      $region37: #{_chamfer_core.1} parent=27 // pred_check
        %p5296 = pneg %p97
      $region38: #{_chamfer_core.1} parent=27 // pred_check_branch
        %5298 = sbr.rel (%p5296) target = $region40
      $region39: #{_chamfer_core.1} parent=27 // pred_region
        _
      $region40: #{_chamfer_core.1} parent=27 // pred_fallthru
        _
    $region28: #{_chamfer_core.1} parent=5 // pred_fallthru
      _
    %p5299 = scmp.le.s32.totalorder 2, %s8
    // Predicated region
    $region41: #{_chamfer_core.1} parent=5 // pred_check
      %p5300 = pneg %p5299
    $region42: #{_chamfer_core.1} parent=5 // pred_check_branch
      %5302 = sbr.rel (%p5300) target = $region44
    $region43: #{_chamfer_core.1} parent=5 // pred_region
      %s5303 = ssub.s32 %s8, 2
      // Predicated region
      $region45: #{_chamfer_core.1} parent=43 // pred_check
        %p5304 = pneg %p103
      $region46: #{_chamfer_core.1} parent=43 // pred_check_branch
        %5306 = sbr.rel (%p5304) target = $region48
      $region47: #{_chamfer_core.1} parent=43 // pred_region
        %p5307 = scmp.lt.s32.totalorder %s19, 9
        %s5308 = scalar_select %p5307, %s19, 9
        %s5309 = scalar_lea.vmem %s2, %s5308
      $region48: #{_chamfer_core.1} parent=43 // pred_fallthru
        _
    $region44: #{_chamfer_core.1} parent=5 // pred_fallthru
      _
  $region6: #{_chamfer_core.1} parent=0 // loop_footer
    %s12 = sadd.s32 1, %s8
  $region7: #{_chamfer_core.1} parent=0 // loop_footer_branch
    %7 = sbr.rel target = $region3
  $region8: #{_chamfer_core.1} parent=0 // loop_exit
    _

</llo_original>
